<compile_context>
chip_gen: v7x
topology: tpu7x:2x2x1
jax: 0.10.0
libtpu: 0.0.40
codegen_flags: <defaults>
</compile_context>

<pallas_src>
import math
from functools import partial

import jax
import jax.numpy as jnp
from jax import lax
from jax.experimental import pallas as pl
from jax.experimental.pallas import tpu as pltpu  # noqa: F401


# ----------------------------------------------------------------------------
# In-kernel math helpers (operate on traced values)
# ----------------------------------------------------------------------------

_ATAN_COEFFS = (  # SLEEF atanf minimax odd polynomial, valid on [0, 1]
    0.00282363896258175373077393,
    -0.0159569028764963150024414,
    0.0425049886107444763183594,
    -0.0748900920152664184570312,
    0.106347933411598205566406,
    -0.142027363181114196777344,
    0.199926957488059997558594,
    -0.333331018686294555664062,
)


def _atan_poly(r):
    s = r * r
    u = jnp.float32(_ATAN_COEFFS[0])
    for c in _ATAN_COEFFS[1:]:
        u = u * s + jnp.float32(c)
    return r + r * s * u


def _atan2(y, x):
    # atan2 built from the polynomial atan + quadrant selects (VPU/EUP friendly).
    ax = jnp.abs(x)
    ay = jnp.abs(y)
    r = jnp.minimum(ax, ay) / jnp.maximum(jnp.maximum(ax, ay), jnp.float32(1e-30))
    a = _atan_poly(r)
    a = jnp.where(ay > ax, jnp.float32(math.pi / 2) - a, a)
    a = jnp.where(x < 0.0, jnp.float32(math.pi) - a, a)
    return jnp.where(y < 0.0, -a, a)


def _layernorm(x, g, b, eps=1e-5):
    mu = jnp.mean(x, axis=-1, keepdims=True)
    d = x - mu
    var = jnp.mean(d * d, axis=-1, keepdims=True)
    return d * lax.rsqrt(var + eps) * g + b


def _gelu_tanh(x):
    # TODO(synk): SelfTransformerBlocks source not in the spec; tanh-approx GELU used
    # (PyTorch nn.GELU default is the exact erf form).
    return 0.5 * x * (1.0 + jnp.tanh(0.7978845608028654 * (x + 0.044715 * x * x * x)))


def _silu(x):
    return x * (1.0 / (1.0 + jnp.exp(-x)))


# ----------------------------------------------------------------------------
# The single fused Pallas kernel
# ----------------------------------------------------------------------------

def _encoder_kernel(frames_ref, cos_ref, sin_ref, bns_ref, bnb_ref,
                    w1m_ref, w1p_ref, b1_ref, w2_ref, b2_ref, pe_ref,
                    ln1g_ref, ln1b_ref, wqkv_ref, bqkv_ref, wo_ref, bo_ref,
                    ln2g_ref, ln2b_ref, ffw1_ref, ffb1_ref, ffw2_ref, ffb2_ref,
                    lnfg_ref, lnfb_ref,
                    pw1_ref, pb1_ref, pw2_ref, pb2_ref, pw3_ref, pb3_ref,
                    emb_ref, proj_ref, *, B, T, P, L, heads, dim_head):
    inner = heads * dim_head
    scale = 1.0 / math.sqrt(dim_head)

    # ---- STFT front-end: DFT + |X|^0.3 + inference BN + phase + MLP + PE ----
    fr = frames_ref[...]                                                  # (B*T, n_fft) f32
    re = jnp.dot(fr, cos_ref[...], preferred_element_type=jnp.float32)   # (B*T, F)
    im = jnp.dot(fr, sin_ref[...], preferred_element_type=jnp.float32)   # (B*T, F)

    p2 = re * re + im * im
    mag = jnp.exp(0.15 * jnp.log(jnp.maximum(p2, 1e-38)))                # (re^2+im^2)^0.15
    mag = jnp.where(p2 > 0.0, mag, 0.0)
    mag = mag * bns_ref[...] + bnb_ref[...]                              # inference BatchNorm1d
    ph = _atan2(im, re)

    # MLP layer 1 with the (2F, m0) weight split into mag/phase halves (avoids concat).
    h = jnp.dot(mag.astype(jnp.bfloat16), w1m_ref[...], preferred_element_type=jnp.float32)
    h = h + jnp.dot(ph.astype(jnp.bfloat16), w1p_ref[...], preferred_element_type=jnp.float32)
    h = jnp.maximum(h + b1_ref[...], 0.0)                                # ReLU
    y = jnp.dot(h.astype(jnp.bfloat16), w2_ref[...],
                preferred_element_type=jnp.float32) + b2_ref[...]        # (B*T, D)
    x0 = y + pe_ref[...]                                                 # + PE (+ task_emb), pre-broadcast

    # ---- transformer paths (all layers unrolled; weights indexed by static ints) ----
    for p in range(P):
        x = x0
        for l in range(L):
            idx = p * L + l

            # pre-LN multi-head self-attention
            hln = _layernorm(x, ln1g_ref[idx], ln1b_ref[idx])
            qkv = jnp.dot(hln.astype(jnp.bfloat16), wqkv_ref[idx],
                          preferred_element_type=jnp.float32) + bqkv_ref[idx]   # (B*T, 3*inner)
            wo_l = wo_ref[idx]                                                  # (inner, D) bf16

            o_acc = jnp.zeros_like(x)
            for hd in range(heads):
                q = qkv[:, hd * dim_head:(hd + 1) * dim_head].reshape(B, T, dim_head)
                k = qkv[:, inner + hd * dim_head: inner + (hd + 1) * dim_head].reshape(B, T, dim_head)
                v = qkv[:, 2 * inner + hd * dim_head: 2 * inner + (hd + 1) * dim_head].reshape(B, T, dim_head)

                s = jnp.einsum('bqd,bkd->bqk', q.astype(jnp.bfloat16), k.astype(jnp.bfloat16),
                               preferred_element_type=jnp.float32) * scale
                s = s - jnp.max(s, axis=-1, keepdims=True)
                e = jnp.exp(s)
                pattn = e * pl.reciprocal(jnp.sum(e, axis=-1, keepdims=True), approx=True)
                oh = jnp.einsum('bqk,bkd->bqd', pattn.astype(jnp.bfloat16), v.astype(jnp.bfloat16),
                                preferred_element_type=jnp.float32)             # (B, T, Dh)

                # accumulate this head's contribution through the output projection
                o_acc = o_acc + jnp.dot(oh.reshape(B * T, dim_head).astype(jnp.bfloat16),
                                        wo_l[hd * dim_head:(hd + 1) * dim_head, :],
                                        preferred_element_type=jnp.float32)
            x = x + o_acc + bo_ref[idx]

            # pre-LN feed-forward
            hln = _layernorm(x, ln2g_ref[idx], ln2b_ref[idx])
            hff = jnp.dot(hln.astype(jnp.bfloat16), ffw1_ref[idx],
                          preferred_element_type=jnp.float32) + ffb1_ref[idx]
            hff = _gelu_tanh(hff)
            hff = jnp.dot(hff.astype(jnp.bfloat16), ffw2_ref[idx],
                          preferred_element_type=jnp.float32) + ffb2_ref[idx]
            x = x + hff

        # final LayerNorm of this path -> embeddings[p]
        e_out = _layernorm(x, lnfg_ref[p], lnfb_ref[p])
        emb_ref[p] = e_out

        # embed_proj[p]: Linear -> SiLU -> Linear -> SiLU -> Linear
        hp = _silu(jnp.dot(e_out.astype(jnp.bfloat16), pw1_ref[p],
                           preferred_element_type=jnp.float32) + pb1_ref[p])
        hp = _silu(jnp.dot(hp.astype(jnp.bfloat16), pw2_ref[p],
                           preferred_element_type=jnp.float32) + pb2_ref[p])
        hp = jnp.dot(hp.astype(jnp.bfloat16), pw3_ref[p],
                     preferred_element_type=jnp.float32) + pb3_ref[p]
        proj_ref[p] = hp


# ----------------------------------------------------------------------------
# Parameters (torch-like init) + one-time preparation into kernel operands
# ----------------------------------------------------------------------------

def sinusoidal_pe(seq_len, d):
    pos = jnp.arange(seq_len, dtype=jnp.float32)[:, None]
    i = jnp.arange(0, d, 2, dtype=jnp.float32)[None, :]
    div = jnp.exp(-math.log(10000.0) * i / d)
    pe = jnp.zeros((seq_len, d), jnp.float32)
    pe = pe.at[:, 0::2].set(jnp.sin(pos * div))
    pe = pe.at[:, 1::2].set(jnp.cos(pos * div))
    return pe


def init_params(key, cfg):
    it = iter(jax.random.split(key, 256))

    def lin(kin, kout):
        w = jax.random.normal(next(it), (kin, kout), jnp.float32) / math.sqrt(kin)
        b = 0.01 * jax.random.normal(next(it), (kout,), jnp.float32)
        return w, b

    F = cfg["n_fft"] // 2 + 1
    D = cfg["transformer_dim"]
    inner = cfg["heads"] * cfg["dim_head"]
    Dff = D * cfg["ff_mult"]

    p = {
        "bn_gamma": 1.0 + 0.1 * jax.random.normal(next(it), (F,), jnp.float32),
        "bn_beta": 0.1 * jax.random.normal(next(it), (F,), jnp.float32),
        "bn_mean": 0.1 * jax.random.normal(next(it), (F,), jnp.float32),
        "bn_var": 0.5 + jax.nn.sigmoid(jax.random.normal(next(it), (F,), jnp.float32)),
    }
    p["mlp_w1"], p["mlp_b1"] = lin(2 * F, cfg["mlp_layers"][0])
    p["mlp_w2"], p["mlp_b2"] = lin(cfg["mlp_layers"][0], cfg["mlp_layers"][1])

    paths, projs = [], []
    for _ in range(cfg["num_paths"]):
        layers = []
        for _ in range(cfg["transformer_layers"]):
            lyr = {"ln1_g": jnp.ones((D,), jnp.float32), "ln1_b": jnp.zeros((D,), jnp.float32),
                   "ln2_g": jnp.ones((D,), jnp.float32), "ln2_b": jnp.zeros((D,), jnp.float32)}
            lyr["wq"], lyr["bq"] = lin(D, inner)
            lyr["wk"], lyr["bk"] = lin(D, inner)
            lyr["wv"], lyr["bv"] = lin(D, inner)
            lyr["wo"], lyr["bo"] = lin(inner, D)
            lyr["ff_w1"], lyr["ff_b1"] = lin(D, Dff)
            lyr["ff_w2"], lyr["ff_b2"] = lin(Dff, D)
            layers.append(lyr)
        paths.append({"layers": layers,
                      "lnf_g": jnp.ones((D,), jnp.float32),
                      "lnf_b": jnp.zeros((D,), jnp.float32)})
        proj = {}
        proj["w1"], proj["b1"] = lin(D, D)
        proj["w2"], proj["b2"] = lin(D, D)
        proj["w3"], proj["b3"] = lin(D, D)
        projs.append(proj)
    p["paths"] = paths
    p["projs"] = projs
    return p


def prepare_params(params, cfg):
    """Hoisted, one-time conversion of module parameters into kernel operands:
    fused QKV weights, path/layer-stacked bf16 matmul weights, BN scale/shift,
    DFT matrices, sinusoidal PE."""
    F = cfg["n_fft"] // 2 + 1
    D = cfg["transformer_dim"]
    n_fft = cfg["n_fft"]
    assert cfg["mlp_layers"][1] == cfg["dim"] == cfg["transformer_dim"], \
        "mlp_output.view(B,-1,dim) requires mlp_layers[1] == dim == transformer_dim"

    n = jnp.arange(n_fft, dtype=jnp.float32)[:, None]
    k = jnp.arange(F, dtype=jnp.float32)[None, :]
    ang = 2.0 * math.pi * n * k / n_fft
    prep = {"dft_cos": jnp.cos(ang), "dft_sin": -jnp.sin(ang)}   # rectangular window (win_length == n_fft)

    bn_scale = params["bn_gamma"] * lax.rsqrt(params["bn_var"] + 1e-5)
    prep["bn_scale"] = bn_scale.reshape(1, F)
    prep["bn_shift"] = (params["bn_beta"] - params["bn_mean"] * bn_scale).reshape(1, F)

    w1 = params["mlp_w1"].astype(jnp.bfloat16)                   # (2F, m0)
    prep["mlp_w1_mag"] = w1[:F]
    prep["mlp_w1_ph"] = w1[F:]
    prep["mlp_b1"] = params["mlp_b1"].reshape(1, -1)
    prep["mlp_w2"] = params["mlp_w2"].astype(jnp.bfloat16)
    prep["mlp_b2"] = params["mlp_b2"].reshape(1, -1)
    prep["pe"] = sinusoidal_pe(cfg["seq_len"], D)[None]          # (1, seq_len, D)

    # ---- stack per-layer weights across (path, layer) into a single leading axis ----
    all_layers = [lyr for pp in params["paths"] for lyr in pp["layers"]]   # length P*L

    def stk(fn, dtype=None):
        a = jnp.stack([fn(l) for l in all_layers])
        return a.astype(dtype) if dtype is not None else a

    prep["ln1_g"] = stk(lambda l: l["ln1_g"].reshape(1, D))
    prep["ln1_b"] = stk(lambda l: l["ln1_b"].reshape(1, D))
    prep["wqkv"] = stk(lambda l: jnp.concatenate([l["wq"], l["wk"], l["wv"]], axis=1), jnp.bfloat16)
    prep["bqkv"] = stk(lambda l: jnp.concatenate([l["bq"], l["bk"], l["bv"]]).reshape(1, -1))
    prep["wo"] = stk(lambda l: l["wo"], jnp.bfloat16)
    prep["bo"] = stk(lambda l: l["bo"].reshape(1, D))
    prep["ln2_g"] = stk(lambda l: l["ln2_g"].reshape(1, D))
    prep["ln2_b"] = stk(lambda l: l["ln2_b"].reshape(1, D))
    prep["ff_w1"] = stk(lambda l: l["ff_w1"], jnp.bfloat16)
    prep["ff_b1"] = stk(lambda l: l["ff_b1"].reshape(1, -1))
    prep["ff_w2"] = stk(lambda l: l["ff_w2"], jnp.bfloat16)
    prep["ff_b2"] = stk(lambda l: l["ff_b2"].reshape(1, D))

    prep["lnf_g"] = jnp.stack([pp["lnf_g"].reshape(1, D) for pp in params["paths"]])
    prep["lnf_b"] = jnp.stack([pp["lnf_b"].reshape(1, D) for pp in params["paths"]])
    for name in ("w1", "w2", "w3"):
        prep["pj_" + name] = jnp.stack([pj[name] for pj in params["projs"]]).astype(jnp.bfloat16)
    for name in ("b1", "b2", "b3"):
        prep["pj_" + name] = jnp.stack([pj[name].reshape(1, D) for pj in params["projs"]])
    return prep


# ----------------------------------------------------------------------------
# Forward (single pallas_call)
# ----------------------------------------------------------------------------

def audio_encoder_v2_forward(prep, x, cfg, task_emb=None):
    B, Lsig = x.shape
    n_fft, hop = cfg["n_fft"], cfg["hop_length"]
    D = cfg["transformer_dim"]
    P = cfg["num_paths"]
    Ltr = cfg["transformer_layers"]

    # ---- STFT framing (center=True reflect pad; rectangular window) ----
    pad = n_fft // 2
    xp = jnp.pad(x, ((0, 0), (pad, pad)), mode="reflect")
    n_frames = 1 + Lsig // hop
    T = n_frames - 1     # X_compressed[:, :, :-1] drops the last STFT frame; drop it up-front
    frames = jnp.stack([xp[:, f * hop:f * hop + n_fft] for f in range(T)], axis=1)  # (B, T, n_fft)
    frames2d = frames.reshape(B * T, n_fft)

    # sinusoidal PE (+ optional task embedding), pre-broadcast to the kernel's flat layout
    pe = prep["pe"][:, :T]                                        # (1, T, D)
    if task_emb is not None:
        pe = pe + task_emb
    pe_bt = jnp.broadcast_to(pe, (B, T, D)).reshape(B * T, D)

    emb_all, proj_all = pl.pallas_call(
        partial(_encoder_kernel, B=B, T=T, P=P, L=Ltr,
                heads=cfg["heads"], dim_head=cfg["dim_head"]),
        out_shape=(jax.ShapeDtypeStruct((P, B * T, D), jnp.float32),
                   jax.ShapeDtypeStruct((P, B * T, D), jnp.float32)),
    )(frames2d, prep["dft_cos"], prep["dft_sin"], prep["bn_scale"], prep["bn_shift"],
      prep["mlp_w1_mag"], prep["mlp_w1_ph"], prep["mlp_b1"], prep["mlp_w2"], prep["mlp_b2"],
      pe_bt,
      prep["ln1_g"], prep["ln1_b"], prep["wqkv"], prep["bqkv"], prep["wo"], prep["bo"],
      prep["ln2_g"], prep["ln2_b"], prep["ff_w1"], prep["ff_b1"], prep["ff_w2"], prep["ff_b2"],
      prep["lnf_g"], prep["lnf_b"],
      prep["pj_w1"], prep["pj_b1"], prep["pj_w2"], prep["pj_b2"], prep["pj_w3"], prep["pj_b3"])

    embeddings = [emb_all[p].reshape(B, T, D) for p in range(P)]
    embeddings_proj = [proj_all[p].reshape(B, T, D) for p in range(P)]
    return embeddings, embeddings_proj


# ----------------------------------------------------------------------------
# Main
# ----------------------------------------------------------------------------

if __name__ == "__main__":
    cfg = dict(
        dim=32, seq_len=8,
        n_fft=16, hop_length=8, win_length=16,     # F = 9 -> input_dim = 9, input_dim*2 = 18
        mlp_layers=(48, 32),
        transformer_layers=2, transformer_dim=32, heads=4, dim_head=8, ff_mult=4,
        num_paths=1,
    )
    key = jax.random.PRNGKey(0)
    pkey, xkey = jax.random.split(key)
    params = init_params(pkey, cfg)
    prep = prepare_params(params, cfg)

    x = jax.random.normal(xkey, (2, 64), jnp.float32)   # (B, L); 1 + 64//8 = 9 frames -> T = 8

    fwd = jax.jit(lambda p, xx: audio_encoder_v2_forward(p, xx, cfg))
    embeddings, embeddings_proj = fwd(prep, x)
    jax.block_until_ready((embeddings, embeddings_proj))

    assert embeddings[0].shape == (2, cfg["seq_len"], cfg["dim"])
    assert embeddings_proj[0].shape == (2, cfg["seq_len"], cfg["dim"])
    assert bool(jnp.all(jnp.isfinite(embeddings[0]))) and bool(jnp.all(jnp.isfinite(embeddings_proj[0])))
    print("KERNEL_OK")
</pallas_src>

<mosaic_0001>
module attributes {stable_mosaic.version = 11 : i64} {
  func.func @_encoder_kernel(%arg0: memref<16x16xf32, #tpu.memory_space<vmem>>, %arg1: memref<16x9xf32, #tpu.memory_space<vmem>>, %arg2: memref<16x9xf32, #tpu.memory_space<vmem>>, %arg3: memref<1x9xf32, #tpu.memory_space<vmem>>, %arg4: memref<1x9xf32, #tpu.memory_space<vmem>>, %arg5: memref<9x48xbf16, #tpu.memory_space<vmem>>, %arg6: memref<9x48xbf16, #tpu.memory_space<vmem>>, %arg7: memref<1x48xf32, #tpu.memory_space<vmem>>, %arg8: memref<48x32xbf16, #tpu.memory_space<vmem>>, %arg9: memref<1x32xf32, #tpu.memory_space<vmem>>, %arg10: memref<16x32xf32, #tpu.memory_space<vmem>>, %arg11: memref<2x1x32xf32, #tpu.memory_space<vmem>>, %arg12: memref<2x1x32xf32, #tpu.memory_space<vmem>>, %arg13: memref<2x32x96xbf16, #tpu.memory_space<vmem>>, %arg14: memref<2x1x96xf32, #tpu.memory_space<vmem>>, %arg15: memref<2x32x32xbf16, #tpu.memory_space<vmem>>, %arg16: memref<2x1x32xf32, #tpu.memory_space<vmem>>, %arg17: memref<2x1x32xf32, #tpu.memory_space<vmem>>, %arg18: memref<2x1x32xf32, #tpu.memory_space<vmem>>, %arg19: memref<2x32x128xbf16, #tpu.memory_space<vmem>>, %arg20: memref<2x1x128xf32, #tpu.memory_space<vmem>>, %arg21: memref<2x128x32xbf16, #tpu.memory_space<vmem>>, %arg22: memref<2x1x32xf32, #tpu.memory_space<vmem>>, %arg23: memref<1x1x32xf32, #tpu.memory_space<vmem>>, %arg24: memref<1x1x32xf32, #tpu.memory_space<vmem>>, %arg25: memref<1x32x32xbf16, #tpu.memory_space<vmem>>, %arg26: memref<1x1x32xf32, #tpu.memory_space<vmem>>, %arg27: memref<1x32x32xbf16, #tpu.memory_space<vmem>>, %arg28: memref<1x1x32xf32, #tpu.memory_space<vmem>>, %arg29: memref<1x32x32xbf16, #tpu.memory_space<vmem>>, %arg30: memref<1x1x32xf32, #tpu.memory_space<vmem>>, %arg31: memref<1x16x32xf32, #tpu.memory_space<vmem>>, %arg32: memref<1x16x32xf32, #tpu.memory_space<vmem>>) attributes {dimension_semantics = [], scalar_prefetch = 0 : i64, scratch_operands = 0 : i64, tpu.core_type = #tpu.core_type<tc>} {
    %c0 = arith.constant 0 : index
    %c0_0 = arith.constant 0 : index
    %0 = vector.load %arg0[%c0, %c0_0] : memref<16x16xf32, #tpu.memory_space<vmem>>, vector<16x16xf32>
    %c0_1 = arith.constant 0 : index
    %c0_2 = arith.constant 0 : index
    %1 = vector.load %arg1[%c0_1, %c0_2] : memref<16x9xf32, #tpu.memory_space<vmem>>, vector<16x9xf32>
    %cst = arith.constant dense<0.000000e+00> : vector<16x9xf32>
    %2 = tpu.matmul %0, %1, %cst {dimension_numbers = #tpu.dot_dimension_numbers<[1], [0], [0], [1], [0, 0, 1, 1], [], []>} : vector<16x16xf32>, vector<16x9xf32>, vector<16x9xf32> -> vector<16x9xf32>
    %c0_3 = arith.constant 0 : index
    %c0_4 = arith.constant 0 : index
    %3 = vector.load %arg2[%c0_3, %c0_4] : memref<16x9xf32, #tpu.memory_space<vmem>>, vector<16x9xf32>
    %cst_5 = arith.constant dense<0.000000e+00> : vector<16x9xf32>
    %4 = tpu.matmul %0, %3, %cst_5 {dimension_numbers = #tpu.dot_dimension_numbers<[1], [0], [0], [1], [0, 0, 1, 1], [], []>} : vector<16x16xf32>, vector<16x9xf32>, vector<16x9xf32> -> vector<16x9xf32>
    %5 = arith.mulf %2, %2 : vector<16x9xf32>
    %6 = arith.mulf %4, %4 : vector<16x9xf32>
    %7 = arith.addf %5, %6 : vector<16x9xf32>
    %cst_6 = arith.constant 9.99999935E-39 : f32
    %8 = vector.broadcast %cst_6 : f32 to vector<16x9xf32>
    %9 = arith.maximumf %7, %8 : vector<16x9xf32>
    %10 = math.log %9 : vector<16x9xf32>
    %cst_7 = arith.constant 1.500000e-01 : f32
    %11 = vector.broadcast %cst_7 : f32 to vector<16x9xf32>
    %12 = arith.mulf %11, %10 : vector<16x9xf32>
    %13 = math.exp %12 : vector<16x9xf32>
    %cst_8 = arith.constant 0.000000e+00 : f32
    %14 = vector.broadcast %cst_8 : f32 to vector<16x9xf32>
    %15 = arith.cmpf ogt, %7, %14 : vector<16x9xf32>
    %cst_9 = arith.constant 0.000000e+00 : f32
    %16 = vector.broadcast %cst_9 : f32 to vector<16x9xf32>
    %17 = arith.select %15, %13, %16 : vector<16x9xi1>, vector<16x9xf32>
    %c0_10 = arith.constant 0 : index
    %c0_11 = arith.constant 0 : index
    %18 = vector.load %arg3[%c0_10, %c0_11] : memref<1x9xf32, #tpu.memory_space<vmem>>, vector<1x9xf32>
    %19 = vector.broadcast %18 : vector<1x9xf32> to vector<16x9xf32>
    %20 = arith.mulf %17, %19 : vector<16x9xf32>
    %c0_12 = arith.constant 0 : index
    %c0_13 = arith.constant 0 : index
    %21 = vector.load %arg4[%c0_12, %c0_13] : memref<1x9xf32, #tpu.memory_space<vmem>>, vector<1x9xf32>
    %22 = vector.broadcast %21 : vector<1x9xf32> to vector<16x9xf32>
    %23 = arith.addf %20, %22 : vector<16x9xf32>
    %24 = math.absf %2 : vector<16x9xf32>
    %25 = math.absf %4 : vector<16x9xf32>
    %26 = arith.minimumf %24, %25 : vector<16x9xf32>
    %27 = arith.maximumf %24, %25 : vector<16x9xf32>
    %cst_14 = arith.constant 1.000000e-30 : f32
    %28 = vector.broadcast %cst_14 : f32 to vector<16x9xf32>
    %29 = arith.maximumf %27, %28 : vector<16x9xf32>
    %30 = arith.divf %26, %29 : vector<16x9xf32>
    %31 = arith.mulf %30, %30 : vector<16x9xf32>
    %cst_15 = arith.constant 0.00282363896 : f32
    %32 = vector.broadcast %cst_15 : f32 to vector<16x9xf32>
    %33 = arith.mulf %32, %31 : vector<16x9xf32>
    %cst_16 = arith.constant -0.0159569029 : f32
    %34 = vector.broadcast %cst_16 : f32 to vector<16x9xf32>
    %35 = arith.addf %33, %34 : vector<16x9xf32>
    %36 = arith.mulf %35, %31 : vector<16x9xf32>
    %cst_17 = arith.constant 0.0425049886 : f32
    %37 = vector.broadcast %cst_17 : f32 to vector<16x9xf32>
    %38 = arith.addf %36, %37 : vector<16x9xf32>
    %39 = arith.mulf %38, %31 : vector<16x9xf32>
    %cst_18 = arith.constant -0.074890092 : f32
    %40 = vector.broadcast %cst_18 : f32 to vector<16x9xf32>
    %41 = arith.addf %39, %40 : vector<16x9xf32>
    %42 = arith.mulf %41, %31 : vector<16x9xf32>
    %cst_19 = arith.constant 0.106347933 : f32
    %43 = vector.broadcast %cst_19 : f32 to vector<16x9xf32>
    %44 = arith.addf %42, %43 : vector<16x9xf32>
    %45 = arith.mulf %44, %31 : vector<16x9xf32>
    %cst_20 = arith.constant -0.142027363 : f32
    %46 = vector.broadcast %cst_20 : f32 to vector<16x9xf32>
    %47 = arith.addf %45, %46 : vector<16x9xf32>
    %48 = arith.mulf %47, %31 : vector<16x9xf32>
    %cst_21 = arith.constant 0.199926957 : f32
    %49 = vector.broadcast %cst_21 : f32 to vector<16x9xf32>
    %50 = arith.addf %48, %49 : vector<16x9xf32>
    %51 = arith.mulf %50, %31 : vector<16x9xf32>
    %cst_22 = arith.constant -0.333331019 : f32
    %52 = vector.broadcast %cst_22 : f32 to vector<16x9xf32>
    %53 = arith.addf %51, %52 : vector<16x9xf32>
    %54 = arith.mulf %30, %31 : vector<16x9xf32>
    %55 = arith.mulf %54, %53 : vector<16x9xf32>
    %56 = arith.addf %30, %55 : vector<16x9xf32>
    %57 = arith.cmpf ogt, %25, %24 : vector<16x9xf32>
    %cst_23 = arith.constant 1.57079637 : f32
    %58 = vector.broadcast %cst_23 : f32 to vector<16x9xf32>
    %59 = arith.subf %58, %56 : vector<16x9xf32>
    %60 = arith.select %57, %59, %56 : vector<16x9xi1>, vector<16x9xf32>
    %cst_24 = arith.constant 0.000000e+00 : f32
    %61 = vector.broadcast %cst_24 : f32 to vector<16x9xf32>
    %62 = arith.cmpf olt, %2, %61 : vector<16x9xf32>
    %cst_25 = arith.constant 3.14159274 : f32
    %63 = vector.broadcast %cst_25 : f32 to vector<16x9xf32>
    %64 = arith.subf %63, %60 : vector<16x9xf32>
    %65 = arith.select %62, %64, %60 : vector<16x9xi1>, vector<16x9xf32>
    %cst_26 = arith.constant 0.000000e+00 : f32
    %66 = vector.broadcast %cst_26 : f32 to vector<16x9xf32>
    %67 = arith.cmpf olt, %4, %66 : vector<16x9xf32>
    %cst_27 = arith.constant 0.000000e+00 : f32
    %68 = vector.broadcast %cst_27 : f32 to vector<16x9xf32>
    %69 = arith.subf %68, %65 : vector<16x9xf32>
    %70 = arith.select %67, %69, %65 : vector<16x9xi1>, vector<16x9xf32>
    %71 = arith.truncf %23 : vector<16x9xf32> to vector<16x9xbf16>
    %c0_28 = arith.constant 0 : index
    %c0_29 = arith.constant 0 : index
    %72 = vector.load %arg5[%c0_28, %c0_29] : memref<9x48xbf16, #tpu.memory_space<vmem>>, vector<9x48xbf16>
    %cst_30 = arith.constant dense<0.000000e+00> : vector<16x48xf32>
    %73 = tpu.matmul %71, %72, %cst_30 {dimension_numbers = #tpu.dot_dimension_numbers<[1], [0], [0], [1], [0, 0, 1, 1], [], []>} : vector<16x9xbf16>, vector<9x48xbf16>, vector<16x48xf32> -> vector<16x48xf32>
    %74 = arith.truncf %70 : vector<16x9xf32> to vector<16x9xbf16>
    %c0_31 = arith.constant 0 : index
    %c0_32 = arith.constant 0 : index
    %75 = vector.load %arg6[%c0_31, %c0_32] : memref<9x48xbf16, #tpu.memory_space<vmem>>, vector<9x48xbf16>
    %cst_33 = arith.constant dense<0.000000e+00> : vector<16x48xf32>
    %76 = tpu.matmul %74, %75, %cst_33 {dimension_numbers = #tpu.dot_dimension_numbers<[1], [0], [0], [1], [0, 0, 1, 1], [], []>} : vector<16x9xbf16>, vector<9x48xbf16>, vector<16x48xf32> -> vector<16x48xf32>
    %77 = arith.addf %73, %76 : vector<16x48xf32>
    %c0_34 = arith.constant 0 : index
    %c0_35 = arith.constant 0 : index
    %78 = vector.load %arg7[%c0_34, %c0_35] : memref<1x48xf32, #tpu.memory_space<vmem>>, vector<1x48xf32>
    %79 = vector.broadcast %78 : vector<1x48xf32> to vector<16x48xf32>
    %80 = arith.addf %77, %79 : vector<16x48xf32>
    %cst_36 = arith.constant 0.000000e+00 : f32
    %81 = vector.broadcast %cst_36 : f32 to vector<16x48xf32>
    %82 = arith.maximumf %80, %81 : vector<16x48xf32>
    %83 = arith.truncf %82 : vector<16x48xf32> to vector<16x48xbf16>
    %c0_37 = arith.constant 0 : index
    %c0_38 = arith.constant 0 : index
    %84 = vector.load %arg8[%c0_37, %c0_38] : memref<48x32xbf16, #tpu.memory_space<vmem>>, vector<48x32xbf16>
    %cst_39 = arith.constant dense<0.000000e+00> : vector<16x32xf32>
    %85 = tpu.matmul %83, %84, %cst_39 {dimension_numbers = #tpu.dot_dimension_numbers<[1], [0], [0], [1], [0, 0, 1, 1], [], []>} : vector<16x48xbf16>, vector<48x32xbf16>, vector<16x32xf32> -> vector<16x32xf32>
    %c0_40 = arith.constant 0 : index
    %c0_41 = arith.constant 0 : index
    %86 = vector.load %arg9[%c0_40, %c0_41] : memref<1x32xf32, #tpu.memory_space<vmem>>, vector<1x32xf32>
    %87 = vector.broadcast %86 : vector<1x32xf32> to vector<16x32xf32>
    %88 = arith.addf %85, %87 : vector<16x32xf32>
    %c0_42 = arith.constant 0 : index
    %c0_43 = arith.constant 0 : index
    %89 = vector.load %arg10[%c0_42, %c0_43] : memref<16x32xf32, #tpu.memory_space<vmem>>, vector<16x32xf32>
    %90 = arith.addf %88, %89 : vector<16x32xf32>
    %c0_44 = arith.constant 0 : index
    %c0_45 = arith.constant 0 : index
    %c0_46 = arith.constant 0 : index
    %91 = vector.load %arg11[%c0_44, %c0_45, %c0_46] : memref<2x1x32xf32, #tpu.memory_space<vmem>>, vector<1x1x32xf32>
    %92 = vector.shape_cast %91 : vector<1x1x32xf32> to vector<1x32xf32>
    %c0_47 = arith.constant 0 : index
    %c0_48 = arith.constant 0 : index
    %c0_49 = arith.constant 0 : index
    %93 = vector.load %arg12[%c0_47, %c0_48, %c0_49] : memref<2x1x32xf32, #tpu.memory_space<vmem>>, vector<1x1x32xf32>
    %94 = vector.shape_cast %93 : vector<1x1x32xf32> to vector<1x32xf32>
    %cst_50 = arith.constant dense<0.000000e+00> : vector<16xf32>
    %95 = vector.multi_reduction <add>, %90, %cst_50 [1] : vector<16x32xf32> to vector<16xf32>
    %96 = vector.shape_cast %95 : vector<16xf32> to vector<16x1xf32>
    %cst_51 = arith.constant 3.200000e+01 : f32
    %97 = vector.broadcast %cst_51 : f32 to vector<16x1xf32>
    %98 = arith.divf %96, %97 : vector<16x1xf32>
    %99 = vector.broadcast %98 : vector<16x1xf32> to vector<16x32xf32>
    %100 = arith.subf %90, %99 : vector<16x32xf32>
    %101 = arith.mulf %100, %100 : vector<16x32xf32>
    %cst_52 = arith.constant dense<0.000000e+00> : vector<16xf32>
    %102 = vector.multi_reduction <add>, %101, %cst_52 [1] : vector<16x32xf32> to vector<16xf32>
    %103 = vector.shape_cast %102 : vector<16xf32> to vector<16x1xf32>
    %cst_53 = arith.constant 3.200000e+01 : f32
    %104 = vector.broadcast %cst_53 : f32 to vector<16x1xf32>
    %105 = arith.divf %103, %104 : vector<16x1xf32>
    %cst_54 = arith.constant 9.99999974E-6 : f32
    %106 = vector.broadcast %cst_54 : f32 to vector<16x1xf32>
    %107 = arith.addf %105, %106 : vector<16x1xf32>
    %108 = math.rsqrt %107 : vector<16x1xf32>
    %109 = vector.broadcast %108 : vector<16x1xf32> to vector<16x32xf32>
    %110 = arith.mulf %100, %109 : vector<16x32xf32>
    %111 = vector.broadcast %92 : vector<1x32xf32> to vector<16x32xf32>
    %112 = arith.mulf %110, %111 : vector<16x32xf32>
    %113 = vector.broadcast %94 : vector<1x32xf32> to vector<16x32xf32>
    %114 = arith.addf %112, %113 : vector<16x32xf32>
    %115 = arith.truncf %114 : vector<16x32xf32> to vector<16x32xbf16>
    %c0_55 = arith.constant 0 : index
    %c0_56 = arith.constant 0 : index
    %c0_57 = arith.constant 0 : index
    %116 = vector.load %arg13[%c0_55, %c0_56, %c0_57] : memref<2x32x96xbf16, #tpu.memory_space<vmem>>, vector<1x32x96xbf16>
    %117 = vector.shape_cast %116 : vector<1x32x96xbf16> to vector<32x96xbf16>
    %cst_58 = arith.constant dense<0.000000e+00> : vector<16x96xf32>
    %118 = tpu.matmul %115, %117, %cst_58 {dimension_numbers = #tpu.dot_dimension_numbers<[1], [0], [0], [1], [0, 0, 1, 1], [], []>} : vector<16x32xbf16>, vector<32x96xbf16>, vector<16x96xf32> -> vector<16x96xf32>
    %c0_59 = arith.constant 0 : index
    %c0_60 = arith.constant 0 : index
    %c0_61 = arith.constant 0 : index
    %119 = vector.load %arg14[%c0_59, %c0_60, %c0_61] : memref<2x1x96xf32, #tpu.memory_space<vmem>>, vector<1x1x96xf32>
    %120 = vector.shape_cast %119 : vector<1x1x96xf32> to vector<1x96xf32>
    %121 = vector.broadcast %120 : vector<1x96xf32> to vector<16x96xf32>
    %122 = arith.addf %118, %121 : vector<16x96xf32>
    %c0_62 = arith.constant 0 : index
    %c0_63 = arith.constant 0 : index
    %c0_64 = arith.constant 0 : index
    %123 = vector.load %arg15[%c0_62, %c0_63, %c0_64] : memref<2x32x32xbf16, #tpu.memory_space<vmem>>, vector<1x32x32xbf16>
    %124 = vector.shape_cast %123 : vector<1x32x32xbf16> to vector<32x32xbf16>
    %cst_65 = arith.constant 0.000000e+00 : f32
    %125 = vector.broadcast %cst_65 : f32 to vector<16x32xf32>
    %126 = vector.extract_strided_slice %122 {offsets = [0, 0], sizes = [16, 8], strides = [1, 1]} : vector<16x96xf32> to vector<16x8xf32>
    %127 = vector.shape_cast %126 : vector<16x8xf32> to vector<2x8x8xf32>
    %128 = vector.extract_strided_slice %122 {offsets = [0, 32], sizes = [16, 8], strides = [1, 1]} : vector<16x96xf32> to vector<16x8xf32>
    %129 = vector.shape_cast %128 : vector<16x8xf32> to vector<2x8x8xf32>
    %130 = vector.extract_strided_slice %122 {offsets = [0, 64], sizes = [16, 8], strides = [1, 1]} : vector<16x96xf32> to vector<16x8xf32>
    %131 = vector.shape_cast %130 : vector<16x8xf32> to vector<2x8x8xf32>
    %132 = arith.truncf %127 : vector<2x8x8xf32> to vector<2x8x8xbf16>
    %133 = arith.truncf %129 : vector<2x8x8xf32> to vector<2x8x8xbf16>
    "tpu.trace_start"() <{level = 10 : i32, message = "bqd,bkd->bqk"}> : () -> ()
    %cst_66 = arith.constant dense<0.000000e+00> : vector<2x8x8xf32>
    %134 = tpu.matmul %132, %133, %cst_66 {dimension_numbers = #tpu.dot_dimension_numbers<[2], [2], [1], [1], [0, 0, 0, 1, 1, 1], [0], [0]>} : vector<2x8x8xbf16>, vector<2x8x8xbf16>, vector<2x8x8xf32> -> vector<2x8x8xf32>
    "tpu.trace_stop"() : () -> ()
    %cst_67 = arith.constant 0.353553385 : f32
    %135 = vector.broadcast %cst_67 : f32 to vector<2x8x8xf32>
    %136 = arith.mulf %134, %135 : vector<2x8x8xf32>
    %cst_68 = arith.constant dense<0xFF800000> : vector<2x8xf32>
    %137 = vector.multi_reduction <maximumf>, %136, %cst_68 [2] : vector<2x8x8xf32> to vector<2x8xf32>
    %138 = vector.shape_cast %137 : vector<2x8xf32> to vector<2x8x1xf32>
    %139 = vector.broadcast %138 : vector<2x8x1xf32> to vector<2x8x8xf32>
    %140 = arith.subf %136, %139 : vector<2x8x8xf32>
    %141 = math.exp %140 : vector<2x8x8xf32>
    %cst_69 = arith.constant dense<0.000000e+00> : vector<2x8xf32>
    %142 = vector.multi_reduction <add>, %141, %cst_69 [2] : vector<2x8x8xf32> to vector<2x8xf32>
    %143 = vector.shape_cast %142 : vector<2x8xf32> to vector<2x8x1xf32>
    %144 = tpu.reciprocal %143 {approx = true} : vector<2x8x1xf32> -> vector<2x8x1xf32>
    %145 = vector.broadcast %144 : vector<2x8x1xf32> to vector<2x8x8xf32>
    %146 = arith.mulf %141, %145 : vector<2x8x8xf32>
    %147 = arith.truncf %146 : vector<2x8x8xf32> to vector<2x8x8xbf16>
    %148 = arith.truncf %131 : vector<2x8x8xf32> to vector<2x8x8xbf16>
    "tpu.trace_start"() <{level = 10 : i32, message = "bqk,bkd->bqd"}> : () -> ()
    %cst_70 = arith.constant dense<0.000000e+00> : vector<2x8x8xf32>
    %149 = tpu.matmul %147, %148, %cst_70 {dimension_numbers = #tpu.dot_dimension_numbers<[2], [1], [1], [2], [0, 0, 0, 1, 1, 2], [0], [0]>} : vector<2x8x8xbf16>, vector<2x8x8xbf16>, vector<2x8x8xf32> -> vector<2x8x8xf32>
    "tpu.trace_stop"() : () -> ()
    %150 = vector.shape_cast %149 : vector<2x8x8xf32> to vector<16x8xf32>
    %151 = arith.truncf %150 : vector<16x8xf32> to vector<16x8xbf16>
    %152 = vector.extract_strided_slice %124 {offsets = [0, 0], sizes = [8, 32], strides = [1, 1]} : vector<32x32xbf16> to vector<8x32xbf16>
    %cst_71 = arith.constant dense<0.000000e+00> : vector<16x32xf32>
    %153 = tpu.matmul %151, %152, %cst_71 {dimension_numbers = #tpu.dot_dimension_numbers<[1], [0], [0], [1], [0, 0, 1, 1], [], []>} : vector<16x8xbf16>, vector<8x32xbf16>, vector<16x32xf32> -> vector<16x32xf32>
    %154 = arith.addf %125, %153 : vector<16x32xf32>
    %155 = vector.extract_strided_slice %122 {offsets = [0, 8], sizes = [16, 8], strides = [1, 1]} : vector<16x96xf32> to vector<16x8xf32>
    %156 = vector.shape_cast %155 : vector<16x8xf32> to vector<2x8x8xf32>
    %157 = vector.extract_strided_slice %122 {offsets = [0, 40], sizes = [16, 8], strides = [1, 1]} : vector<16x96xf32> to vector<16x8xf32>
    %158 = vector.shape_cast %157 : vector<16x8xf32> to vector<2x8x8xf32>
    %159 = vector.extract_strided_slice %122 {offsets = [0, 72], sizes = [16, 8], strides = [1, 1]} : vector<16x96xf32> to vector<16x8xf32>
    %160 = vector.shape_cast %159 : vector<16x8xf32> to vector<2x8x8xf32>
    %161 = arith.truncf %156 : vector<2x8x8xf32> to vector<2x8x8xbf16>
    %162 = arith.truncf %158 : vector<2x8x8xf32> to vector<2x8x8xbf16>
    "tpu.trace_start"() <{level = 10 : i32, message = "bqd,bkd->bqk"}> : () -> ()
    %cst_72 = arith.constant dense<0.000000e+00> : vector<2x8x8xf32>
    %163 = tpu.matmul %161, %162, %cst_72 {dimension_numbers = #tpu.dot_dimension_numbers<[2], [2], [1], [1], [0, 0, 0, 1, 1, 1], [0], [0]>} : vector<2x8x8xbf16>, vector<2x8x8xbf16>, vector<2x8x8xf32> -> vector<2x8x8xf32>
    "tpu.trace_stop"() : () -> ()
    %cst_73 = arith.constant 0.353553385 : f32
    %164 = vector.broadcast %cst_73 : f32 to vector<2x8x8xf32>
    %165 = arith.mulf %163, %164 : vector<2x8x8xf32>
    %cst_74 = arith.constant dense<0xFF800000> : vector<2x8xf32>
    %166 = vector.multi_reduction <maximumf>, %165, %cst_74 [2] : vector<2x8x8xf32> to vector<2x8xf32>
    %167 = vector.shape_cast %166 : vector<2x8xf32> to vector<2x8x1xf32>
    %168 = vector.broadcast %167 : vector<2x8x1xf32> to vector<2x8x8xf32>
    %169 = arith.subf %165, %168 : vector<2x8x8xf32>
    %170 = math.exp %169 : vector<2x8x8xf32>
    %cst_75 = arith.constant dense<0.000000e+00> : vector<2x8xf32>
    %171 = vector.multi_reduction <add>, %170, %cst_75 [2] : vector<2x8x8xf32> to vector<2x8xf32>
    %172 = vector.shape_cast %171 : vector<2x8xf32> to vector<2x8x1xf32>
    %173 = tpu.reciprocal %172 {approx = true} : vector<2x8x1xf32> -> vector<2x8x1xf32>
    %174 = vector.broadcast %173 : vector<2x8x1xf32> to vector<2x8x8xf32>
    %175 = arith.mulf %170, %174 : vector<2x8x8xf32>
    %176 = arith.truncf %175 : vector<2x8x8xf32> to vector<2x8x8xbf16>
    %177 = arith.truncf %160 : vector<2x8x8xf32> to vector<2x8x8xbf16>
    "tpu.trace_start"() <{level = 10 : i32, message = "bqk,bkd->bqd"}> : () -> ()
    %cst_76 = arith.constant dense<0.000000e+00> : vector<2x8x8xf32>
    %178 = tpu.matmul %176, %177, %cst_76 {dimension_numbers = #tpu.dot_dimension_numbers<[2], [1], [1], [2], [0, 0, 0, 1, 1, 2], [0], [0]>} : vector<2x8x8xbf16>, vector<2x8x8xbf16>, vector<2x8x8xf32> -> vector<2x8x8xf32>
    "tpu.trace_stop"() : () -> ()
    %179 = vector.shape_cast %178 : vector<2x8x8xf32> to vector<16x8xf32>
    %180 = arith.truncf %179 : vector<16x8xf32> to vector<16x8xbf16>
    %181 = vector.extract_strided_slice %124 {offsets = [8, 0], sizes = [8, 32], strides = [1, 1]} : vector<32x32xbf16> to vector<8x32xbf16>
    %cst_77 = arith.constant dense<0.000000e+00> : vector<16x32xf32>
    %182 = tpu.matmul %180, %181, %cst_77 {dimension_numbers = #tpu.dot_dimension_numbers<[1], [0], [0], [1], [0, 0, 1, 1], [], []>} : vector<16x8xbf16>, vector<8x32xbf16>, vector<16x32xf32> -> vector<16x32xf32>
    %183 = arith.addf %154, %182 : vector<16x32xf32>
    %184 = vector.extract_strided_slice %122 {offsets = [0, 16], sizes = [16, 8], strides = [1, 1]} : vector<16x96xf32> to vector<16x8xf32>
    %185 = vector.shape_cast %184 : vector<16x8xf32> to vector<2x8x8xf32>
    %186 = vector.extract_strided_slice %122 {offsets = [0, 48], sizes = [16, 8], strides = [1, 1]} : vector<16x96xf32> to vector<16x8xf32>
    %187 = vector.shape_cast %186 : vector<16x8xf32> to vector<2x8x8xf32>
    %188 = vector.extract_strided_slice %122 {offsets = [0, 80], sizes = [16, 8], strides = [1, 1]} : vector<16x96xf32> to vector<16x8xf32>
    %189 = vector.shape_cast %188 : vector<16x8xf32> to vector<2x8x8xf32>
    %190 = arith.truncf %185 : vector<2x8x8xf32> to vector<2x8x8xbf16>
    %191 = arith.truncf %187 : vector<2x8x8xf32> to vector<2x8x8xbf16>
    "tpu.trace_start"() <{level = 10 : i32, message = "bqd,bkd->bqk"}> : () -> ()
    %cst_78 = arith.constant dense<0.000000e+00> : vector<2x8x8xf32>
    %192 = tpu.matmul %190, %191, %cst_78 {dimension_numbers = #tpu.dot_dimension_numbers<[2], [2], [1], [1], [0, 0, 0, 1, 1, 1], [0], [0]>} : vector<2x8x8xbf16>, vector<2x8x8xbf16>, vector<2x8x8xf32> -> vector<2x8x8xf32>
    "tpu.trace_stop"() : () -> ()
    %cst_79 = arith.constant 0.353553385 : f32
    %193 = vector.broadcast %cst_79 : f32 to vector<2x8x8xf32>
    %194 = arith.mulf %192, %193 : vector<2x8x8xf32>
    %cst_80 = arith.constant dense<0xFF800000> : vector<2x8xf32>
    %195 = vector.multi_reduction <maximumf>, %194, %cst_80 [2] : vector<2x8x8xf32> to vector<2x8xf32>
    %196 = vector.shape_cast %195 : vector<2x8xf32> to vector<2x8x1xf32>
    %197 = vector.broadcast %196 : vector<2x8x1xf32> to vector<2x8x8xf32>
    %198 = arith.subf %194, %197 : vector<2x8x8xf32>
    %199 = math.exp %198 : vector<2x8x8xf32>
    %cst_81 = arith.constant dense<0.000000e+00> : vector<2x8xf32>
    %200 = vector.multi_reduction <add>, %199, %cst_81 [2] : vector<2x8x8xf32> to vector<2x8xf32>
    %201 = vector.shape_cast %200 : vector<2x8xf32> to vector<2x8x1xf32>
    %202 = tpu.reciprocal %201 {approx = true} : vector<2x8x1xf32> -> vector<2x8x1xf32>
    %203 = vector.broadcast %202 : vector<2x8x1xf32> to vector<2x8x8xf32>
    %204 = arith.mulf %199, %203 : vector<2x8x8xf32>
    %205 = arith.truncf %204 : vector<2x8x8xf32> to vector<2x8x8xbf16>
    %206 = arith.truncf %189 : vector<2x8x8xf32> to vector<2x8x8xbf16>
    "tpu.trace_start"() <{level = 10 : i32, message = "bqk,bkd->bqd"}> : () -> ()
    %cst_82 = arith.constant dense<0.000000e+00> : vector<2x8x8xf32>
    %207 = tpu.matmul %205, %206, %cst_82 {dimension_numbers = #tpu.dot_dimension_numbers<[2], [1], [1], [2], [0, 0, 0, 1, 1, 2], [0], [0]>} : vector<2x8x8xbf16>, vector<2x8x8xbf16>, vector<2x8x8xf32> -> vector<2x8x8xf32>
    "tpu.trace_stop"() : () -> ()
    %208 = vector.shape_cast %207 : vector<2x8x8xf32> to vector<16x8xf32>
    %209 = arith.truncf %208 : vector<16x8xf32> to vector<16x8xbf16>
    %210 = vector.extract_strided_slice %124 {offsets = [16, 0], sizes = [8, 32], strides = [1, 1]} : vector<32x32xbf16> to vector<8x32xbf16>
    %cst_83 = arith.constant dense<0.000000e+00> : vector<16x32xf32>
    %211 = tpu.matmul %209, %210, %cst_83 {dimension_numbers = #tpu.dot_dimension_numbers<[1], [0], [0], [1], [0, 0, 1, 1], [], []>} : vector<16x8xbf16>, vector<8x32xbf16>, vector<16x32xf32> -> vector<16x32xf32>
    %212 = arith.addf %183, %211 : vector<16x32xf32>
    %213 = vector.extract_strided_slice %122 {offsets = [0, 24], sizes = [16, 8], strides = [1, 1]} : vector<16x96xf32> to vector<16x8xf32>
    %214 = vector.shape_cast %213 : vector<16x8xf32> to vector<2x8x8xf32>
    %215 = vector.extract_strided_slice %122 {offsets = [0, 56], sizes = [16, 8], strides = [1, 1]} : vector<16x96xf32> to vector<16x8xf32>
    %216 = vector.shape_cast %215 : vector<16x8xf32> to vector<2x8x8xf32>
    %217 = vector.extract_strided_slice %122 {offsets = [0, 88], sizes = [16, 8], strides = [1, 1]} : vector<16x96xf32> to vector<16x8xf32>
    %218 = vector.shape_cast %217 : vector<16x8xf32> to vector<2x8x8xf32>
    %219 = arith.truncf %214 : vector<2x8x8xf32> to vector<2x8x8xbf16>
    %220 = arith.truncf %216 : vector<2x8x8xf32> to vector<2x8x8xbf16>
    "tpu.trace_start"() <{level = 10 : i32, message = "bqd,bkd->bqk"}> : () -> ()
    %cst_84 = arith.constant dense<0.000000e+00> : vector<2x8x8xf32>
    %221 = tpu.matmul %219, %220, %cst_84 {dimension_numbers = #tpu.dot_dimension_numbers<[2], [2], [1], [1], [0, 0, 0, 1, 1, 1], [0], [0]>} : vector<2x8x8xbf16>, vector<2x8x8xbf16>, vector<2x8x8xf32> -> vector<2x8x8xf32>
    "tpu.trace_stop"() : () -> ()
    %cst_85 = arith.constant 0.353553385 : f32
    %222 = vector.broadcast %cst_85 : f32 to vector<2x8x8xf32>
    %223 = arith.mulf %221, %222 : vector<2x8x8xf32>
    %cst_86 = arith.constant dense<0xFF800000> : vector<2x8xf32>
    %224 = vector.multi_reduction <maximumf>, %223, %cst_86 [2] : vector<2x8x8xf32> to vector<2x8xf32>
    %225 = vector.shape_cast %224 : vector<2x8xf32> to vector<2x8x1xf32>
    %226 = vector.broadcast %225 : vector<2x8x1xf32> to vector<2x8x8xf32>
    %227 = arith.subf %223, %226 : vector<2x8x8xf32>
    %228 = math.exp %227 : vector<2x8x8xf32>
    %cst_87 = arith.constant dense<0.000000e+00> : vector<2x8xf32>
    %229 = vector.multi_reduction <add>, %228, %cst_87 [2] : vector<2x8x8xf32> to vector<2x8xf32>
    %230 = vector.shape_cast %229 : vector<2x8xf32> to vector<2x8x1xf32>
    %231 = tpu.reciprocal %230 {approx = true} : vector<2x8x1xf32> -> vector<2x8x1xf32>
    %232 = vector.broadcast %231 : vector<2x8x1xf32> to vector<2x8x8xf32>
    %233 = arith.mulf %228, %232 : vector<2x8x8xf32>
    %234 = arith.truncf %233 : vector<2x8x8xf32> to vector<2x8x8xbf16>
    %235 = arith.truncf %218 : vector<2x8x8xf32> to vector<2x8x8xbf16>
    "tpu.trace_start"() <{level = 10 : i32, message = "bqk,bkd->bqd"}> : () -> ()
    %cst_88 = arith.constant dense<0.000000e+00> : vector<2x8x8xf32>
    %236 = tpu.matmul %234, %235, %cst_88 {dimension_numbers = #tpu.dot_dimension_numbers<[2], [1], [1], [2], [0, 0, 0, 1, 1, 2], [0], [0]>} : vector<2x8x8xbf16>, vector<2x8x8xbf16>, vector<2x8x8xf32> -> vector<2x8x8xf32>
    "tpu.trace_stop"() : () -> ()
    %237 = vector.shape_cast %236 : vector<2x8x8xf32> to vector<16x8xf32>
    %238 = arith.truncf %237 : vector<16x8xf32> to vector<16x8xbf16>
    %239 = vector.extract_strided_slice %124 {offsets = [24, 0], sizes = [8, 32], strides = [1, 1]} : vector<32x32xbf16> to vector<8x32xbf16>
    %cst_89 = arith.constant dense<0.000000e+00> : vector<16x32xf32>
    %240 = tpu.matmul %238, %239, %cst_89 {dimension_numbers = #tpu.dot_dimension_numbers<[1], [0], [0], [1], [0, 0, 1, 1], [], []>} : vector<16x8xbf16>, vector<8x32xbf16>, vector<16x32xf32> -> vector<16x32xf32>
    %241 = arith.addf %212, %240 : vector<16x32xf32>
    %242 = arith.addf %90, %241 : vector<16x32xf32>
    %c0_90 = arith.constant 0 : index
    %c0_91 = arith.constant 0 : index
    %c0_92 = arith.constant 0 : index
    %243 = vector.load %arg16[%c0_90, %c0_91, %c0_92] : memref<2x1x32xf32, #tpu.memory_space<vmem>>, vector<1x1x32xf32>
    %244 = vector.shape_cast %243 : vector<1x1x32xf32> to vector<1x32xf32>
    %245 = vector.broadcast %244 : vector<1x32xf32> to vector<16x32xf32>
    %246 = arith.addf %242, %245 : vector<16x32xf32>
    %c0_93 = arith.constant 0 : index
    %c0_94 = arith.constant 0 : index
    %c0_95 = arith.constant 0 : index
    %247 = vector.load %arg17[%c0_93, %c0_94, %c0_95] : memref<2x1x32xf32, #tpu.memory_space<vmem>>, vector<1x1x32xf32>
    %248 = vector.shape_cast %247 : vector<1x1x32xf32> to vector<1x32xf32>
    %c0_96 = arith.constant 0 : index
    %c0_97 = arith.constant 0 : index
    %c0_98 = arith.constant 0 : index
    %249 = vector.load %arg18[%c0_96, %c0_97, %c0_98] : memref<2x1x32xf32, #tpu.memory_space<vmem>>, vector<1x1x32xf32>
    %250 = vector.shape_cast %249 : vector<1x1x32xf32> to vector<1x32xf32>
    %cst_99 = arith.constant dense<0.000000e+00> : vector<16xf32>
    %251 = vector.multi_reduction <add>, %246, %cst_99 [1] : vector<16x32xf32> to vector<16xf32>
    %252 = vector.shape_cast %251 : vector<16xf32> to vector<16x1xf32>
    %cst_100 = arith.constant 3.200000e+01 : f32
    %253 = vector.broadcast %cst_100 : f32 to vector<16x1xf32>
    %254 = arith.divf %252, %253 : vector<16x1xf32>
    %255 = vector.broadcast %254 : vector<16x1xf32> to vector<16x32xf32>
    %256 = arith.subf %246, %255 : vector<16x32xf32>
    %257 = arith.mulf %256, %256 : vector<16x32xf32>
    %cst_101 = arith.constant dense<0.000000e+00> : vector<16xf32>
    %258 = vector.multi_reduction <add>, %257, %cst_101 [1] : vector<16x32xf32> to vector<16xf32>
    %259 = vector.shape_cast %258 : vector<16xf32> to vector<16x1xf32>
    %cst_102 = arith.constant 3.200000e+01 : f32
    %260 = vector.broadcast %cst_102 : f32 to vector<16x1xf32>
    %261 = arith.divf %259, %260 : vector<16x1xf32>
    %cst_103 = arith.constant 9.99999974E-6 : f32
    %262 = vector.broadcast %cst_103 : f32 to vector<16x1xf32>
    %263 = arith.addf %261, %262 : vector<16x1xf32>
    %264 = math.rsqrt %263 : vector<16x1xf32>
    %265 = vector.broadcast %264 : vector<16x1xf32> to vector<16x32xf32>
    %266 = arith.mulf %256, %265 : vector<16x32xf32>
    %267 = vector.broadcast %248 : vector<1x32xf32> to vector<16x32xf32>
    %268 = arith.mulf %266, %267 : vector<16x32xf32>
    %269 = vector.broadcast %250 : vector<1x32xf32> to vector<16x32xf32>
    %270 = arith.addf %268, %269 : vector<16x32xf32>
    %271 = arith.truncf %270 : vector<16x32xf32> to vector<16x32xbf16>
    %c0_104 = arith.constant 0 : index
    %c0_105 = arith.constant 0 : index
    %c0_106 = arith.constant 0 : index
    %272 = vector.load %arg19[%c0_104, %c0_105, %c0_106] : memref<2x32x128xbf16, #tpu.memory_space<vmem>>, vector<1x32x128xbf16>
    %273 = vector.shape_cast %272 : vector<1x32x128xbf16> to vector<32x128xbf16>
    %cst_107 = arith.constant dense<0.000000e+00> : vector<16x128xf32>
    %274 = tpu.matmul %271, %273, %cst_107 {dimension_numbers = #tpu.dot_dimension_numbers<[1], [0], [0], [1], [0, 0, 1, 1], [], []>} : vector<16x32xbf16>, vector<32x128xbf16>, vector<16x128xf32> -> vector<16x128xf32>
    %c0_108 = arith.constant 0 : index
    %c0_109 = arith.constant 0 : index
    %c0_110 = arith.constant 0 : index
    %275 = vector.load %arg20[%c0_108, %c0_109, %c0_110] : memref<2x1x128xf32, #tpu.memory_space<vmem>>, vector<1x1x128xf32>
    %276 = vector.shape_cast %275 : vector<1x1x128xf32> to vector<1x128xf32>
    %277 = vector.broadcast %276 : vector<1x128xf32> to vector<16x128xf32>
    %278 = arith.addf %274, %277 : vector<16x128xf32>
    %cst_111 = arith.constant 5.000000e-01 : f32
    %279 = vector.broadcast %cst_111 : f32 to vector<16x128xf32>
    %280 = arith.mulf %279, %278 : vector<16x128xf32>
    %cst_112 = arith.constant 4.471500e-02 : f32
    %281 = vector.broadcast %cst_112 : f32 to vector<16x128xf32>
    %282 = arith.mulf %281, %278 : vector<16x128xf32>
    %283 = arith.mulf %282, %278 : vector<16x128xf32>
    %284 = arith.mulf %283, %278 : vector<16x128xf32>
    %285 = arith.addf %278, %284 : vector<16x128xf32>
    %cst_113 = arith.constant 0.797884583 : f32
    %286 = vector.broadcast %cst_113 : f32 to vector<16x128xf32>
    %287 = arith.mulf %286, %285 : vector<16x128xf32>
    %288 = math.tanh %287 : vector<16x128xf32>
    %cst_114 = arith.constant 1.000000e+00 : f32
    %289 = vector.broadcast %cst_114 : f32 to vector<16x128xf32>
    %290 = arith.addf %289, %288 : vector<16x128xf32>
    %291 = arith.mulf %280, %290 : vector<16x128xf32>
    %292 = arith.truncf %291 : vector<16x128xf32> to vector<16x128xbf16>
    %c0_115 = arith.constant 0 : index
    %c0_116 = arith.constant 0 : index
    %c0_117 = arith.constant 0 : index
    %293 = vector.load %arg21[%c0_115, %c0_116, %c0_117] : memref<2x128x32xbf16, #tpu.memory_space<vmem>>, vector<1x128x32xbf16>
    %294 = vector.shape_cast %293 : vector<1x128x32xbf16> to vector<128x32xbf16>
    %cst_118 = arith.constant dense<0.000000e+00> : vector<16x32xf32>
    %295 = tpu.matmul %292, %294, %cst_118 {dimension_numbers = #tpu.dot_dimension_numbers<[1], [0], [0], [1], [0, 0, 1, 1], [], []>} : vector<16x128xbf16>, vector<128x32xbf16>, vector<16x32xf32> -> vector<16x32xf32>
    %c0_119 = arith.constant 0 : index
    %c0_120 = arith.constant 0 : index
    %c0_121 = arith.constant 0 : index
    %296 = vector.load %arg22[%c0_119, %c0_120, %c0_121] : memref<2x1x32xf32, #tpu.memory_space<vmem>>, vector<1x1x32xf32>
    %297 = vector.shape_cast %296 : vector<1x1x32xf32> to vector<1x32xf32>
    %298 = vector.broadcast %297 : vector<1x32xf32> to vector<16x32xf32>
    %299 = arith.addf %295, %298 : vector<16x32xf32>
    %300 = arith.addf %246, %299 : vector<16x32xf32>
    %c1 = arith.constant 1 : index
    %c0_122 = arith.constant 0 : index
    %c0_123 = arith.constant 0 : index
    %301 = vector.load %arg11[%c1, %c0_122, %c0_123] : memref<2x1x32xf32, #tpu.memory_space<vmem>>, vector<1x1x32xf32>
    %302 = vector.shape_cast %301 : vector<1x1x32xf32> to vector<1x32xf32>
    %c1_124 = arith.constant 1 : index
    %c0_125 = arith.constant 0 : index
    %c0_126 = arith.constant 0 : index
    %303 = vector.load %arg12[%c1_124, %c0_125, %c0_126] : memref<2x1x32xf32, #tpu.memory_space<vmem>>, vector<1x1x32xf32>
    %304 = vector.shape_cast %303 : vector<1x1x32xf32> to vector<1x32xf32>
    %cst_127 = arith.constant dense<0.000000e+00> : vector<16xf32>
    %305 = vector.multi_reduction <add>, %300, %cst_127 [1] : vector<16x32xf32> to vector<16xf32>
    %306 = vector.shape_cast %305 : vector<16xf32> to vector<16x1xf32>
    %cst_128 = arith.constant 3.200000e+01 : f32
    %307 = vector.broadcast %cst_128 : f32 to vector<16x1xf32>
    %308 = arith.divf %306, %307 : vector<16x1xf32>
    %309 = vector.broadcast %308 : vector<16x1xf32> to vector<16x32xf32>
    %310 = arith.subf %300, %309 : vector<16x32xf32>
    %311 = arith.mulf %310, %310 : vector<16x32xf32>
    %cst_129 = arith.constant dense<0.000000e+00> : vector<16xf32>
    %312 = vector.multi_reduction <add>, %311, %cst_129 [1] : vector<16x32xf32> to vector<16xf32>
    %313 = vector.shape_cast %312 : vector<16xf32> to vector<16x1xf32>
    %cst_130 = arith.constant 3.200000e+01 : f32
    %314 = vector.broadcast %cst_130 : f32 to vector<16x1xf32>
    %315 = arith.divf %313, %314 : vector<16x1xf32>
    %cst_131 = arith.constant 9.99999974E-6 : f32
    %316 = vector.broadcast %cst_131 : f32 to vector<16x1xf32>
    %317 = arith.addf %315, %316 : vector<16x1xf32>
    %318 = math.rsqrt %317 : vector<16x1xf32>
    %319 = vector.broadcast %318 : vector<16x1xf32> to vector<16x32xf32>
    %320 = arith.mulf %310, %319 : vector<16x32xf32>
    %321 = vector.broadcast %302 : vector<1x32xf32> to vector<16x32xf32>
    %322 = arith.mulf %320, %321 : vector<16x32xf32>
    %323 = vector.broadcast %304 : vector<1x32xf32> to vector<16x32xf32>
    %324 = arith.addf %322, %323 : vector<16x32xf32>
    %325 = arith.truncf %324 : vector<16x32xf32> to vector<16x32xbf16>
    %c1_132 = arith.constant 1 : index
    %c0_133 = arith.constant 0 : index
    %c0_134 = arith.constant 0 : index
    %326 = vector.load %arg13[%c1_132, %c0_133, %c0_134] : memref<2x32x96xbf16, #tpu.memory_space<vmem>>, vector<1x32x96xbf16>
    %327 = vector.shape_cast %326 : vector<1x32x96xbf16> to vector<32x96xbf16>
    %cst_135 = arith.constant dense<0.000000e+00> : vector<16x96xf32>
    %328 = tpu.matmul %325, %327, %cst_135 {dimension_numbers = #tpu.dot_dimension_numbers<[1], [0], [0], [1], [0, 0, 1, 1], [], []>} : vector<16x32xbf16>, vector<32x96xbf16>, vector<16x96xf32> -> vector<16x96xf32>
    %c1_136 = arith.constant 1 : index
    %c0_137 = arith.constant 0 : index
    %c0_138 = arith.constant 0 : index
    %329 = vector.load %arg14[%c1_136, %c0_137, %c0_138] : memref<2x1x96xf32, #tpu.memory_space<vmem>>, vector<1x1x96xf32>
    %330 = vector.shape_cast %329 : vector<1x1x96xf32> to vector<1x96xf32>
    %331 = vector.broadcast %330 : vector<1x96xf32> to vector<16x96xf32>
    %332 = arith.addf %328, %331 : vector<16x96xf32>
    %c1_139 = arith.constant 1 : index
    %c0_140 = arith.constant 0 : index
    %c0_141 = arith.constant 0 : index
    %333 = vector.load %arg15[%c1_139, %c0_140, %c0_141] : memref<2x32x32xbf16, #tpu.memory_space<vmem>>, vector<1x32x32xbf16>
    %334 = vector.shape_cast %333 : vector<1x32x32xbf16> to vector<32x32xbf16>
    %cst_142 = arith.constant 0.000000e+00 : f32
    %335 = vector.broadcast %cst_142 : f32 to vector<16x32xf32>
    %336 = vector.extract_strided_slice %332 {offsets = [0, 0], sizes = [16, 8], strides = [1, 1]} : vector<16x96xf32> to vector<16x8xf32>
    %337 = vector.shape_cast %336 : vector<16x8xf32> to vector<2x8x8xf32>
    %338 = vector.extract_strided_slice %332 {offsets = [0, 32], sizes = [16, 8], strides = [1, 1]} : vector<16x96xf32> to vector<16x8xf32>
    %339 = vector.shape_cast %338 : vector<16x8xf32> to vector<2x8x8xf32>
    %340 = vector.extract_strided_slice %332 {offsets = [0, 64], sizes = [16, 8], strides = [1, 1]} : vector<16x96xf32> to vector<16x8xf32>
    %341 = vector.shape_cast %340 : vector<16x8xf32> to vector<2x8x8xf32>
    %342 = arith.truncf %337 : vector<2x8x8xf32> to vector<2x8x8xbf16>
    %343 = arith.truncf %339 : vector<2x8x8xf32> to vector<2x8x8xbf16>
    "tpu.trace_start"() <{level = 10 : i32, message = "bqd,bkd->bqk"}> : () -> ()
    %cst_143 = arith.constant dense<0.000000e+00> : vector<2x8x8xf32>
    %344 = tpu.matmul %342, %343, %cst_143 {dimension_numbers = #tpu.dot_dimension_numbers<[2], [2], [1], [1], [0, 0, 0, 1, 1, 1], [0], [0]>} : vector<2x8x8xbf16>, vector<2x8x8xbf16>, vector<2x8x8xf32> -> vector<2x8x8xf32>
    "tpu.trace_stop"() : () -> ()
    %cst_144 = arith.constant 0.353553385 : f32
    %345 = vector.broadcast %cst_144 : f32 to vector<2x8x8xf32>
    %346 = arith.mulf %344, %345 : vector<2x8x8xf32>
    %cst_145 = arith.constant dense<0xFF800000> : vector<2x8xf32>
    %347 = vector.multi_reduction <maximumf>, %346, %cst_145 [2] : vector<2x8x8xf32> to vector<2x8xf32>
    %348 = vector.shape_cast %347 : vector<2x8xf32> to vector<2x8x1xf32>
    %349 = vector.broadcast %348 : vector<2x8x1xf32> to vector<2x8x8xf32>
    %350 = arith.subf %346, %349 : vector<2x8x8xf32>
    %351 = math.exp %350 : vector<2x8x8xf32>
    %cst_146 = arith.constant dense<0.000000e+00> : vector<2x8xf32>
    %352 = vector.multi_reduction <add>, %351, %cst_146 [2] : vector<2x8x8xf32> to vector<2x8xf32>
    %353 = vector.shape_cast %352 : vector<2x8xf32> to vector<2x8x1xf32>
    %354 = tpu.reciprocal %353 {approx = true} : vector<2x8x1xf32> -> vector<2x8x1xf32>
    %355 = vector.broadcast %354 : vector<2x8x1xf32> to vector<2x8x8xf32>
    %356 = arith.mulf %351, %355 : vector<2x8x8xf32>
    %357 = arith.truncf %356 : vector<2x8x8xf32> to vector<2x8x8xbf16>
    %358 = arith.truncf %341 : vector<2x8x8xf32> to vector<2x8x8xbf16>
    "tpu.trace_start"() <{level = 10 : i32, message = "bqk,bkd->bqd"}> : () -> ()
    %cst_147 = arith.constant dense<0.000000e+00> : vector<2x8x8xf32>
    %359 = tpu.matmul %357, %358, %cst_147 {dimension_numbers = #tpu.dot_dimension_numbers<[2], [1], [1], [2], [0, 0, 0, 1, 1, 2], [0], [0]>} : vector<2x8x8xbf16>, vector<2x8x8xbf16>, vector<2x8x8xf32> -> vector<2x8x8xf32>
    "tpu.trace_stop"() : () -> ()
    %360 = vector.shape_cast %359 : vector<2x8x8xf32> to vector<16x8xf32>
    %361 = arith.truncf %360 : vector<16x8xf32> to vector<16x8xbf16>
    %362 = vector.extract_strided_slice %334 {offsets = [0, 0], sizes = [8, 32], strides = [1, 1]} : vector<32x32xbf16> to vector<8x32xbf16>
    %cst_148 = arith.constant dense<0.000000e+00> : vector<16x32xf32>
    %363 = tpu.matmul %361, %362, %cst_148 {dimension_numbers = #tpu.dot_dimension_numbers<[1], [0], [0], [1], [0, 0, 1, 1], [], []>} : vector<16x8xbf16>, vector<8x32xbf16>, vector<16x32xf32> -> vector<16x32xf32>
    %364 = arith.addf %335, %363 : vector<16x32xf32>
    %365 = vector.extract_strided_slice %332 {offsets = [0, 8], sizes = [16, 8], strides = [1, 1]} : vector<16x96xf32> to vector<16x8xf32>
    %366 = vector.shape_cast %365 : vector<16x8xf32> to vector<2x8x8xf32>
    %367 = vector.extract_strided_slice %332 {offsets = [0, 40], sizes = [16, 8], strides = [1, 1]} : vector<16x96xf32> to vector<16x8xf32>
    %368 = vector.shape_cast %367 : vector<16x8xf32> to vector<2x8x8xf32>
    %369 = vector.extract_strided_slice %332 {offsets = [0, 72], sizes = [16, 8], strides = [1, 1]} : vector<16x96xf32> to vector<16x8xf32>
    %370 = vector.shape_cast %369 : vector<16x8xf32> to vector<2x8x8xf32>
    %371 = arith.truncf %366 : vector<2x8x8xf32> to vector<2x8x8xbf16>
    %372 = arith.truncf %368 : vector<2x8x8xf32> to vector<2x8x8xbf16>
    "tpu.trace_start"() <{level = 10 : i32, message = "bqd,bkd->bqk"}> : () -> ()
    %cst_149 = arith.constant dense<0.000000e+00> : vector<2x8x8xf32>
    %373 = tpu.matmul %371, %372, %cst_149 {dimension_numbers = #tpu.dot_dimension_numbers<[2], [2], [1], [1], [0, 0, 0, 1, 1, 1], [0], [0]>} : vector<2x8x8xbf16>, vector<2x8x8xbf16>, vector<2x8x8xf32> -> vector<2x8x8xf32>
    "tpu.trace_stop"() : () -> ()
    %cst_150 = arith.constant 0.353553385 : f32
    %374 = vector.broadcast %cst_150 : f32 to vector<2x8x8xf32>
    %375 = arith.mulf %373, %374 : vector<2x8x8xf32>
    %cst_151 = arith.constant dense<0xFF800000> : vector<2x8xf32>
    %376 = vector.multi_reduction <maximumf>, %375, %cst_151 [2] : vector<2x8x8xf32> to vector<2x8xf32>
    %377 = vector.shape_cast %376 : vector<2x8xf32> to vector<2x8x1xf32>
    %378 = vector.broadcast %377 : vector<2x8x1xf32> to vector<2x8x8xf32>
    %379 = arith.subf %375, %378 : vector<2x8x8xf32>
    %380 = math.exp %379 : vector<2x8x8xf32>
    %cst_152 = arith.constant dense<0.000000e+00> : vector<2x8xf32>
    %381 = vector.multi_reduction <add>, %380, %cst_152 [2] : vector<2x8x8xf32> to vector<2x8xf32>
    %382 = vector.shape_cast %381 : vector<2x8xf32> to vector<2x8x1xf32>
    %383 = tpu.reciprocal %382 {approx = true} : vector<2x8x1xf32> -> vector<2x8x1xf32>
    %384 = vector.broadcast %383 : vector<2x8x1xf32> to vector<2x8x8xf32>
    %385 = arith.mulf %380, %384 : vector<2x8x8xf32>
    %386 = arith.truncf %385 : vector<2x8x8xf32> to vector<2x8x8xbf16>
    %387 = arith.truncf %370 : vector<2x8x8xf32> to vector<2x8x8xbf16>
    "tpu.trace_start"() <{level = 10 : i32, message = "bqk,bkd->bqd"}> : () -> ()
    %cst_153 = arith.constant dense<0.000000e+00> : vector<2x8x8xf32>
    %388 = tpu.matmul %386, %387, %cst_153 {dimension_numbers = #tpu.dot_dimension_numbers<[2], [1], [1], [2], [0, 0, 0, 1, 1, 2], [0], [0]>} : vector<2x8x8xbf16>, vector<2x8x8xbf16>, vector<2x8x8xf32> -> vector<2x8x8xf32>
    "tpu.trace_stop"() : () -> ()
    %389 = vector.shape_cast %388 : vector<2x8x8xf32> to vector<16x8xf32>
    %390 = arith.truncf %389 : vector<16x8xf32> to vector<16x8xbf16>
    %391 = vector.extract_strided_slice %334 {offsets = [8, 0], sizes = [8, 32], strides = [1, 1]} : vector<32x32xbf16> to vector<8x32xbf16>
    %cst_154 = arith.constant dense<0.000000e+00> : vector<16x32xf32>
    %392 = tpu.matmul %390, %391, %cst_154 {dimension_numbers = #tpu.dot_dimension_numbers<[1], [0], [0], [1], [0, 0, 1, 1], [], []>} : vector<16x8xbf16>, vector<8x32xbf16>, vector<16x32xf32> -> vector<16x32xf32>
    %393 = arith.addf %364, %392 : vector<16x32xf32>
    %394 = vector.extract_strided_slice %332 {offsets = [0, 16], sizes = [16, 8], strides = [1, 1]} : vector<16x96xf32> to vector<16x8xf32>
    %395 = vector.shape_cast %394 : vector<16x8xf32> to vector<2x8x8xf32>
    %396 = vector.extract_strided_slice %332 {offsets = [0, 48], sizes = [16, 8], strides = [1, 1]} : vector<16x96xf32> to vector<16x8xf32>
    %397 = vector.shape_cast %396 : vector<16x8xf32> to vector<2x8x8xf32>
    %398 = vector.extract_strided_slice %332 {offsets = [0, 80], sizes = [16, 8], strides = [1, 1]} : vector<16x96xf32> to vector<16x8xf32>
    %399 = vector.shape_cast %398 : vector<16x8xf32> to vector<2x8x8xf32>
    %400 = arith.truncf %395 : vector<2x8x8xf32> to vector<2x8x8xbf16>
    %401 = arith.truncf %397 : vector<2x8x8xf32> to vector<2x8x8xbf16>
    "tpu.trace_start"() <{level = 10 : i32, message = "bqd,bkd->bqk"}> : () -> ()
    %cst_155 = arith.constant dense<0.000000e+00> : vector<2x8x8xf32>
    %402 = tpu.matmul %400, %401, %cst_155 {dimension_numbers = #tpu.dot_dimension_numbers<[2], [2], [1], [1], [0, 0, 0, 1, 1, 1], [0], [0]>} : vector<2x8x8xbf16>, vector<2x8x8xbf16>, vector<2x8x8xf32> -> vector<2x8x8xf32>
    "tpu.trace_stop"() : () -> ()
    %cst_156 = arith.constant 0.353553385 : f32
    %403 = vector.broadcast %cst_156 : f32 to vector<2x8x8xf32>
    %404 = arith.mulf %402, %403 : vector<2x8x8xf32>
    %cst_157 = arith.constant dense<0xFF800000> : vector<2x8xf32>
    %405 = vector.multi_reduction <maximumf>, %404, %cst_157 [2] : vector<2x8x8xf32> to vector<2x8xf32>
    %406 = vector.shape_cast %405 : vector<2x8xf32> to vector<2x8x1xf32>
    %407 = vector.broadcast %406 : vector<2x8x1xf32> to vector<2x8x8xf32>
    %408 = arith.subf %404, %407 : vector<2x8x8xf32>
    %409 = math.exp %408 : vector<2x8x8xf32>
    %cst_158 = arith.constant dense<0.000000e+00> : vector<2x8xf32>
    %410 = vector.multi_reduction <add>, %409, %cst_158 [2] : vector<2x8x8xf32> to vector<2x8xf32>
    %411 = vector.shape_cast %410 : vector<2x8xf32> to vector<2x8x1xf32>
    %412 = tpu.reciprocal %411 {approx = true} : vector<2x8x1xf32> -> vector<2x8x1xf32>
    %413 = vector.broadcast %412 : vector<2x8x1xf32> to vector<2x8x8xf32>
    %414 = arith.mulf %409, %413 : vector<2x8x8xf32>
    %415 = arith.truncf %414 : vector<2x8x8xf32> to vector<2x8x8xbf16>
    %416 = arith.truncf %399 : vector<2x8x8xf32> to vector<2x8x8xbf16>
    "tpu.trace_start"() <{level = 10 : i32, message = "bqk,bkd->bqd"}> : () -> ()
    %cst_159 = arith.constant dense<0.000000e+00> : vector<2x8x8xf32>
    %417 = tpu.matmul %415, %416, %cst_159 {dimension_numbers = #tpu.dot_dimension_numbers<[2], [1], [1], [2], [0, 0, 0, 1, 1, 2], [0], [0]>} : vector<2x8x8xbf16>, vector<2x8x8xbf16>, vector<2x8x8xf32> -> vector<2x8x8xf32>
    "tpu.trace_stop"() : () -> ()
    %418 = vector.shape_cast %417 : vector<2x8x8xf32> to vector<16x8xf32>
    %419 = arith.truncf %418 : vector<16x8xf32> to vector<16x8xbf16>
    %420 = vector.extract_strided_slice %334 {offsets = [16, 0], sizes = [8, 32], strides = [1, 1]} : vector<32x32xbf16> to vector<8x32xbf16>
    %cst_160 = arith.constant dense<0.000000e+00> : vector<16x32xf32>
    %421 = tpu.matmul %419, %420, %cst_160 {dimension_numbers = #tpu.dot_dimension_numbers<[1], [0], [0], [1], [0, 0, 1, 1], [], []>} : vector<16x8xbf16>, vector<8x32xbf16>, vector<16x32xf32> -> vector<16x32xf32>
    %422 = arith.addf %393, %421 : vector<16x32xf32>
    %423 = vector.extract_strided_slice %332 {offsets = [0, 24], sizes = [16, 8], strides = [1, 1]} : vector<16x96xf32> to vector<16x8xf32>
    %424 = vector.shape_cast %423 : vector<16x8xf32> to vector<2x8x8xf32>
    %425 = vector.extract_strided_slice %332 {offsets = [0, 56], sizes = [16, 8], strides = [1, 1]} : vector<16x96xf32> to vector<16x8xf32>
    %426 = vector.shape_cast %425 : vector<16x8xf32> to vector<2x8x8xf32>
    %427 = vector.extract_strided_slice %332 {offsets = [0, 88], sizes = [16, 8], strides = [1, 1]} : vector<16x96xf32> to vector<16x8xf32>
    %428 = vector.shape_cast %427 : vector<16x8xf32> to vector<2x8x8xf32>
    %429 = arith.truncf %424 : vector<2x8x8xf32> to vector<2x8x8xbf16>
    %430 = arith.truncf %426 : vector<2x8x8xf32> to vector<2x8x8xbf16>
    "tpu.trace_start"() <{level = 10 : i32, message = "bqd,bkd->bqk"}> : () -> ()
    %cst_161 = arith.constant dense<0.000000e+00> : vector<2x8x8xf32>
    %431 = tpu.matmul %429, %430, %cst_161 {dimension_numbers = #tpu.dot_dimension_numbers<[2], [2], [1], [1], [0, 0, 0, 1, 1, 1], [0], [0]>} : vector<2x8x8xbf16>, vector<2x8x8xbf16>, vector<2x8x8xf32> -> vector<2x8x8xf32>
    "tpu.trace_stop"() : () -> ()
    %cst_162 = arith.constant 0.353553385 : f32
    %432 = vector.broadcast %cst_162 : f32 to vector<2x8x8xf32>
    %433 = arith.mulf %431, %432 : vector<2x8x8xf32>
    %cst_163 = arith.constant dense<0xFF800000> : vector<2x8xf32>
    %434 = vector.multi_reduction <maximumf>, %433, %cst_163 [2] : vector<2x8x8xf32> to vector<2x8xf32>
    %435 = vector.shape_cast %434 : vector<2x8xf32> to vector<2x8x1xf32>
    %436 = vector.broadcast %435 : vector<2x8x1xf32> to vector<2x8x8xf32>
    %437 = arith.subf %433, %436 : vector<2x8x8xf32>
    %438 = math.exp %437 : vector<2x8x8xf32>
    %cst_164 = arith.constant dense<0.000000e+00> : vector<2x8xf32>
    %439 = vector.multi_reduction <add>, %438, %cst_164 [2] : vector<2x8x8xf32> to vector<2x8xf32>
    %440 = vector.shape_cast %439 : vector<2x8xf32> to vector<2x8x1xf32>
    %441 = tpu.reciprocal %440 {approx = true} : vector<2x8x1xf32> -> vector<2x8x1xf32>
    %442 = vector.broadcast %441 : vector<2x8x1xf32> to vector<2x8x8xf32>
    %443 = arith.mulf %438, %442 : vector<2x8x8xf32>
    %444 = arith.truncf %443 : vector<2x8x8xf32> to vector<2x8x8xbf16>
    %445 = arith.truncf %428 : vector<2x8x8xf32> to vector<2x8x8xbf16>
    "tpu.trace_start"() <{level = 10 : i32, message = "bqk,bkd->bqd"}> : () -> ()
    %cst_165 = arith.constant dense<0.000000e+00> : vector<2x8x8xf32>
    %446 = tpu.matmul %444, %445, %cst_165 {dimension_numbers = #tpu.dot_dimension_numbers<[2], [1], [1], [2], [0, 0, 0, 1, 1, 2], [0], [0]>} : vector<2x8x8xbf16>, vector<2x8x8xbf16>, vector<2x8x8xf32> -> vector<2x8x8xf32>
    "tpu.trace_stop"() : () -> ()
    %447 = vector.shape_cast %446 : vector<2x8x8xf32> to vector<16x8xf32>
    %448 = arith.truncf %447 : vector<16x8xf32> to vector<16x8xbf16>
    %449 = vector.extract_strided_slice %334 {offsets = [24, 0], sizes = [8, 32], strides = [1, 1]} : vector<32x32xbf16> to vector<8x32xbf16>
    %cst_166 = arith.constant dense<0.000000e+00> : vector<16x32xf32>
    %450 = tpu.matmul %448, %449, %cst_166 {dimension_numbers = #tpu.dot_dimension_numbers<[1], [0], [0], [1], [0, 0, 1, 1], [], []>} : vector<16x8xbf16>, vector<8x32xbf16>, vector<16x32xf32> -> vector<16x32xf32>
    %451 = arith.addf %422, %450 : vector<16x32xf32>
    %452 = arith.addf %300, %451 : vector<16x32xf32>
    %c1_167 = arith.constant 1 : index
    %c0_168 = arith.constant 0 : index
    %c0_169 = arith.constant 0 : index
    %453 = vector.load %arg16[%c1_167, %c0_168, %c0_169] : memref<2x1x32xf32, #tpu.memory_space<vmem>>, vector<1x1x32xf32>
    %454 = vector.shape_cast %453 : vector<1x1x32xf32> to vector<1x32xf32>
    %455 = vector.broadcast %454 : vector<1x32xf32> to vector<16x32xf32>
    %456 = arith.addf %452, %455 : vector<16x32xf32>
    %c1_170 = arith.constant 1 : index
    %c0_171 = arith.constant 0 : index
    %c0_172 = arith.constant 0 : index
    %457 = vector.load %arg17[%c1_170, %c0_171, %c0_172] : memref<2x1x32xf32, #tpu.memory_space<vmem>>, vector<1x1x32xf32>
    %458 = vector.shape_cast %457 : vector<1x1x32xf32> to vector<1x32xf32>
    %c1_173 = arith.constant 1 : index
    %c0_174 = arith.constant 0 : index
    %c0_175 = arith.constant 0 : index
    %459 = vector.load %arg18[%c1_173, %c0_174, %c0_175] : memref<2x1x32xf32, #tpu.memory_space<vmem>>, vector<1x1x32xf32>
    %460 = vector.shape_cast %459 : vector<1x1x32xf32> to vector<1x32xf32>
    %cst_176 = arith.constant dense<0.000000e+00> : vector<16xf32>
    %461 = vector.multi_reduction <add>, %456, %cst_176 [1] : vector<16x32xf32> to vector<16xf32>
    %462 = vector.shape_cast %461 : vector<16xf32> to vector<16x1xf32>
    %cst_177 = arith.constant 3.200000e+01 : f32
    %463 = vector.broadcast %cst_177 : f32 to vector<16x1xf32>
    %464 = arith.divf %462, %463 : vector<16x1xf32>
    %465 = vector.broadcast %464 : vector<16x1xf32> to vector<16x32xf32>
    %466 = arith.subf %456, %465 : vector<16x32xf32>
    %467 = arith.mulf %466, %466 : vector<16x32xf32>
    %cst_178 = arith.constant dense<0.000000e+00> : vector<16xf32>
    %468 = vector.multi_reduction <add>, %467, %cst_178 [1] : vector<16x32xf32> to vector<16xf32>
    %469 = vector.shape_cast %468 : vector<16xf32> to vector<16x1xf32>
    %cst_179 = arith.constant 3.200000e+01 : f32
    %470 = vector.broadcast %cst_179 : f32 to vector<16x1xf32>
    %471 = arith.divf %469, %470 : vector<16x1xf32>
    %cst_180 = arith.constant 9.99999974E-6 : f32
    %472 = vector.broadcast %cst_180 : f32 to vector<16x1xf32>
    %473 = arith.addf %471, %472 : vector<16x1xf32>
    %474 = math.rsqrt %473 : vector<16x1xf32>
    %475 = vector.broadcast %474 : vector<16x1xf32> to vector<16x32xf32>
    %476 = arith.mulf %466, %475 : vector<16x32xf32>
    %477 = vector.broadcast %458 : vector<1x32xf32> to vector<16x32xf32>
    %478 = arith.mulf %476, %477 : vector<16x32xf32>
    %479 = vector.broadcast %460 : vector<1x32xf32> to vector<16x32xf32>
    %480 = arith.addf %478, %479 : vector<16x32xf32>
    %481 = arith.truncf %480 : vector<16x32xf32> to vector<16x32xbf16>
    %c1_181 = arith.constant 1 : index
    %c0_182 = arith.constant 0 : index
    %c0_183 = arith.constant 0 : index
    %482 = vector.load %arg19[%c1_181, %c0_182, %c0_183] : memref<2x32x128xbf16, #tpu.memory_space<vmem>>, vector<1x32x128xbf16>
    %483 = vector.shape_cast %482 : vector<1x32x128xbf16> to vector<32x128xbf16>
    %cst_184 = arith.constant dense<0.000000e+00> : vector<16x128xf32>
    %484 = tpu.matmul %481, %483, %cst_184 {dimension_numbers = #tpu.dot_dimension_numbers<[1], [0], [0], [1], [0, 0, 1, 1], [], []>} : vector<16x32xbf16>, vector<32x128xbf16>, vector<16x128xf32> -> vector<16x128xf32>
    %c1_185 = arith.constant 1 : index
    %c0_186 = arith.constant 0 : index
    %c0_187 = arith.constant 0 : index
    %485 = vector.load %arg20[%c1_185, %c0_186, %c0_187] : memref<2x1x128xf32, #tpu.memory_space<vmem>>, vector<1x1x128xf32>
    %486 = vector.shape_cast %485 : vector<1x1x128xf32> to vector<1x128xf32>
    %487 = vector.broadcast %486 : vector<1x128xf32> to vector<16x128xf32>
    %488 = arith.addf %484, %487 : vector<16x128xf32>
    %cst_188 = arith.constant 5.000000e-01 : f32
    %489 = vector.broadcast %cst_188 : f32 to vector<16x128xf32>
    %490 = arith.mulf %489, %488 : vector<16x128xf32>
    %cst_189 = arith.constant 4.471500e-02 : f32
    %491 = vector.broadcast %cst_189 : f32 to vector<16x128xf32>
    %492 = arith.mulf %491, %488 : vector<16x128xf32>
    %493 = arith.mulf %492, %488 : vector<16x128xf32>
    %494 = arith.mulf %493, %488 : vector<16x128xf32>
    %495 = arith.addf %488, %494 : vector<16x128xf32>
    %cst_190 = arith.constant 0.797884583 : f32
    %496 = vector.broadcast %cst_190 : f32 to vector<16x128xf32>
    %497 = arith.mulf %496, %495 : vector<16x128xf32>
    %498 = math.tanh %497 : vector<16x128xf32>
    %cst_191 = arith.constant 1.000000e+00 : f32
    %499 = vector.broadcast %cst_191 : f32 to vector<16x128xf32>
    %500 = arith.addf %499, %498 : vector<16x128xf32>
    %501 = arith.mulf %490, %500 : vector<16x128xf32>
    %502 = arith.truncf %501 : vector<16x128xf32> to vector<16x128xbf16>
    %c1_192 = arith.constant 1 : index
    %c0_193 = arith.constant 0 : index
    %c0_194 = arith.constant 0 : index
    %503 = vector.load %arg21[%c1_192, %c0_193, %c0_194] : memref<2x128x32xbf16, #tpu.memory_space<vmem>>, vector<1x128x32xbf16>
    %504 = vector.shape_cast %503 : vector<1x128x32xbf16> to vector<128x32xbf16>
    %cst_195 = arith.constant dense<0.000000e+00> : vector<16x32xf32>
    %505 = tpu.matmul %502, %504, %cst_195 {dimension_numbers = #tpu.dot_dimension_numbers<[1], [0], [0], [1], [0, 0, 1, 1], [], []>} : vector<16x128xbf16>, vector<128x32xbf16>, vector<16x32xf32> -> vector<16x32xf32>
    %c1_196 = arith.constant 1 : index
    %c0_197 = arith.constant 0 : index
    %c0_198 = arith.constant 0 : index
    %506 = vector.load %arg22[%c1_196, %c0_197, %c0_198] : memref<2x1x32xf32, #tpu.memory_space<vmem>>, vector<1x1x32xf32>
    %507 = vector.shape_cast %506 : vector<1x1x32xf32> to vector<1x32xf32>
    %508 = vector.broadcast %507 : vector<1x32xf32> to vector<16x32xf32>
    %509 = arith.addf %505, %508 : vector<16x32xf32>
    %510 = arith.addf %456, %509 : vector<16x32xf32>
    %c0_199 = arith.constant 0 : index
    %c0_200 = arith.constant 0 : index
    %c0_201 = arith.constant 0 : index
    %511 = vector.load %arg23[%c0_199, %c0_200, %c0_201] : memref<1x1x32xf32, #tpu.memory_space<vmem>>, vector<1x1x32xf32>
    %512 = vector.shape_cast %511 : vector<1x1x32xf32> to vector<1x32xf32>
    %c0_202 = arith.constant 0 : index
    %c0_203 = arith.constant 0 : index
    %c0_204 = arith.constant 0 : index
    %513 = vector.load %arg24[%c0_202, %c0_203, %c0_204] : memref<1x1x32xf32, #tpu.memory_space<vmem>>, vector<1x1x32xf32>
    %514 = vector.shape_cast %513 : vector<1x1x32xf32> to vector<1x32xf32>
    %cst_205 = arith.constant dense<0.000000e+00> : vector<16xf32>
    %515 = vector.multi_reduction <add>, %510, %cst_205 [1] : vector<16x32xf32> to vector<16xf32>
    %516 = vector.shape_cast %515 : vector<16xf32> to vector<16x1xf32>
    %cst_206 = arith.constant 3.200000e+01 : f32
    %517 = vector.broadcast %cst_206 : f32 to vector<16x1xf32>
    %518 = arith.divf %516, %517 : vector<16x1xf32>
    %519 = vector.broadcast %518 : vector<16x1xf32> to vector<16x32xf32>
    %520 = arith.subf %510, %519 : vector<16x32xf32>
    %521 = arith.mulf %520, %520 : vector<16x32xf32>
    %cst_207 = arith.constant dense<0.000000e+00> : vector<16xf32>
    %522 = vector.multi_reduction <add>, %521, %cst_207 [1] : vector<16x32xf32> to vector<16xf32>
    %523 = vector.shape_cast %522 : vector<16xf32> to vector<16x1xf32>
    %cst_208 = arith.constant 3.200000e+01 : f32
    %524 = vector.broadcast %cst_208 : f32 to vector<16x1xf32>
    %525 = arith.divf %523, %524 : vector<16x1xf32>
    %cst_209 = arith.constant 9.99999974E-6 : f32
    %526 = vector.broadcast %cst_209 : f32 to vector<16x1xf32>
    %527 = arith.addf %525, %526 : vector<16x1xf32>
    %528 = math.rsqrt %527 : vector<16x1xf32>
    %529 = vector.broadcast %528 : vector<16x1xf32> to vector<16x32xf32>
    %530 = arith.mulf %520, %529 : vector<16x32xf32>
    %531 = vector.broadcast %512 : vector<1x32xf32> to vector<16x32xf32>
    %532 = arith.mulf %530, %531 : vector<16x32xf32>
    %533 = vector.broadcast %514 : vector<1x32xf32> to vector<16x32xf32>
    %534 = arith.addf %532, %533 : vector<16x32xf32>
    %c0_210 = arith.constant 0 : index
    %c0_211 = arith.constant 0 : index
    %c0_212 = arith.constant 0 : index
    %535 = vector.load %arg31[%c0_210, %c0_211, %c0_212] : memref<1x16x32xf32, #tpu.memory_space<vmem>>, vector<1x16x32xf32>
    %536 = vector.shape_cast %535 : vector<1x16x32xf32> to vector<16x32xf32>
    %537 = vector.shape_cast %534 : vector<16x32xf32> to vector<1x16x32xf32>
    tpu.vector_store %arg31[%c0_210, %c0_211, %c0_212], %537 {strides = array<i32>} : memref<1x16x32xf32, #tpu.memory_space<vmem>>, vector<1x16x32xf32>,
    %538 = arith.truncf %534 : vector<16x32xf32> to vector<16x32xbf16>
    %c0_213 = arith.constant 0 : index
    %c0_214 = arith.constant 0 : index
    %c0_215 = arith.constant 0 : index
    %539 = vector.load %arg25[%c0_213, %c0_214, %c0_215] : memref<1x32x32xbf16, #tpu.memory_space<vmem>>, vector<1x32x32xbf16>
    %540 = vector.shape_cast %539 : vector<1x32x32xbf16> to vector<32x32xbf16>
    %cst_216 = arith.constant dense<0.000000e+00> : vector<16x32xf32>
    %541 = tpu.matmul %538, %540, %cst_216 {dimension_numbers = #tpu.dot_dimension_numbers<[1], [0], [0], [1], [0, 0, 1, 1], [], []>} : vector<16x32xbf16>, vector<32x32xbf16>, vector<16x32xf32> -> vector<16x32xf32>
    %c0_217 = arith.constant 0 : index
    %c0_218 = arith.constant 0 : index
    %c0_219 = arith.constant 0 : index
    %542 = vector.load %arg26[%c0_217, %c0_218, %c0_219] : memref<1x1x32xf32, #tpu.memory_space<vmem>>, vector<1x1x32xf32>
    %543 = vector.shape_cast %542 : vector<1x1x32xf32> to vector<1x32xf32>
    %544 = vector.broadcast %543 : vector<1x32xf32> to vector<16x32xf32>
    %545 = arith.addf %541, %544 : vector<16x32xf32>
    %cst_220 = arith.constant 0.000000e+00 : f32
    %546 = vector.broadcast %cst_220 : f32 to vector<16x32xf32>
    %547 = arith.subf %546, %545 : vector<16x32xf32>
    %548 = math.exp %547 : vector<16x32xf32>
    %cst_221 = arith.constant 1.000000e+00 : f32
    %549 = vector.broadcast %cst_221 : f32 to vector<16x32xf32>
    %550 = arith.addf %549, %548 : vector<16x32xf32>
    %cst_222 = arith.constant 1.000000e+00 : f32
    %551 = vector.broadcast %cst_222 : f32 to vector<16x32xf32>
    %552 = arith.divf %551, %550 : vector<16x32xf32>
    %553 = arith.mulf %545, %552 : vector<16x32xf32>
    %554 = arith.truncf %553 : vector<16x32xf32> to vector<16x32xbf16>
    %c0_223 = arith.constant 0 : index
    %c0_224 = arith.constant 0 : index
    %c0_225 = arith.constant 0 : index
    %555 = vector.load %arg27[%c0_223, %c0_224, %c0_225] : memref<1x32x32xbf16, #tpu.memory_space<vmem>>, vector<1x32x32xbf16>
    %556 = vector.shape_cast %555 : vector<1x32x32xbf16> to vector<32x32xbf16>
    %cst_226 = arith.constant dense<0.000000e+00> : vector<16x32xf32>
    %557 = tpu.matmul %554, %556, %cst_226 {dimension_numbers = #tpu.dot_dimension_numbers<[1], [0], [0], [1], [0, 0, 1, 1], [], []>} : vector<16x32xbf16>, vector<32x32xbf16>, vector<16x32xf32> -> vector<16x32xf32>
    %c0_227 = arith.constant 0 : index
    %c0_228 = arith.constant 0 : index
    %c0_229 = arith.constant 0 : index
    %558 = vector.load %arg28[%c0_227, %c0_228, %c0_229] : memref<1x1x32xf32, #tpu.memory_space<vmem>>, vector<1x1x32xf32>
    %559 = vector.shape_cast %558 : vector<1x1x32xf32> to vector<1x32xf32>
    %560 = vector.broadcast %559 : vector<1x32xf32> to vector<16x32xf32>
    %561 = arith.addf %557, %560 : vector<16x32xf32>
    %cst_230 = arith.constant 0.000000e+00 : f32
    %562 = vector.broadcast %cst_230 : f32 to vector<16x32xf32>
    %563 = arith.subf %562, %561 : vector<16x32xf32>
    %564 = math.exp %563 : vector<16x32xf32>
    %cst_231 = arith.constant 1.000000e+00 : f32
    %565 = vector.broadcast %cst_231 : f32 to vector<16x32xf32>
    %566 = arith.addf %565, %564 : vector<16x32xf32>
    %cst_232 = arith.constant 1.000000e+00 : f32
    %567 = vector.broadcast %cst_232 : f32 to vector<16x32xf32>
    %568 = arith.divf %567, %566 : vector<16x32xf32>
    %569 = arith.mulf %561, %568 : vector<16x32xf32>
    %570 = arith.truncf %569 : vector<16x32xf32> to vector<16x32xbf16>
    %c0_233 = arith.constant 0 : index
    %c0_234 = arith.constant 0 : index
    %c0_235 = arith.constant 0 : index
    %571 = vector.load %arg29[%c0_233, %c0_234, %c0_235] : memref<1x32x32xbf16, #tpu.memory_space<vmem>>, vector<1x32x32xbf16>
    %572 = vector.shape_cast %571 : vector<1x32x32xbf16> to vector<32x32xbf16>
    %cst_236 = arith.constant dense<0.000000e+00> : vector<16x32xf32>
    %573 = tpu.matmul %570, %572, %cst_236 {dimension_numbers = #tpu.dot_dimension_numbers<[1], [0], [0], [1], [0, 0, 1, 1], [], []>} : vector<16x32xbf16>, vector<32x32xbf16>, vector<16x32xf32> -> vector<16x32xf32>
    %c0_237 = arith.constant 0 : index
    %c0_238 = arith.constant 0 : index
    %c0_239 = arith.constant 0 : index
    %574 = vector.load %arg30[%c0_237, %c0_238, %c0_239] : memref<1x1x32xf32, #tpu.memory_space<vmem>>, vector<1x1x32xf32>
    %575 = vector.shape_cast %574 : vector<1x1x32xf32> to vector<1x32xf32>
    %576 = vector.broadcast %575 : vector<1x32xf32> to vector<16x32xf32>
    %577 = arith.addf %573, %576 : vector<16x32xf32>
    %c0_240 = arith.constant 0 : index
    %c0_241 = arith.constant 0 : index
    %c0_242 = arith.constant 0 : index
    %578 = vector.load %arg32[%c0_240, %c0_241, %c0_242] : memref<1x16x32xf32, #tpu.memory_space<vmem>>, vector<1x16x32xf32>
    %579 = vector.shape_cast %578 : vector<1x16x32xf32> to vector<16x32xf32>
    %580 = vector.shape_cast %577 : vector<16x32xf32> to vector<1x16x32xf32>
    tpu.vector_store %arg32[%c0_240, %c0_241, %c0_242], %580 {strides = array<i32>} : memref<1x16x32xf32, #tpu.memory_space<vmem>>, vector<1x16x32xf32>,
    return
  }
}

</mosaic_0001>

<llo_original>
// kernel: _lambda_.1
$region0: #{_lambda_.1}
  #allocation0 [shape = 'u32[]', space=smem, size = 0x4, offset = 0x4, fixed_abs, tag = 'smem constant byte address 0x4 - core index']
  #allocation1 [shape = 'u32[144,128]{1,0:T(1,128)}', space=vmem, size = 0x12000, scoped, tag = 'internal scratch']
  %s0 = inlined_call_operand.smem [shape: u32[33], index: -1, kind: input, shape index: {}]
  %s1 = sld [smem:[%s0]]
  %s2 = scalar_lea.smem %s0, 1
  %s3 = sld [smem:[%s2]]
  %s4 = scalar_lea.smem %s0, 2
  %s5 = sld [smem:[%s4]]
  %s6 = scalar_lea.smem %s0, 3
  %s7 = sld [smem:[%s6]]
  %s8 = scalar_lea.smem %s0, 4
  %s9 = sld [smem:[%s8]]
  %s10 = scalar_lea.smem %s0, 5
  %s11 = sld [smem:[%s10]]
  %s12 = scalar_lea.smem %s0, 6
  %s13 = sld [smem:[%s12]]
  %s14 = scalar_lea.smem %s0, 7
  %s15 = sld [smem:[%s14]]
  %s16 = scalar_lea.smem %s0, 8
  %s17 = sld [smem:[%s16]]
  %s18 = scalar_lea.smem %s0, 9
  %s19 = sld [smem:[%s18]]
  %s20 = scalar_lea.smem %s0, 10
  %s21 = sld [smem:[%s20]]
  %s22 = scalar_lea.smem %s0, 11
  %s23 = sld [smem:[%s22]]
  %s24 = scalar_lea.smem %s0, 12
  %s25 = sld [smem:[%s24]]
  %s26 = scalar_lea.smem %s0, 13
  %s27 = sld [smem:[%s26]]
  %s28 = scalar_lea.smem %s0, 14
  %s29 = sld [smem:[%s28]]
  %s30 = scalar_lea.smem %s0, 15
  %s31 = sld [smem:[%s30]]
  %s32 = scalar_lea.smem %s0, 16
  %s33 = sld [smem:[%s32]]
  %s34 = scalar_lea.smem %s0, 17
  %s35 = sld [smem:[%s34]]
  %s36 = scalar_lea.smem %s0, 18
  %s37 = sld [smem:[%s36]]
  %s38 = scalar_lea.smem %s0, 19
  %s39 = sld [smem:[%s38]]
  %s40 = scalar_lea.smem %s0, 20
  %s41 = sld [smem:[%s40]]
  %s42 = scalar_lea.smem %s0, 21
  %s43 = sld [smem:[%s42]]
  %s44 = scalar_lea.smem %s0, 22
  %s45 = sld [smem:[%s44]]
  %s46 = scalar_lea.smem %s0, 23
  %s47 = sld [smem:[%s46]]
  %s48 = scalar_lea.smem %s0, 24
  %s49 = sld [smem:[%s48]]
  %s50 = scalar_lea.smem %s0, 25
  %s51 = sld [smem:[%s50]]
  %s52 = scalar_lea.smem %s0, 26
  %s53 = sld [smem:[%s52]]
  %s54 = scalar_lea.smem %s0, 27
  %s55 = sld [smem:[%s54]]
  %s56 = scalar_lea.smem %s0, 28
  %s57 = sld [smem:[%s56]]
  %s58 = scalar_lea.smem %s0, 29
  %s59 = sld [smem:[%s58]]
  %s60 = scalar_lea.smem %s0, 30
  %s61 = sld [smem:[%s60]]
  %s62 = scalar_lea.smem %s0, 31
  %s63 = sld [smem:[%s62]]
  %s64 = scalar_lea.smem %s0, 32
  %s65 = sld [smem:[%s64]]
  %66 = xla_tuple %s63, %s65
  %s67 = sld [smem:[#allocation0]]
  $region142: #{_lambda_.1} parent=0
    _
  %s69 = ssub.s32 1, %s67
  %s70 = scalar_select 0, %s69, %s67
  $region1: #{_lambda_.1} parent=0
    #allocation2 [shape = 'u8[8192]{0}', space=vmem, size = 0x2000, scoped, tag = 'output window, operand 0, single buffered']
    #allocation3 [shape = 's32[1]{0}', space=sflag, size = 0x4, scoped, tag = 'scoped memory for _lambda_.1']
    #allocation4 [shape = 'u8[8192]{0}', space=vmem, size = 0x2000, scoped, tag = 'output window, operand 1, single buffered']
    #allocation5 [shape = 's32[1]{0}', space=sflag, size = 0x4, scoped, tag = 'scoped memory for _lambda_.1']
    %71 = vsyncpa [#allocation3], 0
    %72 = vsyncpa [#allocation5], 0
    // Predicated region
    $region2: #{_lambda_.1} parent=1 // pred_check
      _
    $region3: #{_lambda_.1} parent=1 // pred_check_branch
      %74 = sbr.rel (0) target = $region5
    $region4: #{_lambda_.1} parent=1 // pred_region
      _
    $region5: #{_lambda_.1} parent=1 // pred_fallthru
      _
    // Predicated region
    $region6: #{_lambda_.1} parent=1 // pred_check
      _
    $region7: #{_lambda_.1} parent=1 // pred_check_branch
      %76 = sbr.rel (0) target = $region9
    $region8: #{_lambda_.1} parent=1 // pred_region
      _
    $region9: #{_lambda_.1} parent=1 // pred_fallthru
      _
    // Predicated region
    $region10: #{_lambda_.1} parent=1 // pred_check
      _
    $region11: #{_lambda_.1} parent=1 // pred_check_branch
      %78 = sbr.rel (0) target = $region13
    $region12: #{_lambda_.1} parent=1 // pred_region
      _
    $region13: #{_lambda_.1} parent=1 // pred_fallthru
      _
    // Predicated region
    $region14: #{_lambda_.1} parent=1 // pred_check
      _
    $region15: #{_lambda_.1} parent=1 // pred_check_branch
      %80 = sbr.rel (0) target = $region17
    $region16: #{_lambda_.1} parent=1 // pred_region
      _
    $region17: #{_lambda_.1} parent=1 // pred_fallthru
      _
    // Predicated region
    $region18: #{_lambda_.1} parent=1 // pred_check
      _
    $region19: #{_lambda_.1} parent=1 // pred_check_branch
      %82 = sbr.rel (0) target = $region21
    $region20: #{_lambda_.1} parent=1 // pred_region
      _
    $region21: #{_lambda_.1} parent=1 // pred_fallthru
      _
    // Predicated region
    $region22: #{_lambda_.1} parent=1 // pred_check
      _
    $region23: #{_lambda_.1} parent=1 // pred_check_branch
      %84 = sbr.rel (0) target = $region25
    $region24: #{_lambda_.1} parent=1 // pred_region
      _
    $region25: #{_lambda_.1} parent=1 // pred_fallthru
      _
    // Predicated region
    $region26: #{_lambda_.1} parent=1 // pred_check
      _
    $region27: #{_lambda_.1} parent=1 // pred_check_branch
      %86 = sbr.rel (0) target = $region29
    $region28: #{_lambda_.1} parent=1 // pred_region
      _
    $region29: #{_lambda_.1} parent=1 // pred_fallthru
      _
    // Predicated region
    $region30: #{_lambda_.1} parent=1 // pred_check
      _
    $region31: #{_lambda_.1} parent=1 // pred_check_branch
      %88 = sbr.rel (0) target = $region33
    $region32: #{_lambda_.1} parent=1 // pred_region
      _
    $region33: #{_lambda_.1} parent=1 // pred_fallthru
      _
    // Predicated region
    $region34: #{_lambda_.1} parent=1 // pred_check
      _
    $region35: #{_lambda_.1} parent=1 // pred_check_branch
      %90 = sbr.rel (0) target = $region37
    $region36: #{_lambda_.1} parent=1 // pred_region
      _
    $region37: #{_lambda_.1} parent=1 // pred_fallthru
      _
    // Predicated region
    $region38: #{_lambda_.1} parent=1 // pred_check
      _
    $region39: #{_lambda_.1} parent=1 // pred_check_branch
      %92 = sbr.rel (0) target = $region41
    $region40: #{_lambda_.1} parent=1 // pred_region
      _
    $region41: #{_lambda_.1} parent=1 // pred_fallthru
      _
    // Predicated region
    $region42: #{_lambda_.1} parent=1 // pred_check
      _
    $region43: #{_lambda_.1} parent=1 // pred_check_branch
      %94 = sbr.rel (0) target = $region45
    $region44: #{_lambda_.1} parent=1 // pred_region
      _
    $region45: #{_lambda_.1} parent=1 // pred_fallthru
      _
    // Predicated region
    $region46: #{_lambda_.1} parent=1 // pred_check
      _
    $region47: #{_lambda_.1} parent=1 // pred_check_branch
      %96 = sbr.rel (0) target = $region49
    $region48: #{_lambda_.1} parent=1 // pred_region
      _
    $region49: #{_lambda_.1} parent=1 // pred_fallthru
      _
    // Predicated region
    $region50: #{_lambda_.1} parent=1 // pred_check
      _
    $region51: #{_lambda_.1} parent=1 // pred_check_branch
      %98 = sbr.rel (0) target = $region53
    $region52: #{_lambda_.1} parent=1 // pred_region
      _
    $region53: #{_lambda_.1} parent=1 // pred_fallthru
      _
    // Predicated region
    $region54: #{_lambda_.1} parent=1 // pred_check
      _
    $region55: #{_lambda_.1} parent=1 // pred_check_branch
      %100 = sbr.rel (0) target = $region57
    $region56: #{_lambda_.1} parent=1 // pred_region
      _
    $region57: #{_lambda_.1} parent=1 // pred_fallthru
      _
    // Predicated region
    $region58: #{_lambda_.1} parent=1 // pred_check
      _
    $region59: #{_lambda_.1} parent=1 // pred_check_branch
      %102 = sbr.rel (0) target = $region61
    $region60: #{_lambda_.1} parent=1 // pred_region
      _
    $region61: #{_lambda_.1} parent=1 // pred_fallthru
      _
    // Predicated region
    $region62: #{_lambda_.1} parent=1 // pred_check
      _
    $region63: #{_lambda_.1} parent=1 // pred_check_branch
      %104 = sbr.rel (0) target = $region65
    $region64: #{_lambda_.1} parent=1 // pred_region
      _
    $region65: #{_lambda_.1} parent=1 // pred_fallthru
      _
    // Predicated region
    $region66: #{_lambda_.1} parent=1 // pred_check
      _
    $region67: #{_lambda_.1} parent=1 // pred_check_branch
      %106 = sbr.rel (0) target = $region69
    $region68: #{_lambda_.1} parent=1 // pred_region
      _
    $region69: #{_lambda_.1} parent=1 // pred_fallthru
      _
    // Predicated region
    $region70: #{_lambda_.1} parent=1 // pred_check
      _
    $region71: #{_lambda_.1} parent=1 // pred_check_branch
      %108 = sbr.rel (0) target = $region73
    $region72: #{_lambda_.1} parent=1 // pred_region
      _
    $region73: #{_lambda_.1} parent=1 // pred_fallthru
      _
    // Predicated region
    $region74: #{_lambda_.1} parent=1 // pred_check
      _
    $region75: #{_lambda_.1} parent=1 // pred_check_branch
      %110 = sbr.rel (0) target = $region77
    $region76: #{_lambda_.1} parent=1 // pred_region
      _
    $region77: #{_lambda_.1} parent=1 // pred_fallthru
      _
    // Predicated region
    $region78: #{_lambda_.1} parent=1 // pred_check
      _
    $region79: #{_lambda_.1} parent=1 // pred_check_branch
      %112 = sbr.rel (0) target = $region81
    $region80: #{_lambda_.1} parent=1 // pred_region
      _
    $region81: #{_lambda_.1} parent=1 // pred_fallthru
      _
    // Predicated region
    $region82: #{_lambda_.1} parent=1 // pred_check
      _
    $region83: #{_lambda_.1} parent=1 // pred_check_branch
      %114 = sbr.rel (0) target = $region85
    $region84: #{_lambda_.1} parent=1 // pred_region
      _
    $region85: #{_lambda_.1} parent=1 // pred_fallthru
      _
    // Predicated region
    $region86: #{_lambda_.1} parent=1 // pred_check
      _
    $region87: #{_lambda_.1} parent=1 // pred_check_branch
      %116 = sbr.rel (0) target = $region89
    $region88: #{_lambda_.1} parent=1 // pred_region
      _
    $region89: #{_lambda_.1} parent=1 // pred_fallthru
      _
    // Predicated region
    $region90: #{_lambda_.1} parent=1 // pred_check
      _
    $region91: #{_lambda_.1} parent=1 // pred_check_branch
      %118 = sbr.rel (0) target = $region93
    $region92: #{_lambda_.1} parent=1 // pred_region
      _
    $region93: #{_lambda_.1} parent=1 // pred_fallthru
      _
    // Predicated region
    $region94: #{_lambda_.1} parent=1 // pred_check
      _
    $region95: #{_lambda_.1} parent=1 // pred_check_branch
      %120 = sbr.rel (0) target = $region97
    $region96: #{_lambda_.1} parent=1 // pred_region
      _
    $region97: #{_lambda_.1} parent=1 // pred_fallthru
      _
    // Predicated region
    $region98: #{_lambda_.1} parent=1 // pred_check
      _
    $region99: #{_lambda_.1} parent=1 // pred_check_branch
      %122 = sbr.rel (0) target = $region101
    $region100: #{_lambda_.1} parent=1 // pred_region
      _
    $region101: #{_lambda_.1} parent=1 // pred_fallthru
      _
    // Predicated region
    $region102: #{_lambda_.1} parent=1 // pred_check
      _
    $region103: #{_lambda_.1} parent=1 // pred_check_branch
      %124 = sbr.rel (0) target = $region105
    $region104: #{_lambda_.1} parent=1 // pred_region
      _
    $region105: #{_lambda_.1} parent=1 // pred_fallthru
      _
    // Predicated region
    $region106: #{_lambda_.1} parent=1 // pred_check
      _
    $region107: #{_lambda_.1} parent=1 // pred_check_branch
      %126 = sbr.rel (0) target = $region109
    $region108: #{_lambda_.1} parent=1 // pred_region
      _
    $region109: #{_lambda_.1} parent=1 // pred_fallthru
      _
    // Predicated region
    $region110: #{_lambda_.1} parent=1 // pred_check
      _
    $region111: #{_lambda_.1} parent=1 // pred_check_branch
      %128 = sbr.rel (0) target = $region113
    $region112: #{_lambda_.1} parent=1 // pred_region
      _
    $region113: #{_lambda_.1} parent=1 // pred_fallthru
      _
    // Predicated region
    $region114: #{_lambda_.1} parent=1 // pred_check
      _
    $region115: #{_lambda_.1} parent=1 // pred_check_branch
      %130 = sbr.rel (0) target = $region117
    $region116: #{_lambda_.1} parent=1 // pred_region
      _
    $region117: #{_lambda_.1} parent=1 // pred_fallthru
      _
    // Predicated region
    $region118: #{_lambda_.1} parent=1 // pred_check
      _
    $region119: #{_lambda_.1} parent=1 // pred_check_branch
      %132 = sbr.rel (0) target = $region121
    $region120: #{_lambda_.1} parent=1 // pred_region
      _
    $region121: #{_lambda_.1} parent=1 // pred_fallthru
      _
    // Predicated region
    $region122: #{_lambda_.1} parent=1 // pred_check
      _
    $region123: #{_lambda_.1} parent=1 // pred_check_branch
      %134 = sbr.rel (0) target = $region125
    $region124: #{_lambda_.1} parent=1 // pred_region
      _
    $region125: #{_lambda_.1} parent=1 // pred_fallthru
      _
    %v136 = vld [vmem:[%s1] sm:$0xff]
    %v137 = vld [vmem:[%s1 + $0x8] sm:$0xff]
    %v138 = vld [vmem:[%s3] sm:$0xff]
    %v139 = vld [vmem:[%s3 + $0x8] sm:$0xff]
    %vm140 = vcmask 130048
    %v142 = vsel %vm140, %v136, 0
    %v145 = vsel %vm140, %v137, 0
    %147 = vmatprep.subr.mxu0 0.0
    %148 = vmatpush1.msra.mxu0 %v138
    %149 = vmatprep.subr.mxu0 0.0
    %150 = vmatpush1.msra.mxu0 %v139
    %151 = vmatprep.subr.mxu0 0.0
    %152 = vmatpush1.msra.mxu0 0.0
    %153 = vmatprep.subr.mxu0 0.0
    %154 = vmatpush1.msra.mxu0 0.0
    %155 = vmatprep.subr.mxu0 0.0
    %156 = vmatpush1.msra.mxu0 0.0
    %157 = vmatprep.subr.mxu0 0.0
    %158 = vmatpush1.msra.mxu0 0.0
    %159 = vmatprep.subr.mxu0 0.0
    %160 = vmatpush1.msra.mxu0 0.0
    %161 = vmatprep.subr.mxu0 0.0
    %162 = vmatpush1.msra.mxu0 0.0
    %163 = vmatprep.subr.mxu0 0.0
    %164 = vmatpush1.msra.mxu0 0.0
    %165 = vmatprep.subr.mxu0 0.0
    %166 = vmatpush1.msra.mxu0 0.0
    %167 = vmatprep.subr.mxu0 0.0
    %168 = vmatpush1.msra.mxu0 0.0
    %169 = vmatprep.subr.mxu0 0.0
    %170 = vmatpush1.msra.mxu0 0.0
    %171 = vmatprep.subr.mxu0 0.0
    %172 = vmatpush1.msra.mxu0 0.0
    %173 = vmatprep.subr.mxu0 0.0
    %174 = vmatpush1.msra.mxu0 0.0
    %175 = vmatprep.subr.mxu0 0.0
    %176 = vmatpush1.msra.mxu0 0.0
    %177 = vmatprep.subr.mxu0 0.0
    %178 = vmatpush1.msra.mxu0 0.0
    %179 = vmatprep.subr.mxu0 0.0
    %180 = vmatpush1.msra.mxu0 0.0
    %181 = vmatprep.subr.mxu0 0.0
    %182 = vmatpush1.msra.mxu0 0.0
    %183 = vmatprep.subr.mxu0 0.0
    %184 = vmatpush1.msra.mxu0 0.0
    %185 = vmatprep.subr.mxu0 0.0
    %186 = vmatpush1.msra.mxu0 0.0
    %187 = vmatprep.subr.mxu0 0.0
    %188 = vmatpush1.msra.mxu0 0.0
    %189 = vmatprep.subr.mxu0 0.0
    %190 = vmatpush1.msra.mxu0 0.0
    %191 = vmatprep.subr.mxu0 0.0
    %192 = vmatpush1.msra.mxu0 0.0
    %193 = vmatprep.subr.mxu0 0.0
    %194 = vmatpush1.msra.mxu0 0.0
    %195 = vmatprep.subr.mxu0 0.0
    %196 = vmatpush1.msra.mxu0 0.0
    %197 = vmatprep.subr.mxu0 0.0
    %198 = vmatpush1.msra.mxu0 0.0
    %199 = vmatprep.subr.mxu0 0.0
    %200 = vmatpush1.msra.mxu0 0.0
    %201 = vmatprep.subr.mxu0 0.0
    %202 = vmatpush1.msra.mxu0 0.0
    %203 = vmatprep.subr.mxu0 0.0
    %204 = vmatpush1.msra.mxu0 0.0
    %205 = vmatprep.subr.mxu0 0.0
    %206 = vmatpush1.msra.mxu0 0.0
    %207 = vmatprep.subr.mxu0 0.0
    %208 = vmatpush1.msra.mxu0 0.0
    %209 = vmatprep.subr.mxu0 0.0
    %210 = vmatpush1.msra.mxu0 0.0
    %211 = vmatprep.mubr.f32.mxu0 0.0
    %212 = vmatmul.mubr.f32.gmra.mrb[0].mxu0 %v142
    %v213 = vpop.f32.mrb[0].mxu0
    %v214 = vadd.f32 0.0, %v213
    %v215 = vpop.f32.mrb[0].mxu0
    %216 = vmatprep.mubr.f32.mxu0 0.0
    %217 = vmatmul.mubr.f32.gmra.mrb[0].mxu0 %v145
    %v218 = vpop.f32.mrb[0].mxu0
    %v219 = vadd.f32 0.0, %v218
    %v220 = vpop.f32.mrb[0].mxu0
    %221 = vdwg.mxu0
    %v222 = vld [vmem:[%s5] sm:$0xff]
    %v223 = vld [vmem:[%s5 + $0x8] sm:$0xff]
    %224 = vmatprep.subr.mxu0 0.0
    %225 = vmatpush1.msra.mxu0 %v222
    %226 = vmatprep.subr.mxu0 0.0
    %227 = vmatpush1.msra.mxu0 %v223
    %228 = vmatprep.subr.mxu0 0.0
    %229 = vmatpush1.msra.mxu0 0.0
    %230 = vmatprep.subr.mxu0 0.0
    %231 = vmatpush1.msra.mxu0 0.0
    %232 = vmatprep.subr.mxu0 0.0
    %233 = vmatpush1.msra.mxu0 0.0
    %234 = vmatprep.subr.mxu0 0.0
    %235 = vmatpush1.msra.mxu0 0.0
    %236 = vmatprep.subr.mxu0 0.0
    %237 = vmatpush1.msra.mxu0 0.0
    %238 = vmatprep.subr.mxu0 0.0
    %239 = vmatpush1.msra.mxu0 0.0
    %240 = vmatprep.subr.mxu0 0.0
    %241 = vmatpush1.msra.mxu0 0.0
    %242 = vmatprep.subr.mxu0 0.0
    %243 = vmatpush1.msra.mxu0 0.0
    %244 = vmatprep.subr.mxu0 0.0
    %245 = vmatpush1.msra.mxu0 0.0
    %246 = vmatprep.subr.mxu0 0.0
    %247 = vmatpush1.msra.mxu0 0.0
    %248 = vmatprep.subr.mxu0 0.0
    %249 = vmatpush1.msra.mxu0 0.0
    %250 = vmatprep.subr.mxu0 0.0
    %251 = vmatpush1.msra.mxu0 0.0
    %252 = vmatprep.subr.mxu0 0.0
    %253 = vmatpush1.msra.mxu0 0.0
    %254 = vmatprep.subr.mxu0 0.0
    %255 = vmatpush1.msra.mxu0 0.0
    %256 = vmatprep.subr.mxu0 0.0
    %257 = vmatpush1.msra.mxu0 0.0
    %258 = vmatprep.subr.mxu0 0.0
    %259 = vmatpush1.msra.mxu0 0.0
    %260 = vmatprep.subr.mxu0 0.0
    %261 = vmatpush1.msra.mxu0 0.0
    %262 = vmatprep.subr.mxu0 0.0
    %263 = vmatpush1.msra.mxu0 0.0
    %264 = vmatprep.subr.mxu0 0.0
    %265 = vmatpush1.msra.mxu0 0.0
    %266 = vmatprep.subr.mxu0 0.0
    %267 = vmatpush1.msra.mxu0 0.0
    %268 = vmatprep.subr.mxu0 0.0
    %269 = vmatpush1.msra.mxu0 0.0
    %270 = vmatprep.subr.mxu0 0.0
    %271 = vmatpush1.msra.mxu0 0.0
    %272 = vmatprep.subr.mxu0 0.0
    %273 = vmatpush1.msra.mxu0 0.0
    %274 = vmatprep.subr.mxu0 0.0
    %275 = vmatpush1.msra.mxu0 0.0
    %276 = vmatprep.subr.mxu0 0.0
    %277 = vmatpush1.msra.mxu0 0.0
    %278 = vmatprep.subr.mxu0 0.0
    %279 = vmatpush1.msra.mxu0 0.0
    %280 = vmatprep.subr.mxu0 0.0
    %281 = vmatpush1.msra.mxu0 0.0
    %282 = vmatprep.subr.mxu0 0.0
    %283 = vmatpush1.msra.mxu0 0.0
    %284 = vmatprep.subr.mxu0 0.0
    %285 = vmatpush1.msra.mxu0 0.0
    %286 = vmatprep.subr.mxu0 0.0
    %287 = vmatpush1.msra.mxu0 0.0
    %288 = vmatprep.mubr.f32.mxu0 0.0
    %289 = vmatmul.mubr.f32.gmra.mrb[0].mxu0 %v142
    %v290 = vpop.f32.mrb[0].mxu0
    %v291 = vadd.f32 0.0, %v290
    %v292 = vpop.f32.mrb[0].mxu0
    %293 = vmatprep.mubr.f32.mxu0 0.0
    %294 = vmatmul.mubr.f32.gmra.mrb[0].mxu0 %v145
    %v295 = vpop.f32.mrb[0].mxu0
    %v296 = vadd.f32 0.0, %v295
    %v297 = vpop.f32.mrb[0].mxu0
    %298 = vdwg.mxu0
    %v299 = vmul.f32 %v214, %v214
    %v300 = vmul.f32 %v219, %v219
    %v301 = vmul.f32 %v291, %v291
    %v302 = vmul.f32 %v296, %v296
    %v303 = vadd.f32 %v299, %v301
    %v304 = vadd.f32 %v300, %v302
    %v305 = vmax.f32 %v303, 1e-38
    %v306 = vmax.f32 %v304, 1e-38
    %v307 = vlog2.pop %v305
    %v308 = vmul.f32 %v307, 0.6931472
    %v309 = vlog2.pop %v306
    %v310 = vmul.f32 %v309, 0.6931472
    %v311 = vmul.f32 %v308, 0.15
    %v312 = vmul.f32 %v310, 0.15
    %v313 = vmul.f32 %v311, 1.442695
    %v314 = vpow.pop %v313
    %v315 = vmul.f32 %v312, 1.442695
    %v316 = vpow.pop %v315
    %vm317 = vcmp.gt.f32.partialorder %v303, 0.0
    %vm318 = vcmp.gt.f32.partialorder %v304, 0.0
    %v319 = vsel %vm317, %v314, 0.0
    %v320 = vsel %vm318, %v316, 0.0
    %v321 = vld [vmem:[%s7] sm:$0x1]
    %v323 = vlaneseq
    %v324 = vshrl.u32 %v323, 7
    %v325 = vsub.s32 0, %v324
    %v326 = vrot.slane %v321, %v325
    %v328 = vmul.f32 %v319, %v326
    %v329 = vmul.f32 %v320, %v326
    %v330 = vld [vmem:[%s9] sm:$0x1]
    %v332 = vlaneseq
    %v333 = vshrl.u32 %v332, 7
    %v334 = vsub.s32 0, %v333
    %v335 = vrot.slane %v330, %v334
    %v337 = vadd.f32 %v328, %v335
    %v338 = vadd.f32 %v329, %v335
    %v339 = vand.u32 2147483647, %v214
    %v340 = vand.u32 2147483647, %v219
    %v341 = vand.u32 2147483647, %v291
    %v342 = vand.u32 2147483647, %v296
    %v343 = vmin.f32 %v339, %v341
    %v344 = vmin.f32 %v340, %v342
    %v345 = vmax.f32 %v339, %v341
    %v346 = vmax.f32 %v340, %v342
    %v347 = vmax.f32 %v345, 1e-30
    %v348 = vmax.f32 %v346, 1e-30
    %v349 = vrcp.pop %v347
    %v350 = vmul.f32 %v343, %v349
    %v351 = vrcp.pop %v348
    %v352 = vmul.f32 %v344, %v351
    %v353 = vmul.f32 %v350, %v350
    %v354 = vmul.f32 %v352, %v352
    %v355 = vmul.f32 %v353, 0.002823639
    %v356 = vmul.f32 %v354, 0.002823639
    %v357 = vadd.f32 %v355, -0.015956903
    %v358 = vadd.f32 %v356, -0.015956903
    %v359 = vmul.f32 %v357, %v353
    %v360 = vmul.f32 %v358, %v354
    %v361 = vadd.f32 %v359, 0.04250499
    %v362 = vadd.f32 %v360, 0.04250499
    %v363 = vmul.f32 %v361, %v353
    %v364 = vmul.f32 %v362, %v354
    %v365 = vadd.f32 %v363, -0.07489009
    %v366 = vadd.f32 %v364, -0.07489009
    %v367 = vmul.f32 %v365, %v353
    %v368 = vmul.f32 %v366, %v354
    %v369 = vadd.f32 %v367, 0.10634793
    %v370 = vadd.f32 %v368, 0.10634793
    %v371 = vmul.f32 %v369, %v353
    %v372 = vmul.f32 %v370, %v354
    %v373 = vadd.f32 %v371, -0.14202736
    %v374 = vadd.f32 %v372, -0.14202736
    %v375 = vmul.f32 %v373, %v353
    %v376 = vmul.f32 %v374, %v354
    %v377 = vadd.f32 %v375, 0.19992696
    %v378 = vadd.f32 %v376, 0.19992696
    %v379 = vmul.f32 %v377, %v353
    %v380 = vmul.f32 %v378, %v354
    %v381 = vadd.f32 %v379, -0.33333102
    %v382 = vadd.f32 %v380, -0.33333102
    %v383 = vmul.f32 %v350, %v353
    %v384 = vmul.f32 %v352, %v354
    %v385 = vmul.f32 %v383, %v381
    %v386 = vmul.f32 %v384, %v382
    %v387 = vadd.f32 %v350, %v385
    %v388 = vadd.f32 %v352, %v386
    %vm389 = vcmp.gt.f32.partialorder %v341, %v339
    %vm390 = vcmp.gt.f32.partialorder %v342, %v340
    %v391 = vsub.f32 1.5707964, %v387
    %v392 = vsub.f32 1.5707964, %v388
    %v393 = vsel %vm389, %v391, %v387
    %v394 = vsel %vm390, %v392, %v388
    %vm395 = vcmp.lt.f32.partialorder %v214, 0.0
    %vm396 = vcmp.lt.f32.partialorder %v219, 0.0
    %v397 = vsub.f32 3.1415927, %v393
    %v398 = vsub.f32 3.1415927, %v394
    %v399 = vsel %vm395, %v397, %v393
    %v400 = vsel %vm396, %v398, %v394
    %vm401 = vcmp.lt.f32.partialorder %v291, 0.0
    %vm402 = vcmp.lt.f32.partialorder %v296, 0.0
    %v403 = vsub.f32 0.0, %v399
    %v404 = vsub.f32 0.0, %v400
    %v405 = vsel %vm401, %v403, %v399
    %v406 = vsel %vm402, %v404, %v400
    %v407 = vpack.c.bf16 %v338, %v337
    %v408 = vld [vmem:[%s11] sm:$0xf]
    %v409 = vld [vmem:[%s11 + $0x4] sm:$0x1]
    %v410 = vpack.c.bf16 %v406, %v405
    %v411 = vld [vmem:[%s13] sm:$0xf]
    %v412 = vld [vmem:[%s13 + $0x4] sm:$0x1]
    %v415 = vunpack.c.l.b16 %v411
    %v416 = vunpack.c.l.b16 %v412
    %v417 = vpack.c.b16 %v416, %v415
    %vm418 = vcmask 72704
    %v420 = vsel %vm418, %v410, 0
    %vm422 = vcmask 1043456
    %vm423 = vcmask 1044480
    %v424 = vsel %vm422, 4294967295, 65535
    %v425 = vsel %vm423, %v424, 0
    %v427 = vand.u32 %v417, %v425
    %429 = vmatprep.subr.bf16.mxu0 0
    %430 = vmatpush1.bf16.msra.mxu0 %v427
    %431 = vmatprep.subr.bf16.mxu0 0
    %432 = vmatpush1.bf16.msra.mxu0 0
    %433 = vmatprep.subr.bf16.mxu0 0
    %434 = vmatpush1.bf16.msra.mxu0 0
    %435 = vmatprep.subr.bf16.mxu0 0
    %436 = vmatpush1.bf16.msra.mxu0 0
    %437 = vmatprep.subr.bf16.mxu0 0
    %438 = vmatpush1.bf16.msra.mxu0 0
    %439 = vmatprep.subr.bf16.mxu0 0
    %440 = vmatpush1.bf16.msra.mxu0 0
    %441 = vmatprep.subr.bf16.mxu0 0
    %442 = vmatpush1.bf16.msra.mxu0 0
    %443 = vmatprep.subr.bf16.mxu0 0
    %444 = vmatpush1.bf16.msra.mxu0 0
    %445 = vmatprep.subr.bf16.mxu0 0
    %446 = vmatpush1.bf16.msra.mxu0 0
    %447 = vmatprep.subr.bf16.mxu0 0
    %448 = vmatpush1.bf16.msra.mxu0 0
    %449 = vmatprep.subr.bf16.mxu0 0
    %450 = vmatpush1.bf16.msra.mxu0 0
    %451 = vmatprep.subr.bf16.mxu0 0
    %452 = vmatpush1.bf16.msra.mxu0 0
    %453 = vmatprep.subr.bf16.mxu0 0
    %454 = vmatpush1.bf16.msra.mxu0 0
    %455 = vmatprep.subr.bf16.mxu0 0
    %456 = vmatpush1.bf16.msra.mxu0 0
    %457 = vmatprep.subr.bf16.mxu0 0
    %458 = vmatpush1.bf16.msra.mxu0 0
    %459 = vmatprep.subr.bf16.mxu0 0
    %460 = vmatpush1.bf16.msra.mxu0 0
    %461 = vmatprep.mubr.bf16.mxu0 0
    %462 = vmatmul.mubr.bf16.gmra.mrb[0].mxu0 %v420
    %v463 = vpop.f32.mrb[0].mxu0
    %v464 = vadd.f32 0.0, %v463
    %v465 = vpop.f32.mrb[0].mxu0
    %v466 = vpop.f32.mrb[0].mxu0
    %v467 = vadd.f32 0.0, %v466
    %v468 = vpop.f32.mrb[0].mxu0
    %469 = vdwg.mxu0
    %v472 = vunpack.c.l.b16 %v408
    %v473 = vunpack.c.l.b16 %v409
    %v474 = vpack.c.b16 %v473, %v472
    %v476 = vsel %vm418, %v407, 0
    %v479 = vand.u32 %v474, %v425
    %481 = vmatprep.subr.bf16.mxu0 0
    %482 = vmatpush1.bf16.msra.mxu0 %v479
    %483 = vmatprep.subr.bf16.mxu0 0
    %484 = vmatpush1.bf16.msra.mxu0 0
    %485 = vmatprep.subr.bf16.mxu0 0
    %486 = vmatpush1.bf16.msra.mxu0 0
    %487 = vmatprep.subr.bf16.mxu0 0
    %488 = vmatpush1.bf16.msra.mxu0 0
    %489 = vmatprep.subr.bf16.mxu0 0
    %490 = vmatpush1.bf16.msra.mxu0 0
    %491 = vmatprep.subr.bf16.mxu0 0
    %492 = vmatpush1.bf16.msra.mxu0 0
    %493 = vmatprep.subr.bf16.mxu0 0
    %494 = vmatpush1.bf16.msra.mxu0 0
    %495 = vmatprep.subr.bf16.mxu0 0
    %496 = vmatpush1.bf16.msra.mxu0 0
    %497 = vmatprep.subr.bf16.mxu0 0
    %498 = vmatpush1.bf16.msra.mxu0 0
    %499 = vmatprep.subr.bf16.mxu0 0
    %500 = vmatpush1.bf16.msra.mxu0 0
    %501 = vmatprep.subr.bf16.mxu0 0
    %502 = vmatpush1.bf16.msra.mxu0 0
    %503 = vmatprep.subr.bf16.mxu0 0
    %504 = vmatpush1.bf16.msra.mxu0 0
    %505 = vmatprep.subr.bf16.mxu0 0
    %506 = vmatpush1.bf16.msra.mxu0 0
    %507 = vmatprep.subr.bf16.mxu0 0
    %508 = vmatpush1.bf16.msra.mxu0 0
    %509 = vmatprep.subr.bf16.mxu0 0
    %510 = vmatpush1.bf16.msra.mxu0 0
    %511 = vmatprep.subr.bf16.mxu0 0
    %512 = vmatpush1.bf16.msra.mxu0 0
    %513 = vmatprep.mubr.bf16.mxu0 0
    %514 = vmatmul.mubr.bf16.gmra.mrb[0].mxu0 %v476
    %v515 = vpop.f32.mrb[0].mxu0
    %v516 = vadd.f32 %v464, %v515
    %v517 = vpop.f32.mrb[0].mxu0
    %v518 = vpop.f32.mrb[0].mxu0
    %v519 = vadd.f32 %v467, %v518
    %v520 = vpop.f32.mrb[0].mxu0
    %521 = vdwg.mxu0
    %v522 = vld [vmem:[%s15] sm:$0x1]
    %v524 = vlaneseq
    %v525 = vshrl.u32 %v524, 7
    %v526 = vsub.s32 0, %v525
    %v527 = vrot.slane %v522, %v526
    %v529 = vadd.f32 %v516, %v527
    %v530 = vadd.f32 %v519, %v527
    %v531 = vmax.f32 %v529, 0.0
    %v532 = vmax.f32 %v530, 0.0
    %v533 = vpack.c.bf16 %v532, %v531
    %v534 = vld [vmem:[%s17] sm:$0xf]
    %v535 = vld [vmem:[%s17 + $0x4] sm:$0xf]
    %v536 = vld [vmem:[%s17 + $0x8] sm:$0xf]
    %v537 = vld [vmem:[%s17 + $0xc] sm:$0xf]
    %v538 = vld [vmem:[%s17 + $0x10] sm:$0xf]
    %v539 = vld [vmem:[%s17 + $0x14] sm:$0xf]
    %v540 = vld [vmem:[%s19] sm:$0x1]
    %v542 = vlaneseq
    %v543 = vshrl.u32 %v542, 7
    %v544 = vsub.s32 0, %v543
    %v545 = vrot.slane %v540, %v544
    %v553 = vunpack.c.l.b16 %v534
    %v554 = vunpack.c.l.b16 %v535
    %v555 = vunpack.c.l.b16 %v536
    %v556 = vunpack.c.l.b16 %v537
    %v557 = vunpack.c.l.b16 %v538
    %v558 = vunpack.c.l.b16 %v539
    %v559 = vpack.c.b16 %v554, %v553
    %v560 = vpack.c.b16 %v556, %v555
    %v561 = vpack.c.b16 %v558, %v557
    %vm565 = vcmask 392192
    %v567 = vsel %vm565, %v533, 0
    %569 = vmatprep.subr.bf16.mxu0 0
    %570 = vmatpush1.bf16.msra.mxu0 %v559
    %571 = vmatprep.subr.bf16.mxu0 0
    %572 = vmatpush1.bf16.msra.mxu0 %v560
    %573 = vmatprep.subr.bf16.mxu0 0
    %574 = vmatpush1.bf16.msra.mxu0 %v561
    %575 = vmatprep.subr.bf16.mxu0 0
    %576 = vmatpush1.bf16.msra.mxu0 0
    %577 = vmatprep.subr.bf16.mxu0 0
    %578 = vmatpush1.bf16.msra.mxu0 0
    %579 = vmatprep.subr.bf16.mxu0 0
    %580 = vmatpush1.bf16.msra.mxu0 0
    %581 = vmatprep.subr.bf16.mxu0 0
    %582 = vmatpush1.bf16.msra.mxu0 0
    %583 = vmatprep.subr.bf16.mxu0 0
    %584 = vmatpush1.bf16.msra.mxu0 0
    %585 = vmatprep.subr.bf16.mxu0 0
    %586 = vmatpush1.bf16.msra.mxu0 0
    %587 = vmatprep.subr.bf16.mxu0 0
    %588 = vmatpush1.bf16.msra.mxu0 0
    %589 = vmatprep.subr.bf16.mxu0 0
    %590 = vmatpush1.bf16.msra.mxu0 0
    %591 = vmatprep.subr.bf16.mxu0 0
    %592 = vmatpush1.bf16.msra.mxu0 0
    %593 = vmatprep.subr.bf16.mxu0 0
    %594 = vmatpush1.bf16.msra.mxu0 0
    %595 = vmatprep.subr.bf16.mxu0 0
    %596 = vmatpush1.bf16.msra.mxu0 0
    %597 = vmatprep.subr.bf16.mxu0 0
    %598 = vmatpush1.bf16.msra.mxu0 0
    %599 = vmatprep.subr.bf16.mxu0 0
    %600 = vmatpush1.bf16.msra.mxu0 0
    %601 = vmatprep.mubr.bf16.mxu0 0
    %602 = vmatmul.mubr.bf16.gmra.mrb[0].mxu0 %v567
    %v603 = vpop.f32.mrb[0].mxu0
    %v604 = vadd.f32 %v545, %v603
    %v605 = vpop.f32.mrb[0].mxu0
    %v606 = vpop.f32.mrb[0].mxu0
    %v607 = vadd.f32 %v545, %v606
    %v608 = vpop.f32.mrb[0].mxu0
    %609 = vdwg.mxu0
    %v610 = vld [vmem:[%s21] sm:$0xff]
    %v611 = vld [vmem:[%s21 + $0x8] sm:$0xff]
    %v612 = vadd.f32 %v604, %v610
    %v613 = vadd.f32 %v607, %v611
    %v614 = vld [vmem:[%s23] sm:$0x1]
    %v615 = vld [vmem:[%s25] sm:$0x1]
    %vm616 = vcmask 261120
    %v617 = vsel %vm616, %v612, 0.0
    %618 = vadd.xlane.f32.xlu0 %v617
    %v619 = vpop.xlane.xlu0 %618
    %v620 = vsel %vm616, %v613, 0.0
    %621 = vadd.xlane.f32.xlu0 %v620
    %v622 = vpop.xlane.xlu0 %621
    %v623 = vrcp.pop 32.0
    %v624 = vmul.f32 %v619, %v623
    %v625 = vmul.f32 %v622, %v623
    %v626 = vsub.f32 %v612, %v624
    %v627 = vsub.f32 %v613, %v625
    %v628 = vmul.f32 %v626, %v626
    %v629 = vmul.f32 %v627, %v627
    %v630 = vsel %vm616, %v628, 0.0
    %631 = vadd.xlane.f32.xlu0 %v630
    %v632 = vpop.xlane.xlu0 %631
    %v633 = vsel %vm616, %v629, 0.0
    %634 = vadd.xlane.f32.xlu0 %v633
    %v635 = vpop.xlane.xlu0 %634
    %v636 = vmul.f32 %v632, %v623
    %v637 = vmul.f32 %v635, %v623
    %v638 = vadd.f32 %v636, 1e-05
    %v639 = vadd.f32 %v637, 1e-05
    %v640 = vrsqrt.pop %v638
    %v641 = vrsqrt.pop %v639
    %v642 = vmul.f32 %v626, %v640
    %v643 = vmul.f32 %v627, %v641
    %v645 = vlaneseq
    %v646 = vshrl.u32 %v645, 7
    %v647 = vsub.s32 0, %v646
    %v648 = vrot.slane %v614, %v647
    %v650 = vmul.f32 %v642, %v648
    %v651 = vmul.f32 %v643, %v648
    %v653 = vlaneseq
    %v654 = vshrl.u32 %v653, 7
    %v655 = vsub.s32 0, %v654
    %v656 = vrot.slane %v615, %v655
    %v658 = vadd.f32 %v650, %v656
    %v659 = vadd.f32 %v651, %v656
    %v660 = vpack.c.bf16 %v659, %v658
    %v661 = vld [vmem:[%s27] sm:$0xf]
    %v662 = vld [vmem:[%s27 + $0x4] sm:$0xf]
    %v663 = vld [vmem:[%s27 + $0x8] sm:$0xf]
    %v664 = vld [vmem:[%s27 + $0xc] sm:$0xf]
    %v665 = vld [vmem:[%s29] sm:$0x1]
    %v667 = vlaneseq
    %v668 = vshrl.u32 %v667, 7
    %v669 = vsub.s32 0, %v668
    %v670 = vrot.slane %v665, %v669
    %v676 = vunpack.c.l.b16 %v661
    %v677 = vunpack.c.l.b16 %v662
    %v678 = vunpack.c.l.b16 %v663
    %v679 = vunpack.c.l.b16 %v664
    %v680 = vpack.c.b16 %v677, %v676
    %v681 = vpack.c.b16 %v679, %v678
    %v685 = vsel %vm616, %v660, 0
    %687 = vmatprep.subr.bf16.mxu0 0
    %688 = vmatpush1.bf16.msra.mxu0 %v680
    %689 = vmatprep.subr.bf16.mxu0 0
    %690 = vmatpush1.bf16.msra.mxu0 %v681
    %691 = vmatprep.subr.bf16.mxu0 0
    %692 = vmatpush1.bf16.msra.mxu0 0
    %693 = vmatprep.subr.bf16.mxu0 0
    %694 = vmatpush1.bf16.msra.mxu0 0
    %695 = vmatprep.subr.bf16.mxu0 0
    %696 = vmatpush1.bf16.msra.mxu0 0
    %697 = vmatprep.subr.bf16.mxu0 0
    %698 = vmatpush1.bf16.msra.mxu0 0
    %699 = vmatprep.subr.bf16.mxu0 0
    %700 = vmatpush1.bf16.msra.mxu0 0
    %701 = vmatprep.subr.bf16.mxu0 0
    %702 = vmatpush1.bf16.msra.mxu0 0
    %703 = vmatprep.subr.bf16.mxu0 0
    %704 = vmatpush1.bf16.msra.mxu0 0
    %705 = vmatprep.subr.bf16.mxu0 0
    %706 = vmatpush1.bf16.msra.mxu0 0
    %707 = vmatprep.subr.bf16.mxu0 0
    %708 = vmatpush1.bf16.msra.mxu0 0
    %709 = vmatprep.subr.bf16.mxu0 0
    %710 = vmatpush1.bf16.msra.mxu0 0
    %711 = vmatprep.subr.bf16.mxu0 0
    %712 = vmatpush1.bf16.msra.mxu0 0
    %713 = vmatprep.subr.bf16.mxu0 0
    %714 = vmatpush1.bf16.msra.mxu0 0
    %715 = vmatprep.subr.bf16.mxu0 0
    %716 = vmatpush1.bf16.msra.mxu0 0
    %717 = vmatprep.subr.bf16.mxu0 0
    %718 = vmatpush1.bf16.msra.mxu0 0
    %719 = vmatprep.mubr.bf16.mxu0 0
    %720 = vmatmul.mubr.bf16.gmra.mrb[0].mxu0 %v685
    %v721 = vpop.f32.mrb[0].mxu0
    %v722 = vadd.f32 %v670, %v721
    %v723 = vpop.f32.mrb[0].mxu0
    %v724 = vpop.f32.mrb[0].mxu0
    %v725 = vadd.f32 %v670, %v724
    %v726 = vpop.f32.mrb[0].mxu0
    %727 = vdwg.mxu0
    %v728 = vld [vmem:[%s31] sm:$0xf]
    %v729 = vld [vmem:[%s31 + $0x4] sm:$0xf]
    %v730 = vld [vmem:[%s31 + $0x8] sm:$0xf]
    %v731 = vld [vmem:[%s31 + $0xc] sm:$0xf]
    %v732 = vpack.c.bf16 %v722, %v722
    %v733 = vpack.c.bf16 %v725, %v725
    %735 = vrot.lane.b32.xlu0 %v732, 96
    %v736 = vpop.permute.xlu0 %735
    %vm737 = vcmask 64512
    %v739 = vsel %vm737, %v732, 0
    %v742 = vsel %vm737, %v736, 0
    %744 = vmatprep.subr.bf16.mxu0 0
    %745 = vmatpush1.bf16.xpose.msra.mxu0 %v742
    %746 = vmatprep.subr.bf16.mxu0 0
    %747 = vmatpush1.bf16.xpose.msra.mxu0 0
    %748 = vmatprep.subr.bf16.mxu0 0
    %749 = vmatpush1.bf16.xpose.msra.mxu0 0
    %750 = vmatprep.subr.bf16.mxu0 0
    %751 = vmatpush1.bf16.xpose.msra.mxu0 0
    %752 = vmatprep.subr.bf16.mxu0 0
    %753 = vmatpush1.bf16.xpose.msra.mxu0 0
    %754 = vmatprep.subr.bf16.mxu0 0
    %755 = vmatpush1.bf16.xpose.msra.mxu0 0
    %756 = vmatprep.subr.bf16.mxu0 0
    %757 = vmatpush1.bf16.xpose.msra.mxu0 0
    %758 = vmatprep.subr.bf16.mxu0 0
    %759 = vmatpush1.bf16.xpose.msra.mxu0 0
    %760 = vmatprep.subr.bf16.mxu0 0
    %761 = vmatpush1.bf16.xpose.msra.mxu0 0
    %762 = vmatprep.subr.bf16.mxu0 0
    %763 = vmatpush1.bf16.xpose.msra.mxu0 0
    %764 = vmatprep.subr.bf16.mxu0 0
    %765 = vmatpush1.bf16.xpose.msra.mxu0 0
    %766 = vmatprep.subr.bf16.mxu0 0
    %767 = vmatpush1.bf16.xpose.msra.mxu0 0
    %768 = vmatprep.subr.bf16.mxu0 0
    %769 = vmatpush1.bf16.xpose.msra.mxu0 0
    %770 = vmatprep.subr.bf16.mxu0 0
    %771 = vmatpush1.bf16.xpose.msra.mxu0 0
    %772 = vmatprep.subr.bf16.mxu0 0
    %773 = vmatpush1.bf16.xpose.msra.mxu0 0
    %774 = vmatprep.subr.bf16.mxu0 0
    %775 = vmatpush1.bf16.xpose.msra.mxu0 0
    %776 = vmatprep.mubr.bf16.mxu0 0
    %777 = vmatmul.mubr.bf16.gmra.mrb[0].mxu0 %v739
    %v778 = vpop.f32.mrb[0].mxu0
    %v779 = vadd.f32 0.0, %v778
    %v780 = vpop.f32.mrb[0].mxu0
    %v781 = vpop.f32.mrb[0].mxu0
    %v782 = vpop.f32.mrb[0].mxu0
    %783 = vdwg.mxu0
    %785 = vrot.lane.b32.xlu0 %v733, 96
    %v786 = vpop.permute.xlu0 %785
    %v788 = vsel %vm737, %v733, 0
    %v791 = vsel %vm737, %v786, 0
    %793 = vmatprep.subr.bf16.mxu0 0
    %794 = vmatpush1.bf16.xpose.msra.mxu0 %v791
    %795 = vmatprep.subr.bf16.mxu0 0
    %796 = vmatpush1.bf16.xpose.msra.mxu0 0
    %797 = vmatprep.subr.bf16.mxu0 0
    %798 = vmatpush1.bf16.xpose.msra.mxu0 0
    %799 = vmatprep.subr.bf16.mxu0 0
    %800 = vmatpush1.bf16.xpose.msra.mxu0 0
    %801 = vmatprep.subr.bf16.mxu0 0
    %802 = vmatpush1.bf16.xpose.msra.mxu0 0
    %803 = vmatprep.subr.bf16.mxu0 0
    %804 = vmatpush1.bf16.xpose.msra.mxu0 0
    %805 = vmatprep.subr.bf16.mxu0 0
    %806 = vmatpush1.bf16.xpose.msra.mxu0 0
    %807 = vmatprep.subr.bf16.mxu0 0
    %808 = vmatpush1.bf16.xpose.msra.mxu0 0
    %809 = vmatprep.subr.bf16.mxu0 0
    %810 = vmatpush1.bf16.xpose.msra.mxu0 0
    %811 = vmatprep.subr.bf16.mxu0 0
    %812 = vmatpush1.bf16.xpose.msra.mxu0 0
    %813 = vmatprep.subr.bf16.mxu0 0
    %814 = vmatpush1.bf16.xpose.msra.mxu0 0
    %815 = vmatprep.subr.bf16.mxu0 0
    %816 = vmatpush1.bf16.xpose.msra.mxu0 0
    %817 = vmatprep.subr.bf16.mxu0 0
    %818 = vmatpush1.bf16.xpose.msra.mxu0 0
    %819 = vmatprep.subr.bf16.mxu0 0
    %820 = vmatpush1.bf16.xpose.msra.mxu0 0
    %821 = vmatprep.subr.bf16.mxu0 0
    %822 = vmatpush1.bf16.xpose.msra.mxu0 0
    %823 = vmatprep.subr.bf16.mxu0 0
    %824 = vmatpush1.bf16.xpose.msra.mxu0 0
    %825 = vmatprep.mubr.bf16.mxu0 0
    %826 = vmatmul.mubr.bf16.gmra.mrb[0].mxu0 %v788
    %v827 = vpop.f32.mrb[0].mxu0
    %v828 = vadd.f32 0.0, %v827
    %v829 = vpop.f32.mrb[0].mxu0
    %v830 = vpop.f32.mrb[0].mxu0
    %v831 = vpop.f32.mrb[0].mxu0
    %832 = vdwg.mxu0
    %v833 = vmul.f32 %v779, 0.35355338
    %v834 = vmul.f32 %v828, 0.35355338
    %v835 = vsel %vm737, %v833, -inf
    %836 = vmax.xlane.f32.xlu0 %v835
    %v837 = vpop.xlane.xlu0 %836
    %v838 = vsel %vm737, %v834, -inf
    %839 = vmax.xlane.f32.xlu0 %v838
    %v840 = vpop.xlane.xlu0 %839
    %v841 = vsub.f32 %v833, %v837
    %v842 = vsub.f32 %v834, %v840
    %v843 = vmul.f32 %v841, 1.442695
    %v844 = vpow.pop %v843
    %v845 = vmul.f32 %v842, 1.442695
    %v846 = vpow.pop %v845
    %v847 = vsel %vm737, %v844, 0.0
    %848 = vadd.xlane.f32.xlu0 %v847
    %v849 = vpop.xlane.xlu0 %848
    %v850 = vsel %vm737, %v846, 0.0
    %851 = vadd.xlane.f32.xlu0 %v850
    %v852 = vpop.xlane.xlu0 %851
    %v853 = vrcp.pop %v849
    %v854 = vrcp.pop %v852
    %v855 = vmul.f32 %v844, %v853
    %v856 = vmul.f32 %v846, %v854
    %v857 = vpack.c.bf16 %v855, %v855
    %v858 = vpack.c.bf16 %v856, %v856
    %859 = vrot.lane.b32.xlu0 %v732, 64
    %v860 = vpop.permute.xlu0 %859
    %v862 = vsel %vm737, %v857, 0
    %v865 = vsel %vm422, %v860, 0
    %867 = vmatprep.subr.bf16.mxu0 0
    %868 = vmatpush1.bf16.msra.mxu0 %v865
    %869 = vmatprep.subr.bf16.mxu0 0
    %870 = vmatpush1.bf16.msra.mxu0 0
    %871 = vmatprep.subr.bf16.mxu0 0
    %872 = vmatpush1.bf16.msra.mxu0 0
    %873 = vmatprep.subr.bf16.mxu0 0
    %874 = vmatpush1.bf16.msra.mxu0 0
    %875 = vmatprep.subr.bf16.mxu0 0
    %876 = vmatpush1.bf16.msra.mxu0 0
    %877 = vmatprep.subr.bf16.mxu0 0
    %878 = vmatpush1.bf16.msra.mxu0 0
    %879 = vmatprep.subr.bf16.mxu0 0
    %880 = vmatpush1.bf16.msra.mxu0 0
    %881 = vmatprep.subr.bf16.mxu0 0
    %882 = vmatpush1.bf16.msra.mxu0 0
    %883 = vmatprep.subr.bf16.mxu0 0
    %884 = vmatpush1.bf16.msra.mxu0 0
    %885 = vmatprep.subr.bf16.mxu0 0
    %886 = vmatpush1.bf16.msra.mxu0 0
    %887 = vmatprep.subr.bf16.mxu0 0
    %888 = vmatpush1.bf16.msra.mxu0 0
    %889 = vmatprep.subr.bf16.mxu0 0
    %890 = vmatpush1.bf16.msra.mxu0 0
    %891 = vmatprep.subr.bf16.mxu0 0
    %892 = vmatpush1.bf16.msra.mxu0 0
    %893 = vmatprep.subr.bf16.mxu0 0
    %894 = vmatpush1.bf16.msra.mxu0 0
    %895 = vmatprep.subr.bf16.mxu0 0
    %896 = vmatpush1.bf16.msra.mxu0 0
    %897 = vmatprep.subr.bf16.mxu0 0
    %898 = vmatpush1.bf16.msra.mxu0 0
    %899 = vmatprep.mubr.bf16.mxu0 0
    %900 = vmatmul.mubr.bf16.gmra.mrb[0].mxu0 %v862
    %v901 = vpop.f32.mrb[0].mxu0
    %v902 = vadd.f32 0.0, %v901
    %v903 = vpop.f32.mrb[0].mxu0
    %v904 = vpop.f32.mrb[0].mxu0
    %v905 = vpop.f32.mrb[0].mxu0
    %906 = vdwg.mxu0
    %907 = vrot.lane.b32.xlu0 %v733, 64
    %v908 = vpop.permute.xlu0 %907
    %v910 = vsel %vm737, %v858, 0
    %v913 = vsel %vm422, %v908, 0
    %915 = vmatprep.subr.bf16.mxu0 0
    %916 = vmatpush1.bf16.msra.mxu0 %v913
    %917 = vmatprep.subr.bf16.mxu0 0
    %918 = vmatpush1.bf16.msra.mxu0 0
    %919 = vmatprep.subr.bf16.mxu0 0
    %920 = vmatpush1.bf16.msra.mxu0 0
    %921 = vmatprep.subr.bf16.mxu0 0
    %922 = vmatpush1.bf16.msra.mxu0 0
    %923 = vmatprep.subr.bf16.mxu0 0
    %924 = vmatpush1.bf16.msra.mxu0 0
    %925 = vmatprep.subr.bf16.mxu0 0
    %926 = vmatpush1.bf16.msra.mxu0 0
    %927 = vmatprep.subr.bf16.mxu0 0
    %928 = vmatpush1.bf16.msra.mxu0 0
    %929 = vmatprep.subr.bf16.mxu0 0
    %930 = vmatpush1.bf16.msra.mxu0 0
    %931 = vmatprep.subr.bf16.mxu0 0
    %932 = vmatpush1.bf16.msra.mxu0 0
    %933 = vmatprep.subr.bf16.mxu0 0
    %934 = vmatpush1.bf16.msra.mxu0 0
    %935 = vmatprep.subr.bf16.mxu0 0
    %936 = vmatpush1.bf16.msra.mxu0 0
    %937 = vmatprep.subr.bf16.mxu0 0
    %938 = vmatpush1.bf16.msra.mxu0 0
    %939 = vmatprep.subr.bf16.mxu0 0
    %940 = vmatpush1.bf16.msra.mxu0 0
    %941 = vmatprep.subr.bf16.mxu0 0
    %942 = vmatpush1.bf16.msra.mxu0 0
    %943 = vmatprep.subr.bf16.mxu0 0
    %944 = vmatpush1.bf16.msra.mxu0 0
    %945 = vmatprep.subr.bf16.mxu0 0
    %946 = vmatpush1.bf16.msra.mxu0 0
    %947 = vmatprep.mubr.bf16.mxu0 0
    %948 = vmatmul.mubr.bf16.gmra.mrb[0].mxu0 %v910
    %v949 = vpop.f32.mrb[0].mxu0
    %v950 = vadd.f32 0.0, %v949
    %v951 = vpop.f32.mrb[0].mxu0
    %v952 = vpop.f32.mrb[0].mxu0
    %v953 = vpop.f32.mrb[0].mxu0
    %954 = vdwg.mxu0
    %v955 = vpack.c.bf16 %v950, %v902
    %956 = vrot.lane.b32.xlu0 %v732, 120
    %v957 = vpop.permute.xlu0 %956
    %958 = vrot.lane.b32.xlu0 %v732, 88
    %v959 = vpop.permute.xlu0 %958
    %v961 = vsel %vm737, %v957, 0
    %v964 = vsel %vm737, %v959, 0
    %966 = vmatprep.subr.bf16.mxu0 0
    %967 = vmatpush1.bf16.xpose.msra.mxu0 %v964
    %968 = vmatprep.subr.bf16.mxu0 0
    %969 = vmatpush1.bf16.xpose.msra.mxu0 0
    %970 = vmatprep.subr.bf16.mxu0 0
    %971 = vmatpush1.bf16.xpose.msra.mxu0 0
    %972 = vmatprep.subr.bf16.mxu0 0
    %973 = vmatpush1.bf16.xpose.msra.mxu0 0
    %974 = vmatprep.subr.bf16.mxu0 0
    %975 = vmatpush1.bf16.xpose.msra.mxu0 0
    %976 = vmatprep.subr.bf16.mxu0 0
    %977 = vmatpush1.bf16.xpose.msra.mxu0 0
    %978 = vmatprep.subr.bf16.mxu0 0
    %979 = vmatpush1.bf16.xpose.msra.mxu0 0
    %980 = vmatprep.subr.bf16.mxu0 0
    %981 = vmatpush1.bf16.xpose.msra.mxu0 0
    %982 = vmatprep.subr.bf16.mxu0 0
    %983 = vmatpush1.bf16.xpose.msra.mxu0 0
    %984 = vmatprep.subr.bf16.mxu0 0
    %985 = vmatpush1.bf16.xpose.msra.mxu0 0
    %986 = vmatprep.subr.bf16.mxu0 0
    %987 = vmatpush1.bf16.xpose.msra.mxu0 0
    %988 = vmatprep.subr.bf16.mxu0 0
    %989 = vmatpush1.bf16.xpose.msra.mxu0 0
    %990 = vmatprep.subr.bf16.mxu0 0
    %991 = vmatpush1.bf16.xpose.msra.mxu0 0
    %992 = vmatprep.subr.bf16.mxu0 0
    %993 = vmatpush1.bf16.xpose.msra.mxu0 0
    %994 = vmatprep.subr.bf16.mxu0 0
    %995 = vmatpush1.bf16.xpose.msra.mxu0 0
    %996 = vmatprep.subr.bf16.mxu0 0
    %997 = vmatpush1.bf16.xpose.msra.mxu0 0
    %998 = vmatprep.mubr.bf16.mxu0 0
    %999 = vmatmul.mubr.bf16.gmra.mrb[0].mxu0 %v961
    %v1000 = vpop.f32.mrb[0].mxu0
    %v1001 = vadd.f32 0.0, %v1000
    %v1002 = vpop.f32.mrb[0].mxu0
    %v1003 = vpop.f32.mrb[0].mxu0
    %v1004 = vpop.f32.mrb[0].mxu0
    %1005 = vdwg.mxu0
    %1006 = vrot.lane.b32.xlu0 %v733, 120
    %v1007 = vpop.permute.xlu0 %1006
    %1008 = vrot.lane.b32.xlu0 %v733, 88
    %v1009 = vpop.permute.xlu0 %1008
    %v1011 = vsel %vm737, %v1007, 0
    %v1014 = vsel %vm737, %v1009, 0
    %1016 = vmatprep.subr.bf16.mxu0 0
    %1017 = vmatpush1.bf16.xpose.msra.mxu0 %v1014
    %1018 = vmatprep.subr.bf16.mxu0 0
    %1019 = vmatpush1.bf16.xpose.msra.mxu0 0
    %1020 = vmatprep.subr.bf16.mxu0 0
    %1021 = vmatpush1.bf16.xpose.msra.mxu0 0
    %1022 = vmatprep.subr.bf16.mxu0 0
    %1023 = vmatpush1.bf16.xpose.msra.mxu0 0
    %1024 = vmatprep.subr.bf16.mxu0 0
    %1025 = vmatpush1.bf16.xpose.msra.mxu0 0
    %1026 = vmatprep.subr.bf16.mxu0 0
    %1027 = vmatpush1.bf16.xpose.msra.mxu0 0
    %1028 = vmatprep.subr.bf16.mxu0 0
    %1029 = vmatpush1.bf16.xpose.msra.mxu0 0
    %1030 = vmatprep.subr.bf16.mxu0 0
    %1031 = vmatpush1.bf16.xpose.msra.mxu0 0
    %1032 = vmatprep.subr.bf16.mxu0 0
    %1033 = vmatpush1.bf16.xpose.msra.mxu0 0
    %1034 = vmatprep.subr.bf16.mxu0 0
    %1035 = vmatpush1.bf16.xpose.msra.mxu0 0
    %1036 = vmatprep.subr.bf16.mxu0 0
    %1037 = vmatpush1.bf16.xpose.msra.mxu0 0
    %1038 = vmatprep.subr.bf16.mxu0 0
    %1039 = vmatpush1.bf16.xpose.msra.mxu0 0
    %1040 = vmatprep.subr.bf16.mxu0 0
    %1041 = vmatpush1.bf16.xpose.msra.mxu0 0
    %1042 = vmatprep.subr.bf16.mxu0 0
    %1043 = vmatpush1.bf16.xpose.msra.mxu0 0
    %1044 = vmatprep.subr.bf16.mxu0 0
    %1045 = vmatpush1.bf16.xpose.msra.mxu0 0
    %1046 = vmatprep.subr.bf16.mxu0 0
    %1047 = vmatpush1.bf16.xpose.msra.mxu0 0
    %1048 = vmatprep.mubr.bf16.mxu0 0
    %1049 = vmatmul.mubr.bf16.gmra.mrb[0].mxu0 %v1011
    %v1050 = vpop.f32.mrb[0].mxu0
    %v1051 = vadd.f32 0.0, %v1050
    %v1052 = vpop.f32.mrb[0].mxu0
    %v1053 = vpop.f32.mrb[0].mxu0
    %v1054 = vpop.f32.mrb[0].mxu0
    %1055 = vdwg.mxu0
    %v1056 = vmul.f32 %v1001, 0.35355338
    %v1057 = vmul.f32 %v1051, 0.35355338
    %v1058 = vsel %vm737, %v1056, -inf
    %1059 = vmax.xlane.f32.xlu0 %v1058
    %v1060 = vpop.xlane.xlu0 %1059
    %v1061 = vsel %vm737, %v1057, -inf
    %1062 = vmax.xlane.f32.xlu0 %v1061
    %v1063 = vpop.xlane.xlu0 %1062
    %v1064 = vsub.f32 %v1056, %v1060
    %v1065 = vsub.f32 %v1057, %v1063
    %v1066 = vmul.f32 %v1064, 1.442695
    %v1067 = vpow.pop %v1066
    %v1068 = vmul.f32 %v1065, 1.442695
    %v1069 = vpow.pop %v1068
    %v1070 = vsel %vm737, %v1067, 0.0
    %1071 = vadd.xlane.f32.xlu0 %v1070
    %v1072 = vpop.xlane.xlu0 %1071
    %v1073 = vsel %vm737, %v1069, 0.0
    %1074 = vadd.xlane.f32.xlu0 %v1073
    %v1075 = vpop.xlane.xlu0 %1074
    %v1076 = vrcp.pop %v1072
    %v1077 = vrcp.pop %v1075
    %v1078 = vmul.f32 %v1067, %v1076
    %v1079 = vmul.f32 %v1069, %v1077
    %v1080 = vpack.c.bf16 %v1078, %v1078
    %v1081 = vpack.c.bf16 %v1079, %v1079
    %1082 = vrot.lane.b32.xlu0 %v732, 56
    %v1083 = vpop.permute.xlu0 %1082
    %v1085 = vsel %vm737, %v1080, 0
    %v1088 = vsel %vm422, %v1083, 0
    %1090 = vmatprep.subr.bf16.mxu0 0
    %1091 = vmatpush1.bf16.msra.mxu0 %v1088
    %1092 = vmatprep.subr.bf16.mxu0 0
    %1093 = vmatpush1.bf16.msra.mxu0 0
    %1094 = vmatprep.subr.bf16.mxu0 0
    %1095 = vmatpush1.bf16.msra.mxu0 0
    %1096 = vmatprep.subr.bf16.mxu0 0
    %1097 = vmatpush1.bf16.msra.mxu0 0
    %1098 = vmatprep.subr.bf16.mxu0 0
    %1099 = vmatpush1.bf16.msra.mxu0 0
    %1100 = vmatprep.subr.bf16.mxu0 0
    %1101 = vmatpush1.bf16.msra.mxu0 0
    %1102 = vmatprep.subr.bf16.mxu0 0
    %1103 = vmatpush1.bf16.msra.mxu0 0
    %1104 = vmatprep.subr.bf16.mxu0 0
    %1105 = vmatpush1.bf16.msra.mxu0 0
    %1106 = vmatprep.subr.bf16.mxu0 0
    %1107 = vmatpush1.bf16.msra.mxu0 0
    %1108 = vmatprep.subr.bf16.mxu0 0
    %1109 = vmatpush1.bf16.msra.mxu0 0
    %1110 = vmatprep.subr.bf16.mxu0 0
    %1111 = vmatpush1.bf16.msra.mxu0 0
    %1112 = vmatprep.subr.bf16.mxu0 0
    %1113 = vmatpush1.bf16.msra.mxu0 0
    %1114 = vmatprep.subr.bf16.mxu0 0
    %1115 = vmatpush1.bf16.msra.mxu0 0
    %1116 = vmatprep.subr.bf16.mxu0 0
    %1117 = vmatpush1.bf16.msra.mxu0 0
    %1118 = vmatprep.subr.bf16.mxu0 0
    %1119 = vmatpush1.bf16.msra.mxu0 0
    %1120 = vmatprep.subr.bf16.mxu0 0
    %1121 = vmatpush1.bf16.msra.mxu0 0
    %1122 = vmatprep.mubr.bf16.mxu0 0
    %1123 = vmatmul.mubr.bf16.gmra.mrb[0].mxu0 %v1085
    %v1124 = vpop.f32.mrb[0].mxu0
    %v1125 = vadd.f32 0.0, %v1124
    %v1126 = vpop.f32.mrb[0].mxu0
    %v1127 = vpop.f32.mrb[0].mxu0
    %v1128 = vpop.f32.mrb[0].mxu0
    %1129 = vdwg.mxu0
    %1130 = vrot.lane.b32.xlu0 %v733, 56
    %v1131 = vpop.permute.xlu0 %1130
    %v1133 = vsel %vm737, %v1081, 0
    %v1136 = vsel %vm422, %v1131, 0
    %1138 = vmatprep.subr.bf16.mxu0 0
    %1139 = vmatpush1.bf16.msra.mxu0 %v1136
    %1140 = vmatprep.subr.bf16.mxu0 0
    %1141 = vmatpush1.bf16.msra.mxu0 0
    %1142 = vmatprep.subr.bf16.mxu0 0
    %1143 = vmatpush1.bf16.msra.mxu0 0
    %1144 = vmatprep.subr.bf16.mxu0 0
    %1145 = vmatpush1.bf16.msra.mxu0 0
    %1146 = vmatprep.subr.bf16.mxu0 0
    %1147 = vmatpush1.bf16.msra.mxu0 0
    %1148 = vmatprep.subr.bf16.mxu0 0
    %1149 = vmatpush1.bf16.msra.mxu0 0
    %1150 = vmatprep.subr.bf16.mxu0 0
    %1151 = vmatpush1.bf16.msra.mxu0 0
    %1152 = vmatprep.subr.bf16.mxu0 0
    %1153 = vmatpush1.bf16.msra.mxu0 0
    %1154 = vmatprep.subr.bf16.mxu0 0
    %1155 = vmatpush1.bf16.msra.mxu0 0
    %1156 = vmatprep.subr.bf16.mxu0 0
    %1157 = vmatpush1.bf16.msra.mxu0 0
    %1158 = vmatprep.subr.bf16.mxu0 0
    %1159 = vmatpush1.bf16.msra.mxu0 0
    %1160 = vmatprep.subr.bf16.mxu0 0
    %1161 = vmatpush1.bf16.msra.mxu0 0
    %1162 = vmatprep.subr.bf16.mxu0 0
    %1163 = vmatpush1.bf16.msra.mxu0 0
    %1164 = vmatprep.subr.bf16.mxu0 0
    %1165 = vmatpush1.bf16.msra.mxu0 0
    %1166 = vmatprep.subr.bf16.mxu0 0
    %1167 = vmatpush1.bf16.msra.mxu0 0
    %1168 = vmatprep.subr.bf16.mxu0 0
    %1169 = vmatpush1.bf16.msra.mxu0 0
    %1170 = vmatprep.mubr.bf16.mxu0 0
    %1171 = vmatmul.mubr.bf16.gmra.mrb[0].mxu0 %v1133
    %v1172 = vpop.f32.mrb[0].mxu0
    %v1173 = vadd.f32 0.0, %v1172
    %v1174 = vpop.f32.mrb[0].mxu0
    %v1175 = vpop.f32.mrb[0].mxu0
    %v1176 = vpop.f32.mrb[0].mxu0
    %1177 = vdwg.mxu0
    %v1178 = vpack.c.bf16 %v1173, %v1125
    %v1180 = vsel %vm737, %v1178, 0
    %v1183 = vsel %vm422, %v729, 0
    %1185 = vmatprep.subr.bf16.mxu0 0
    %1186 = vmatpush1.bf16.msra.mxu0 %v1183
    %1187 = vmatprep.subr.bf16.mxu0 0
    %1188 = vmatpush1.bf16.msra.mxu0 0
    %1189 = vmatprep.subr.bf16.mxu0 0
    %1190 = vmatpush1.bf16.msra.mxu0 0
    %1191 = vmatprep.subr.bf16.mxu0 0
    %1192 = vmatpush1.bf16.msra.mxu0 0
    %1193 = vmatprep.subr.bf16.mxu0 0
    %1194 = vmatpush1.bf16.msra.mxu0 0
    %1195 = vmatprep.subr.bf16.mxu0 0
    %1196 = vmatpush1.bf16.msra.mxu0 0
    %1197 = vmatprep.subr.bf16.mxu0 0
    %1198 = vmatpush1.bf16.msra.mxu0 0
    %1199 = vmatprep.subr.bf16.mxu0 0
    %1200 = vmatpush1.bf16.msra.mxu0 0
    %1201 = vmatprep.subr.bf16.mxu0 0
    %1202 = vmatpush1.bf16.msra.mxu0 0
    %1203 = vmatprep.subr.bf16.mxu0 0
    %1204 = vmatpush1.bf16.msra.mxu0 0
    %1205 = vmatprep.subr.bf16.mxu0 0
    %1206 = vmatpush1.bf16.msra.mxu0 0
    %1207 = vmatprep.subr.bf16.mxu0 0
    %1208 = vmatpush1.bf16.msra.mxu0 0
    %1209 = vmatprep.subr.bf16.mxu0 0
    %1210 = vmatpush1.bf16.msra.mxu0 0
    %1211 = vmatprep.subr.bf16.mxu0 0
    %1212 = vmatpush1.bf16.msra.mxu0 0
    %1213 = vmatprep.subr.bf16.mxu0 0
    %1214 = vmatpush1.bf16.msra.mxu0 0
    %1215 = vmatprep.subr.bf16.mxu0 0
    %1216 = vmatpush1.bf16.msra.mxu0 0
    %1217 = vmatprep.mubr.bf16.mxu0 0
    %1218 = vmatmul.mubr.bf16.gmra.mrb[0].mxu0 %v1180
    %v1219 = vpop.f32.mrb[0].mxu0
    %v1220 = vadd.f32 0.0, %v1219
    %v1221 = vpop.f32.mrb[0].mxu0
    %v1222 = vpop.f32.mrb[0].mxu0
    %v1223 = vadd.f32 0.0, %v1222
    %v1224 = vpop.f32.mrb[0].mxu0
    %1225 = vdwg.mxu0
    %v1227 = vsel %vm737, %v955, 0
    %v1230 = vsel %vm422, %v728, 0
    %1232 = vmatprep.subr.bf16.mxu0 0
    %1233 = vmatpush1.bf16.msra.mxu0 %v1230
    %1234 = vmatprep.subr.bf16.mxu0 0
    %1235 = vmatpush1.bf16.msra.mxu0 0
    %1236 = vmatprep.subr.bf16.mxu0 0
    %1237 = vmatpush1.bf16.msra.mxu0 0
    %1238 = vmatprep.subr.bf16.mxu0 0
    %1239 = vmatpush1.bf16.msra.mxu0 0
    %1240 = vmatprep.subr.bf16.mxu0 0
    %1241 = vmatpush1.bf16.msra.mxu0 0
    %1242 = vmatprep.subr.bf16.mxu0 0
    %1243 = vmatpush1.bf16.msra.mxu0 0
    %1244 = vmatprep.subr.bf16.mxu0 0
    %1245 = vmatpush1.bf16.msra.mxu0 0
    %1246 = vmatprep.subr.bf16.mxu0 0
    %1247 = vmatpush1.bf16.msra.mxu0 0
    %1248 = vmatprep.subr.bf16.mxu0 0
    %1249 = vmatpush1.bf16.msra.mxu0 0
    %1250 = vmatprep.subr.bf16.mxu0 0
    %1251 = vmatpush1.bf16.msra.mxu0 0
    %1252 = vmatprep.subr.bf16.mxu0 0
    %1253 = vmatpush1.bf16.msra.mxu0 0
    %1254 = vmatprep.subr.bf16.mxu0 0
    %1255 = vmatpush1.bf16.msra.mxu0 0
    %1256 = vmatprep.subr.bf16.mxu0 0
    %1257 = vmatpush1.bf16.msra.mxu0 0
    %1258 = vmatprep.subr.bf16.mxu0 0
    %1259 = vmatpush1.bf16.msra.mxu0 0
    %1260 = vmatprep.subr.bf16.mxu0 0
    %1261 = vmatpush1.bf16.msra.mxu0 0
    %1262 = vmatprep.subr.bf16.mxu0 0
    %1263 = vmatpush1.bf16.msra.mxu0 0
    %1264 = vmatprep.mubr.bf16.mxu0 0
    %1265 = vmatmul.mubr.bf16.gmra.mrb[0].mxu0 %v1227
    %v1266 = vpop.f32.mrb[0].mxu0
    %v1267 = vadd.f32 %v1220, %v1266
    %v1268 = vpop.f32.mrb[0].mxu0
    %v1269 = vpop.f32.mrb[0].mxu0
    %v1270 = vadd.f32 %v1223, %v1269
    %v1271 = vpop.f32.mrb[0].mxu0
    %1272 = vdwg.mxu0
    %1273 = vrot.lane.b32.xlu0 %v732, 112
    %v1274 = vpop.permute.xlu0 %1273
    %1275 = vrot.lane.b32.xlu0 %v732, 80
    %v1276 = vpop.permute.xlu0 %1275
    %v1278 = vsel %vm737, %v1274, 0
    %v1281 = vsel %vm737, %v1276, 0
    %1283 = vmatprep.subr.bf16.mxu0 0
    %1284 = vmatpush1.bf16.xpose.msra.mxu0 %v1281
    %1285 = vmatprep.subr.bf16.mxu0 0
    %1286 = vmatpush1.bf16.xpose.msra.mxu0 0
    %1287 = vmatprep.subr.bf16.mxu0 0
    %1288 = vmatpush1.bf16.xpose.msra.mxu0 0
    %1289 = vmatprep.subr.bf16.mxu0 0
    %1290 = vmatpush1.bf16.xpose.msra.mxu0 0
    %1291 = vmatprep.subr.bf16.mxu0 0
    %1292 = vmatpush1.bf16.xpose.msra.mxu0 0
    %1293 = vmatprep.subr.bf16.mxu0 0
    %1294 = vmatpush1.bf16.xpose.msra.mxu0 0
    %1295 = vmatprep.subr.bf16.mxu0 0
    %1296 = vmatpush1.bf16.xpose.msra.mxu0 0
    %1297 = vmatprep.subr.bf16.mxu0 0
    %1298 = vmatpush1.bf16.xpose.msra.mxu0 0
    %1299 = vmatprep.subr.bf16.mxu0 0
    %1300 = vmatpush1.bf16.xpose.msra.mxu0 0
    %1301 = vmatprep.subr.bf16.mxu0 0
    %1302 = vmatpush1.bf16.xpose.msra.mxu0 0
    %1303 = vmatprep.subr.bf16.mxu0 0
    %1304 = vmatpush1.bf16.xpose.msra.mxu0 0
    %1305 = vmatprep.subr.bf16.mxu0 0
    %1306 = vmatpush1.bf16.xpose.msra.mxu0 0
    %1307 = vmatprep.subr.bf16.mxu0 0
    %1308 = vmatpush1.bf16.xpose.msra.mxu0 0
    %1309 = vmatprep.subr.bf16.mxu0 0
    %1310 = vmatpush1.bf16.xpose.msra.mxu0 0
    %1311 = vmatprep.subr.bf16.mxu0 0
    %1312 = vmatpush1.bf16.xpose.msra.mxu0 0
    %1313 = vmatprep.subr.bf16.mxu0 0
    %1314 = vmatpush1.bf16.xpose.msra.mxu0 0
    %1315 = vmatprep.mubr.bf16.mxu0 0
    %1316 = vmatmul.mubr.bf16.gmra.mrb[0].mxu0 %v1278
    %v1317 = vpop.f32.mrb[0].mxu0
    %v1318 = vadd.f32 0.0, %v1317
    %v1319 = vpop.f32.mrb[0].mxu0
    %v1320 = vpop.f32.mrb[0].mxu0
    %v1321 = vpop.f32.mrb[0].mxu0
    %1322 = vdwg.mxu0
    %1323 = vrot.lane.b32.xlu0 %v733, 112
    %v1324 = vpop.permute.xlu0 %1323
    %1325 = vrot.lane.b32.xlu0 %v733, 80
    %v1326 = vpop.permute.xlu0 %1325
    %v1328 = vsel %vm737, %v1324, 0
    %v1331 = vsel %vm737, %v1326, 0
    %1333 = vmatprep.subr.bf16.mxu0 0
    %1334 = vmatpush1.bf16.xpose.msra.mxu0 %v1331
    %1335 = vmatprep.subr.bf16.mxu0 0
    %1336 = vmatpush1.bf16.xpose.msra.mxu0 0
    %1337 = vmatprep.subr.bf16.mxu0 0
    %1338 = vmatpush1.bf16.xpose.msra.mxu0 0
    %1339 = vmatprep.subr.bf16.mxu0 0
    %1340 = vmatpush1.bf16.xpose.msra.mxu0 0
    %1341 = vmatprep.subr.bf16.mxu0 0
    %1342 = vmatpush1.bf16.xpose.msra.mxu0 0
    %1343 = vmatprep.subr.bf16.mxu0 0
    %1344 = vmatpush1.bf16.xpose.msra.mxu0 0
    %1345 = vmatprep.subr.bf16.mxu0 0
    %1346 = vmatpush1.bf16.xpose.msra.mxu0 0
    %1347 = vmatprep.subr.bf16.mxu0 0
    %1348 = vmatpush1.bf16.xpose.msra.mxu0 0
    %1349 = vmatprep.subr.bf16.mxu0 0
    %1350 = vmatpush1.bf16.xpose.msra.mxu0 0
    %1351 = vmatprep.subr.bf16.mxu0 0
    %1352 = vmatpush1.bf16.xpose.msra.mxu0 0
    %1353 = vmatprep.subr.bf16.mxu0 0
    %1354 = vmatpush1.bf16.xpose.msra.mxu0 0
    %1355 = vmatprep.subr.bf16.mxu0 0
    %1356 = vmatpush1.bf16.xpose.msra.mxu0 0
    %1357 = vmatprep.subr.bf16.mxu0 0
    %1358 = vmatpush1.bf16.xpose.msra.mxu0 0
    %1359 = vmatprep.subr.bf16.mxu0 0
    %1360 = vmatpush1.bf16.xpose.msra.mxu0 0
    %1361 = vmatprep.subr.bf16.mxu0 0
    %1362 = vmatpush1.bf16.xpose.msra.mxu0 0
    %1363 = vmatprep.subr.bf16.mxu0 0
    %1364 = vmatpush1.bf16.xpose.msra.mxu0 0
    %1365 = vmatprep.mubr.bf16.mxu0 0
    %1366 = vmatmul.mubr.bf16.gmra.mrb[0].mxu0 %v1328
    %v1367 = vpop.f32.mrb[0].mxu0
    %v1368 = vadd.f32 0.0, %v1367
    %v1369 = vpop.f32.mrb[0].mxu0
    %v1370 = vpop.f32.mrb[0].mxu0
    %v1371 = vpop.f32.mrb[0].mxu0
    %1372 = vdwg.mxu0
    %v1373 = vmul.f32 %v1318, 0.35355338
    %v1374 = vmul.f32 %v1368, 0.35355338
    %v1375 = vsel %vm737, %v1373, -inf
    %1376 = vmax.xlane.f32.xlu0 %v1375
    %v1377 = vpop.xlane.xlu0 %1376
    %v1378 = vsel %vm737, %v1374, -inf
    %1379 = vmax.xlane.f32.xlu0 %v1378
    %v1380 = vpop.xlane.xlu0 %1379
    %v1381 = vsub.f32 %v1373, %v1377
    %v1382 = vsub.f32 %v1374, %v1380
    %v1383 = vmul.f32 %v1381, 1.442695
    %v1384 = vpow.pop %v1383
    %v1385 = vmul.f32 %v1382, 1.442695
    %v1386 = vpow.pop %v1385
    %v1387 = vsel %vm737, %v1384, 0.0
    %1388 = vadd.xlane.f32.xlu0 %v1387
    %v1389 = vpop.xlane.xlu0 %1388
    %v1390 = vsel %vm737, %v1386, 0.0
    %1391 = vadd.xlane.f32.xlu0 %v1390
    %v1392 = vpop.xlane.xlu0 %1391
    %v1393 = vrcp.pop %v1389
    %v1394 = vrcp.pop %v1392
    %v1395 = vmul.f32 %v1384, %v1393
    %v1396 = vmul.f32 %v1386, %v1394
    %v1397 = vpack.c.bf16 %v1395, %v1395
    %v1398 = vpack.c.bf16 %v1396, %v1396
    %1399 = vrot.lane.b32.xlu0 %v732, 48
    %v1400 = vpop.permute.xlu0 %1399
    %v1402 = vsel %vm737, %v1397, 0
    %v1405 = vsel %vm422, %v1400, 0
    %1407 = vmatprep.subr.bf16.mxu0 0
    %1408 = vmatpush1.bf16.msra.mxu0 %v1405
    %1409 = vmatprep.subr.bf16.mxu0 0
    %1410 = vmatpush1.bf16.msra.mxu0 0
    %1411 = vmatprep.subr.bf16.mxu0 0
    %1412 = vmatpush1.bf16.msra.mxu0 0
    %1413 = vmatprep.subr.bf16.mxu0 0
    %1414 = vmatpush1.bf16.msra.mxu0 0
    %1415 = vmatprep.subr.bf16.mxu0 0
    %1416 = vmatpush1.bf16.msra.mxu0 0
    %1417 = vmatprep.subr.bf16.mxu0 0
    %1418 = vmatpush1.bf16.msra.mxu0 0
    %1419 = vmatprep.subr.bf16.mxu0 0
    %1420 = vmatpush1.bf16.msra.mxu0 0
    %1421 = vmatprep.subr.bf16.mxu0 0
    %1422 = vmatpush1.bf16.msra.mxu0 0
    %1423 = vmatprep.subr.bf16.mxu0 0
    %1424 = vmatpush1.bf16.msra.mxu0 0
    %1425 = vmatprep.subr.bf16.mxu0 0
    %1426 = vmatpush1.bf16.msra.mxu0 0
    %1427 = vmatprep.subr.bf16.mxu0 0
    %1428 = vmatpush1.bf16.msra.mxu0 0
    %1429 = vmatprep.subr.bf16.mxu0 0
    %1430 = vmatpush1.bf16.msra.mxu0 0
    %1431 = vmatprep.subr.bf16.mxu0 0
    %1432 = vmatpush1.bf16.msra.mxu0 0
    %1433 = vmatprep.subr.bf16.mxu0 0
    %1434 = vmatpush1.bf16.msra.mxu0 0
    %1435 = vmatprep.subr.bf16.mxu0 0
    %1436 = vmatpush1.bf16.msra.mxu0 0
    %1437 = vmatprep.subr.bf16.mxu0 0
    %1438 = vmatpush1.bf16.msra.mxu0 0
    %1439 = vmatprep.mubr.bf16.mxu0 0
    %1440 = vmatmul.mubr.bf16.gmra.mrb[0].mxu0 %v1402
    %v1441 = vpop.f32.mrb[0].mxu0
    %v1442 = vadd.f32 0.0, %v1441
    %v1443 = vpop.f32.mrb[0].mxu0
    %v1444 = vpop.f32.mrb[0].mxu0
    %v1445 = vpop.f32.mrb[0].mxu0
    %1446 = vdwg.mxu0
    %1447 = vrot.lane.b32.xlu0 %v733, 48
    %v1448 = vpop.permute.xlu0 %1447
    %v1450 = vsel %vm737, %v1398, 0
    %v1453 = vsel %vm422, %v1448, 0
    %1455 = vmatprep.subr.bf16.mxu0 0
    %1456 = vmatpush1.bf16.msra.mxu0 %v1453
    %1457 = vmatprep.subr.bf16.mxu0 0
    %1458 = vmatpush1.bf16.msra.mxu0 0
    %1459 = vmatprep.subr.bf16.mxu0 0
    %1460 = vmatpush1.bf16.msra.mxu0 0
    %1461 = vmatprep.subr.bf16.mxu0 0
    %1462 = vmatpush1.bf16.msra.mxu0 0
    %1463 = vmatprep.subr.bf16.mxu0 0
    %1464 = vmatpush1.bf16.msra.mxu0 0
    %1465 = vmatprep.subr.bf16.mxu0 0
    %1466 = vmatpush1.bf16.msra.mxu0 0
    %1467 = vmatprep.subr.bf16.mxu0 0
    %1468 = vmatpush1.bf16.msra.mxu0 0
    %1469 = vmatprep.subr.bf16.mxu0 0
    %1470 = vmatpush1.bf16.msra.mxu0 0
    %1471 = vmatprep.subr.bf16.mxu0 0
    %1472 = vmatpush1.bf16.msra.mxu0 0
    %1473 = vmatprep.subr.bf16.mxu0 0
    %1474 = vmatpush1.bf16.msra.mxu0 0
    %1475 = vmatprep.subr.bf16.mxu0 0
    %1476 = vmatpush1.bf16.msra.mxu0 0
    %1477 = vmatprep.subr.bf16.mxu0 0
    %1478 = vmatpush1.bf16.msra.mxu0 0
    %1479 = vmatprep.subr.bf16.mxu0 0
    %1480 = vmatpush1.bf16.msra.mxu0 0
    %1481 = vmatprep.subr.bf16.mxu0 0
    %1482 = vmatpush1.bf16.msra.mxu0 0
    %1483 = vmatprep.subr.bf16.mxu0 0
    %1484 = vmatpush1.bf16.msra.mxu0 0
    %1485 = vmatprep.subr.bf16.mxu0 0
    %1486 = vmatpush1.bf16.msra.mxu0 0
    %1487 = vmatprep.mubr.bf16.mxu0 0
    %1488 = vmatmul.mubr.bf16.gmra.mrb[0].mxu0 %v1450
    %v1489 = vpop.f32.mrb[0].mxu0
    %v1490 = vadd.f32 0.0, %v1489
    %v1491 = vpop.f32.mrb[0].mxu0
    %v1492 = vpop.f32.mrb[0].mxu0
    %v1493 = vpop.f32.mrb[0].mxu0
    %1494 = vdwg.mxu0
    %v1495 = vpack.c.bf16 %v1490, %v1442
    %v1497 = vsel %vm737, %v1495, 0
    %v1500 = vsel %vm422, %v730, 0
    %1502 = vmatprep.subr.bf16.mxu0 0
    %1503 = vmatpush1.bf16.msra.mxu0 %v1500
    %1504 = vmatprep.subr.bf16.mxu0 0
    %1505 = vmatpush1.bf16.msra.mxu0 0
    %1506 = vmatprep.subr.bf16.mxu0 0
    %1507 = vmatpush1.bf16.msra.mxu0 0
    %1508 = vmatprep.subr.bf16.mxu0 0
    %1509 = vmatpush1.bf16.msra.mxu0 0
    %1510 = vmatprep.subr.bf16.mxu0 0
    %1511 = vmatpush1.bf16.msra.mxu0 0
    %1512 = vmatprep.subr.bf16.mxu0 0
    %1513 = vmatpush1.bf16.msra.mxu0 0
    %1514 = vmatprep.subr.bf16.mxu0 0
    %1515 = vmatpush1.bf16.msra.mxu0 0
    %1516 = vmatprep.subr.bf16.mxu0 0
    %1517 = vmatpush1.bf16.msra.mxu0 0
    %1518 = vmatprep.subr.bf16.mxu0 0
    %1519 = vmatpush1.bf16.msra.mxu0 0
    %1520 = vmatprep.subr.bf16.mxu0 0
    %1521 = vmatpush1.bf16.msra.mxu0 0
    %1522 = vmatprep.subr.bf16.mxu0 0
    %1523 = vmatpush1.bf16.msra.mxu0 0
    %1524 = vmatprep.subr.bf16.mxu0 0
    %1525 = vmatpush1.bf16.msra.mxu0 0
    %1526 = vmatprep.subr.bf16.mxu0 0
    %1527 = vmatpush1.bf16.msra.mxu0 0
    %1528 = vmatprep.subr.bf16.mxu0 0
    %1529 = vmatpush1.bf16.msra.mxu0 0
    %1530 = vmatprep.subr.bf16.mxu0 0
    %1531 = vmatpush1.bf16.msra.mxu0 0
    %1532 = vmatprep.subr.bf16.mxu0 0
    %1533 = vmatpush1.bf16.msra.mxu0 0
    %1534 = vmatprep.mubr.bf16.mxu0 0
    %1535 = vmatmul.mubr.bf16.gmra.mrb[0].mxu0 %v1497
    %v1536 = vpop.f32.mrb[0].mxu0
    %v1537 = vadd.f32 0.0, %v1536
    %v1538 = vpop.f32.mrb[0].mxu0
    %v1539 = vpop.f32.mrb[0].mxu0
    %v1540 = vadd.f32 0.0, %v1539
    %v1541 = vpop.f32.mrb[0].mxu0
    %1542 = vdwg.mxu0
    %v1543 = vadd.f32 %v1267, %v1537
    %v1544 = vadd.f32 %v1270, %v1540
    %1545 = vrot.lane.b32.xlu0 %v732, 104
    %v1546 = vpop.permute.xlu0 %1545
    %1547 = vrot.lane.b32.xlu0 %v732, 72
    %v1548 = vpop.permute.xlu0 %1547
    %v1550 = vsel %vm737, %v1546, 0
    %v1553 = vsel %vm737, %v1548, 0
    %1555 = vmatprep.subr.bf16.mxu0 0
    %1556 = vmatpush1.bf16.xpose.msra.mxu0 %v1553
    %1557 = vmatprep.subr.bf16.mxu0 0
    %1558 = vmatpush1.bf16.xpose.msra.mxu0 0
    %1559 = vmatprep.subr.bf16.mxu0 0
    %1560 = vmatpush1.bf16.xpose.msra.mxu0 0
    %1561 = vmatprep.subr.bf16.mxu0 0
    %1562 = vmatpush1.bf16.xpose.msra.mxu0 0
    %1563 = vmatprep.subr.bf16.mxu0 0
    %1564 = vmatpush1.bf16.xpose.msra.mxu0 0
    %1565 = vmatprep.subr.bf16.mxu0 0
    %1566 = vmatpush1.bf16.xpose.msra.mxu0 0
    %1567 = vmatprep.subr.bf16.mxu0 0
    %1568 = vmatpush1.bf16.xpose.msra.mxu0 0
    %1569 = vmatprep.subr.bf16.mxu0 0
    %1570 = vmatpush1.bf16.xpose.msra.mxu0 0
    %1571 = vmatprep.subr.bf16.mxu0 0
    %1572 = vmatpush1.bf16.xpose.msra.mxu0 0
    %1573 = vmatprep.subr.bf16.mxu0 0
    %1574 = vmatpush1.bf16.xpose.msra.mxu0 0
    %1575 = vmatprep.subr.bf16.mxu0 0
    %1576 = vmatpush1.bf16.xpose.msra.mxu0 0
    %1577 = vmatprep.subr.bf16.mxu0 0
    %1578 = vmatpush1.bf16.xpose.msra.mxu0 0
    %1579 = vmatprep.subr.bf16.mxu0 0
    %1580 = vmatpush1.bf16.xpose.msra.mxu0 0
    %1581 = vmatprep.subr.bf16.mxu0 0
    %1582 = vmatpush1.bf16.xpose.msra.mxu0 0
    %1583 = vmatprep.subr.bf16.mxu0 0
    %1584 = vmatpush1.bf16.xpose.msra.mxu0 0
    %1585 = vmatprep.subr.bf16.mxu0 0
    %1586 = vmatpush1.bf16.xpose.msra.mxu0 0
    %1587 = vmatprep.mubr.bf16.mxu0 0
    %1588 = vmatmul.mubr.bf16.gmra.mrb[0].mxu0 %v1550
    %v1589 = vpop.f32.mrb[0].mxu0
    %v1590 = vadd.f32 0.0, %v1589
    %v1591 = vpop.f32.mrb[0].mxu0
    %v1592 = vpop.f32.mrb[0].mxu0
    %v1593 = vpop.f32.mrb[0].mxu0
    %1594 = vdwg.mxu0
    %1595 = vrot.lane.b32.xlu0 %v733, 104
    %v1596 = vpop.permute.xlu0 %1595
    %1597 = vrot.lane.b32.xlu0 %v733, 72
    %v1598 = vpop.permute.xlu0 %1597
    %v1600 = vsel %vm737, %v1596, 0
    %v1603 = vsel %vm737, %v1598, 0
    %1605 = vmatprep.subr.bf16.mxu0 0
    %1606 = vmatpush1.bf16.xpose.msra.mxu0 %v1603
    %1607 = vmatprep.subr.bf16.mxu0 0
    %1608 = vmatpush1.bf16.xpose.msra.mxu0 0
    %1609 = vmatprep.subr.bf16.mxu0 0
    %1610 = vmatpush1.bf16.xpose.msra.mxu0 0
    %1611 = vmatprep.subr.bf16.mxu0 0
    %1612 = vmatpush1.bf16.xpose.msra.mxu0 0
    %1613 = vmatprep.subr.bf16.mxu0 0
    %1614 = vmatpush1.bf16.xpose.msra.mxu0 0
    %1615 = vmatprep.subr.bf16.mxu0 0
    %1616 = vmatpush1.bf16.xpose.msra.mxu0 0
    %1617 = vmatprep.subr.bf16.mxu0 0
    %1618 = vmatpush1.bf16.xpose.msra.mxu0 0
    %1619 = vmatprep.subr.bf16.mxu0 0
    %1620 = vmatpush1.bf16.xpose.msra.mxu0 0
    %1621 = vmatprep.subr.bf16.mxu0 0
    %1622 = vmatpush1.bf16.xpose.msra.mxu0 0
    %1623 = vmatprep.subr.bf16.mxu0 0
    %1624 = vmatpush1.bf16.xpose.msra.mxu0 0
    %1625 = vmatprep.subr.bf16.mxu0 0
    %1626 = vmatpush1.bf16.xpose.msra.mxu0 0
    %1627 = vmatprep.subr.bf16.mxu0 0
    %1628 = vmatpush1.bf16.xpose.msra.mxu0 0
    %1629 = vmatprep.subr.bf16.mxu0 0
    %1630 = vmatpush1.bf16.xpose.msra.mxu0 0
    %1631 = vmatprep.subr.bf16.mxu0 0
    %1632 = vmatpush1.bf16.xpose.msra.mxu0 0
    %1633 = vmatprep.subr.bf16.mxu0 0
    %1634 = vmatpush1.bf16.xpose.msra.mxu0 0
    %1635 = vmatprep.subr.bf16.mxu0 0
    %1636 = vmatpush1.bf16.xpose.msra.mxu0 0
    %1637 = vmatprep.mubr.bf16.mxu0 0
    %1638 = vmatmul.mubr.bf16.gmra.mrb[0].mxu0 %v1600
    %v1639 = vpop.f32.mrb[0].mxu0
    %v1640 = vadd.f32 0.0, %v1639
    %v1641 = vpop.f32.mrb[0].mxu0
    %v1642 = vpop.f32.mrb[0].mxu0
    %v1643 = vpop.f32.mrb[0].mxu0
    %1644 = vdwg.mxu0
    %v1645 = vmul.f32 %v1590, 0.35355338
    %v1646 = vmul.f32 %v1640, 0.35355338
    %v1647 = vsel %vm737, %v1645, -inf
    %1648 = vmax.xlane.f32.xlu0 %v1647
    %v1649 = vpop.xlane.xlu0 %1648
    %v1650 = vsel %vm737, %v1646, -inf
    %1651 = vmax.xlane.f32.xlu0 %v1650
    %v1652 = vpop.xlane.xlu0 %1651
    %v1653 = vsub.f32 %v1645, %v1649
    %v1654 = vsub.f32 %v1646, %v1652
    %v1655 = vmul.f32 %v1653, 1.442695
    %v1656 = vpow.pop %v1655
    %v1657 = vmul.f32 %v1654, 1.442695
    %v1658 = vpow.pop %v1657
    %v1659 = vsel %vm737, %v1656, 0.0
    %1660 = vadd.xlane.f32.xlu0 %v1659
    %v1661 = vpop.xlane.xlu0 %1660
    %v1662 = vsel %vm737, %v1658, 0.0
    %1663 = vadd.xlane.f32.xlu0 %v1662
    %v1664 = vpop.xlane.xlu0 %1663
    %v1665 = vrcp.pop %v1661
    %v1666 = vrcp.pop %v1664
    %v1667 = vmul.f32 %v1656, %v1665
    %v1668 = vmul.f32 %v1658, %v1666
    %v1669 = vpack.c.bf16 %v1667, %v1667
    %v1670 = vpack.c.bf16 %v1668, %v1668
    %1671 = vrot.lane.b32.xlu0 %v732, 40
    %v1672 = vpop.permute.xlu0 %1671
    %v1674 = vsel %vm737, %v1669, 0
    %v1677 = vsel %vm422, %v1672, 0
    %1679 = vmatprep.subr.bf16.mxu0 0
    %1680 = vmatpush1.bf16.msra.mxu0 %v1677
    %1681 = vmatprep.subr.bf16.mxu0 0
    %1682 = vmatpush1.bf16.msra.mxu0 0
    %1683 = vmatprep.subr.bf16.mxu0 0
    %1684 = vmatpush1.bf16.msra.mxu0 0
    %1685 = vmatprep.subr.bf16.mxu0 0
    %1686 = vmatpush1.bf16.msra.mxu0 0
    %1687 = vmatprep.subr.bf16.mxu0 0
    %1688 = vmatpush1.bf16.msra.mxu0 0
    %1689 = vmatprep.subr.bf16.mxu0 0
    %1690 = vmatpush1.bf16.msra.mxu0 0
    %1691 = vmatprep.subr.bf16.mxu0 0
    %1692 = vmatpush1.bf16.msra.mxu0 0
    %1693 = vmatprep.subr.bf16.mxu0 0
    %1694 = vmatpush1.bf16.msra.mxu0 0
    %1695 = vmatprep.subr.bf16.mxu0 0
    %1696 = vmatpush1.bf16.msra.mxu0 0
    %1697 = vmatprep.subr.bf16.mxu0 0
    %1698 = vmatpush1.bf16.msra.mxu0 0
    %1699 = vmatprep.subr.bf16.mxu0 0
    %1700 = vmatpush1.bf16.msra.mxu0 0
    %1701 = vmatprep.subr.bf16.mxu0 0
    %1702 = vmatpush1.bf16.msra.mxu0 0
    %1703 = vmatprep.subr.bf16.mxu0 0
    %1704 = vmatpush1.bf16.msra.mxu0 0
    %1705 = vmatprep.subr.bf16.mxu0 0
    %1706 = vmatpush1.bf16.msra.mxu0 0
    %1707 = vmatprep.subr.bf16.mxu0 0
    %1708 = vmatpush1.bf16.msra.mxu0 0
    %1709 = vmatprep.subr.bf16.mxu0 0
    %1710 = vmatpush1.bf16.msra.mxu0 0
    %1711 = vmatprep.mubr.bf16.mxu0 0
    %1712 = vmatmul.mubr.bf16.gmra.mrb[0].mxu0 %v1674
    %v1713 = vpop.f32.mrb[0].mxu0
    %v1714 = vadd.f32 0.0, %v1713
    %v1715 = vpop.f32.mrb[0].mxu0
    %v1716 = vpop.f32.mrb[0].mxu0
    %v1717 = vpop.f32.mrb[0].mxu0
    %1718 = vdwg.mxu0
    %1719 = vrot.lane.b32.xlu0 %v733, 40
    %v1720 = vpop.permute.xlu0 %1719
    %v1722 = vsel %vm737, %v1670, 0
    %v1725 = vsel %vm422, %v1720, 0
    %1727 = vmatprep.subr.bf16.mxu0 0
    %1728 = vmatpush1.bf16.msra.mxu0 %v1725
    %1729 = vmatprep.subr.bf16.mxu0 0
    %1730 = vmatpush1.bf16.msra.mxu0 0
    %1731 = vmatprep.subr.bf16.mxu0 0
    %1732 = vmatpush1.bf16.msra.mxu0 0
    %1733 = vmatprep.subr.bf16.mxu0 0
    %1734 = vmatpush1.bf16.msra.mxu0 0
    %1735 = vmatprep.subr.bf16.mxu0 0
    %1736 = vmatpush1.bf16.msra.mxu0 0
    %1737 = vmatprep.subr.bf16.mxu0 0
    %1738 = vmatpush1.bf16.msra.mxu0 0
    %1739 = vmatprep.subr.bf16.mxu0 0
    %1740 = vmatpush1.bf16.msra.mxu0 0
    %1741 = vmatprep.subr.bf16.mxu0 0
    %1742 = vmatpush1.bf16.msra.mxu0 0
    %1743 = vmatprep.subr.bf16.mxu0 0
    %1744 = vmatpush1.bf16.msra.mxu0 0
    %1745 = vmatprep.subr.bf16.mxu0 0
    %1746 = vmatpush1.bf16.msra.mxu0 0
    %1747 = vmatprep.subr.bf16.mxu0 0
    %1748 = vmatpush1.bf16.msra.mxu0 0
    %1749 = vmatprep.subr.bf16.mxu0 0
    %1750 = vmatpush1.bf16.msra.mxu0 0
    %1751 = vmatprep.subr.bf16.mxu0 0
    %1752 = vmatpush1.bf16.msra.mxu0 0
    %1753 = vmatprep.subr.bf16.mxu0 0
    %1754 = vmatpush1.bf16.msra.mxu0 0
    %1755 = vmatprep.subr.bf16.mxu0 0
    %1756 = vmatpush1.bf16.msra.mxu0 0
    %1757 = vmatprep.subr.bf16.mxu0 0
    %1758 = vmatpush1.bf16.msra.mxu0 0
    %1759 = vmatprep.mubr.bf16.mxu0 0
    %1760 = vmatmul.mubr.bf16.gmra.mrb[0].mxu0 %v1722
    %v1761 = vpop.f32.mrb[0].mxu0
    %v1762 = vadd.f32 0.0, %v1761
    %v1763 = vpop.f32.mrb[0].mxu0
    %v1764 = vpop.f32.mrb[0].mxu0
    %v1765 = vpop.f32.mrb[0].mxu0
    %1766 = vdwg.mxu0
    %v1767 = vpack.c.bf16 %v1762, %v1714
    %v1769 = vsel %vm737, %v1767, 0
    %v1772 = vsel %vm422, %v731, 0
    %1774 = vmatprep.subr.bf16.mxu0 0
    %1775 = vmatpush1.bf16.msra.mxu0 %v1772
    %1776 = vmatprep.subr.bf16.mxu0 0
    %1777 = vmatpush1.bf16.msra.mxu0 0
    %1778 = vmatprep.subr.bf16.mxu0 0
    %1779 = vmatpush1.bf16.msra.mxu0 0
    %1780 = vmatprep.subr.bf16.mxu0 0
    %1781 = vmatpush1.bf16.msra.mxu0 0
    %1782 = vmatprep.subr.bf16.mxu0 0
    %1783 = vmatpush1.bf16.msra.mxu0 0
    %1784 = vmatprep.subr.bf16.mxu0 0
    %1785 = vmatpush1.bf16.msra.mxu0 0
    %1786 = vmatprep.subr.bf16.mxu0 0
    %1787 = vmatpush1.bf16.msra.mxu0 0
    %1788 = vmatprep.subr.bf16.mxu0 0
    %1789 = vmatpush1.bf16.msra.mxu0 0
    %1790 = vmatprep.subr.bf16.mxu0 0
    %1791 = vmatpush1.bf16.msra.mxu0 0
    %1792 = vmatprep.subr.bf16.mxu0 0
    %1793 = vmatpush1.bf16.msra.mxu0 0
    %1794 = vmatprep.subr.bf16.mxu0 0
    %1795 = vmatpush1.bf16.msra.mxu0 0
    %1796 = vmatprep.subr.bf16.mxu0 0
    %1797 = vmatpush1.bf16.msra.mxu0 0
    %1798 = vmatprep.subr.bf16.mxu0 0
    %1799 = vmatpush1.bf16.msra.mxu0 0
    %1800 = vmatprep.subr.bf16.mxu0 0
    %1801 = vmatpush1.bf16.msra.mxu0 0
    %1802 = vmatprep.subr.bf16.mxu0 0
    %1803 = vmatpush1.bf16.msra.mxu0 0
    %1804 = vmatprep.subr.bf16.mxu0 0
    %1805 = vmatpush1.bf16.msra.mxu0 0
    %1806 = vmatprep.mubr.bf16.mxu0 0
    %1807 = vmatmul.mubr.bf16.gmra.mrb[0].mxu0 %v1769
    %v1808 = vpop.f32.mrb[0].mxu0
    %v1809 = vadd.f32 0.0, %v1808
    %v1810 = vpop.f32.mrb[0].mxu0
    %v1811 = vpop.f32.mrb[0].mxu0
    %v1812 = vadd.f32 0.0, %v1811
    %v1813 = vpop.f32.mrb[0].mxu0
    %1814 = vdwg.mxu0
    %v1815 = vadd.f32 %v1543, %v1809
    %v1816 = vadd.f32 %v1544, %v1812
    %v1817 = vadd.f32 %v612, %v1815
    %v1818 = vadd.f32 %v613, %v1816
    %v1819 = vld [vmem:[%s33] sm:$0x1]
    %v1821 = vlaneseq
    %v1822 = vshrl.u32 %v1821, 7
    %v1823 = vsub.s32 0, %v1822
    %v1824 = vrot.slane %v1819, %v1823
    %v1826 = vadd.f32 %v1817, %v1824
    %v1827 = vadd.f32 %v1818, %v1824
    %v1828 = vld [vmem:[%s35] sm:$0x1]
    %v1829 = vld [vmem:[%s37] sm:$0x1]
    %v1830 = vsel %vm616, %v1826, 0.0
    %1831 = vadd.xlane.f32.xlu0 %v1830
    %v1832 = vpop.xlane.xlu0 %1831
    %v1833 = vsel %vm616, %v1827, 0.0
    %1834 = vadd.xlane.f32.xlu0 %v1833
    %v1835 = vpop.xlane.xlu0 %1834
    %v1836 = vmul.f32 %v1832, %v623
    %v1837 = vmul.f32 %v1835, %v623
    %v1838 = vsub.f32 %v1826, %v1836
    %v1839 = vsub.f32 %v1827, %v1837
    %v1840 = vmul.f32 %v1838, %v1838
    %v1841 = vmul.f32 %v1839, %v1839
    %v1842 = vsel %vm616, %v1840, 0.0
    %1843 = vadd.xlane.f32.xlu0 %v1842
    %v1844 = vpop.xlane.xlu0 %1843
    %v1845 = vsel %vm616, %v1841, 0.0
    %1846 = vadd.xlane.f32.xlu0 %v1845
    %v1847 = vpop.xlane.xlu0 %1846
    %v1848 = vmul.f32 %v1844, %v623
    %v1849 = vmul.f32 %v1847, %v623
    %v1850 = vadd.f32 %v1848, 1e-05
    %v1851 = vadd.f32 %v1849, 1e-05
    %v1852 = vrsqrt.pop %v1850
    %v1853 = vrsqrt.pop %v1851
    %v1854 = vmul.f32 %v1838, %v1852
    %v1855 = vmul.f32 %v1839, %v1853
    %v1857 = vlaneseq
    %v1858 = vshrl.u32 %v1857, 7
    %v1859 = vsub.s32 0, %v1858
    %v1860 = vrot.slane %v1828, %v1859
    %v1862 = vmul.f32 %v1854, %v1860
    %v1863 = vmul.f32 %v1855, %v1860
    %v1865 = vlaneseq
    %v1866 = vshrl.u32 %v1865, 7
    %v1867 = vsub.s32 0, %v1866
    %v1868 = vrot.slane %v1829, %v1867
    %v1870 = vadd.f32 %v1862, %v1868
    %v1871 = vadd.f32 %v1863, %v1868
    %v1872 = vpack.c.bf16 %v1871, %v1870
    %v1873 = vld [vmem:[%s39] sm:$0xf]
    %v1874 = vld [vmem:[%s39 + $0x4] sm:$0xf]
    %v1875 = vld [vmem:[%s39 + $0x8] sm:$0xf]
    %v1876 = vld [vmem:[%s39 + $0xc] sm:$0xf]
    %v1877 = vld [vmem:[%s41] sm:$0x1]
    %v1879 = vlaneseq
    %v1880 = vshrl.u32 %v1879, 7
    %v1881 = vsub.s32 0, %v1880
    %v1882 = vrot.slane %v1877, %v1881
    %v1888 = vunpack.c.l.b16 %v1873
    %v1889 = vunpack.c.l.b16 %v1874
    %v1890 = vunpack.c.l.b16 %v1875
    %v1891 = vunpack.c.l.b16 %v1876
    %v1892 = vpack.c.b16 %v1889, %v1888
    %v1893 = vpack.c.b16 %v1891, %v1890
    %v1897 = vsel %vm616, %v1872, 0
    %1899 = vmatprep.subr.bf16.mxu0 0
    %1900 = vmatpush1.bf16.msra.mxu0 %v1892
    %1901 = vmatprep.subr.bf16.mxu0 0
    %1902 = vmatpush1.bf16.msra.mxu0 %v1893
    %1903 = vmatprep.subr.bf16.mxu0 0
    %1904 = vmatpush1.bf16.msra.mxu0 0
    %1905 = vmatprep.subr.bf16.mxu0 0
    %1906 = vmatpush1.bf16.msra.mxu0 0
    %1907 = vmatprep.subr.bf16.mxu0 0
    %1908 = vmatpush1.bf16.msra.mxu0 0
    %1909 = vmatprep.subr.bf16.mxu0 0
    %1910 = vmatpush1.bf16.msra.mxu0 0
    %1911 = vmatprep.subr.bf16.mxu0 0
    %1912 = vmatpush1.bf16.msra.mxu0 0
    %1913 = vmatprep.subr.bf16.mxu0 0
    %1914 = vmatpush1.bf16.msra.mxu0 0
    %1915 = vmatprep.subr.bf16.mxu0 0
    %1916 = vmatpush1.bf16.msra.mxu0 0
    %1917 = vmatprep.subr.bf16.mxu0 0
    %1918 = vmatpush1.bf16.msra.mxu0 0
    %1919 = vmatprep.subr.bf16.mxu0 0
    %1920 = vmatpush1.bf16.msra.mxu0 0
    %1921 = vmatprep.subr.bf16.mxu0 0
    %1922 = vmatpush1.bf16.msra.mxu0 0
    %1923 = vmatprep.subr.bf16.mxu0 0
    %1924 = vmatpush1.bf16.msra.mxu0 0
    %1925 = vmatprep.subr.bf16.mxu0 0
    %1926 = vmatpush1.bf16.msra.mxu0 0
    %1927 = vmatprep.subr.bf16.mxu0 0
    %1928 = vmatpush1.bf16.msra.mxu0 0
    %1929 = vmatprep.subr.bf16.mxu0 0
    %1930 = vmatpush1.bf16.msra.mxu0 0
    %1931 = vmatprep.mubr.bf16.mxu0 0
    %1932 = vmatmul.mubr.bf16.gmra.mrb[0].mxu0 %v1897
    %v1933 = vpop.f32.mrb[0].mxu0
    %v1934 = vadd.f32 %v1882, %v1933
    %v1935 = vpop.f32.mrb[0].mxu0
    %v1936 = vpop.f32.mrb[0].mxu0
    %v1937 = vadd.f32 %v1882, %v1936
    %v1938 = vpop.f32.mrb[0].mxu0
    %1939 = vdwg.mxu0
    %v1940 = vmul.f32 %v1934, 0.5
    %v1941 = vmul.f32 %v1937, 0.5
    %v1942 = vmul.f32 %v1934, 0.044715
    %v1943 = vmul.f32 %v1937, 0.044715
    %v1944 = vmul.f32 %v1942, %v1934
    %v1945 = vmul.f32 %v1943, %v1937
    %v1946 = vmul.f32 %v1944, %v1934
    %v1947 = vmul.f32 %v1945, %v1937
    %v1948 = vadd.f32 %v1934, %v1946
    %v1949 = vadd.f32 %v1937, %v1947
    %v1950 = vmul.f32 %v1948, 0.7978846
    %v1951 = vmul.f32 %v1949, 0.7978846
    %v1952 = vtanh.pop %v1950
    %v1953 = vtanh.pop %v1951
    %v1954 = vadd.f32 %v1952, 1.0
    %v1955 = vadd.f32 %v1953, 1.0
    %v1956 = vmul.f32 %v1940, %v1954
    %v1957 = vmul.f32 %v1941, %v1955
    %v1958 = vpack.c.bf16 %v1957, %v1956
    %v1959 = vld [vmem:[%s43] sm:$0xf]
    %v1960 = vld [vmem:[%s43 + $0x4] sm:$0xf]
    %v1961 = vld [vmem:[%s43 + $0x8] sm:$0xf]
    %v1962 = vld [vmem:[%s43 + $0xc] sm:$0xf]
    %v1963 = vld [vmem:[%s43 + $0x10] sm:$0xf]
    %v1964 = vld [vmem:[%s43 + $0x14] sm:$0xf]
    %v1965 = vld [vmem:[%s43 + $0x18] sm:$0xf]
    %v1966 = vld [vmem:[%s43 + $0x1c] sm:$0xf]
    %v1967 = vld [vmem:[%s43 + $0x20] sm:$0xf]
    %v1968 = vld [vmem:[%s43 + $0x24] sm:$0xf]
    %v1969 = vld [vmem:[%s43 + $0x28] sm:$0xf]
    %v1970 = vld [vmem:[%s43 + $0x2c] sm:$0xf]
    %v1971 = vld [vmem:[%s43 + $0x30] sm:$0xf]
    %v1972 = vld [vmem:[%s43 + $0x34] sm:$0xf]
    %v1973 = vld [vmem:[%s43 + $0x38] sm:$0xf]
    %v1974 = vld [vmem:[%s43 + $0x3c] sm:$0xf]
    %v1975 = vld [vmem:[%s45] sm:$0x1]
    %v1977 = vlaneseq
    %v1978 = vshrl.u32 %v1977, 7
    %v1979 = vsub.s32 0, %v1978
    %v1980 = vrot.slane %v1975, %v1979
    %v1998 = vunpack.c.l.b16 %v1959
    %v1999 = vunpack.c.l.b16 %v1960
    %v2000 = vunpack.c.l.b16 %v1961
    %v2001 = vunpack.c.l.b16 %v1962
    %v2002 = vunpack.c.l.b16 %v1963
    %v2003 = vunpack.c.l.b16 %v1964
    %v2004 = vunpack.c.l.b16 %v1965
    %v2005 = vunpack.c.l.b16 %v1966
    %v2006 = vunpack.c.l.b16 %v1967
    %v2007 = vunpack.c.l.b16 %v1968
    %v2008 = vunpack.c.l.b16 %v1969
    %v2009 = vunpack.c.l.b16 %v1970
    %v2010 = vunpack.c.l.b16 %v1971
    %v2011 = vunpack.c.l.b16 %v1972
    %v2012 = vunpack.c.l.b16 %v1973
    %v2013 = vunpack.c.l.b16 %v1974
    %v2014 = vpack.c.b16 %v1999, %v1998
    %v2015 = vpack.c.b16 %v2001, %v2000
    %v2016 = vpack.c.b16 %v2003, %v2002
    %v2017 = vpack.c.b16 %v2005, %v2004
    %v2018 = vpack.c.b16 %v2007, %v2006
    %v2019 = vpack.c.b16 %v2009, %v2008
    %v2020 = vpack.c.b16 %v2011, %v2010
    %v2021 = vpack.c.b16 %v2013, %v2012
    %2030 = vmatprep.subr.bf16.mxu0 0
    %2031 = vmatpush1.bf16.msra.mxu0 %v2014
    %2032 = vmatprep.subr.bf16.mxu0 0
    %2033 = vmatpush1.bf16.msra.mxu0 %v2015
    %2034 = vmatprep.subr.bf16.mxu0 0
    %2035 = vmatpush1.bf16.msra.mxu0 %v2016
    %2036 = vmatprep.subr.bf16.mxu0 0
    %2037 = vmatpush1.bf16.msra.mxu0 %v2017
    %2038 = vmatprep.subr.bf16.mxu0 0
    %2039 = vmatpush1.bf16.msra.mxu0 %v2018
    %2040 = vmatprep.subr.bf16.mxu0 0
    %2041 = vmatpush1.bf16.msra.mxu0 %v2019
    %2042 = vmatprep.subr.bf16.mxu0 0
    %2043 = vmatpush1.bf16.msra.mxu0 %v2020
    %2044 = vmatprep.subr.bf16.mxu0 0
    %2045 = vmatpush1.bf16.msra.mxu0 %v2021
    %2046 = vmatprep.subr.bf16.mxu0 0
    %2047 = vmatpush1.bf16.msra.mxu0 0
    %2048 = vmatprep.subr.bf16.mxu0 0
    %2049 = vmatpush1.bf16.msra.mxu0 0
    %2050 = vmatprep.subr.bf16.mxu0 0
    %2051 = vmatpush1.bf16.msra.mxu0 0
    %2052 = vmatprep.subr.bf16.mxu0 0
    %2053 = vmatpush1.bf16.msra.mxu0 0
    %2054 = vmatprep.subr.bf16.mxu0 0
    %2055 = vmatpush1.bf16.msra.mxu0 0
    %2056 = vmatprep.subr.bf16.mxu0 0
    %2057 = vmatpush1.bf16.msra.mxu0 0
    %2058 = vmatprep.subr.bf16.mxu0 0
    %2059 = vmatpush1.bf16.msra.mxu0 0
    %2060 = vmatprep.subr.bf16.mxu0 0
    %2061 = vmatpush1.bf16.msra.mxu0 0
    %2062 = vmatprep.mubr.bf16.mxu0 0
    %2063 = vmatmul.mubr.bf16.gmra.mrb[0].mxu0 %v1958
    %v2064 = vpop.f32.mrb[0].mxu0
    %v2065 = vadd.f32 %v1980, %v2064
    %v2066 = vpop.f32.mrb[0].mxu0
    %v2067 = vpop.f32.mrb[0].mxu0
    %v2068 = vadd.f32 %v1980, %v2067
    %v2069 = vpop.f32.mrb[0].mxu0
    %2070 = vdwg.mxu0
    %v2071 = vadd.f32 %v1826, %v2065
    %v2072 = vadd.f32 %v1827, %v2068
    %s2073 = scalar_lea.vmem %s23, 1
    %v2074 = vld [vmem:[%s2073] sm:$0x1]
    %s2075 = scalar_lea.vmem %s25, 1
    %v2076 = vld [vmem:[%s2075] sm:$0x1]
    %v2077 = vsel %vm616, %v2071, 0.0
    %2078 = vadd.xlane.f32.xlu0 %v2077
    %v2079 = vpop.xlane.xlu0 %2078
    %v2080 = vsel %vm616, %v2072, 0.0
    %2081 = vadd.xlane.f32.xlu0 %v2080
    %v2082 = vpop.xlane.xlu0 %2081
    %v2083 = vmul.f32 %v2079, %v623
    %v2084 = vmul.f32 %v2082, %v623
    %v2085 = vsub.f32 %v2071, %v2083
    %v2086 = vsub.f32 %v2072, %v2084
    %v2087 = vmul.f32 %v2085, %v2085
    %v2088 = vmul.f32 %v2086, %v2086
    %v2089 = vsel %vm616, %v2087, 0.0
    %2090 = vadd.xlane.f32.xlu0 %v2089
    %v2091 = vpop.xlane.xlu0 %2090
    %v2092 = vsel %vm616, %v2088, 0.0
    %2093 = vadd.xlane.f32.xlu0 %v2092
    %v2094 = vpop.xlane.xlu0 %2093
    %v2095 = vmul.f32 %v2091, %v623
    %v2096 = vmul.f32 %v2094, %v623
    %v2097 = vadd.f32 %v2095, 1e-05
    %v2098 = vadd.f32 %v2096, 1e-05
    %v2099 = vrsqrt.pop %v2097
    %v2100 = vrsqrt.pop %v2098
    %v2101 = vmul.f32 %v2085, %v2099
    %v2102 = vmul.f32 %v2086, %v2100
    %v2104 = vlaneseq
    %v2105 = vshrl.u32 %v2104, 7
    %v2106 = vsub.s32 0, %v2105
    %v2107 = vrot.slane %v2074, %v2106
    %v2109 = vmul.f32 %v2101, %v2107
    %v2110 = vmul.f32 %v2102, %v2107
    %v2112 = vlaneseq
    %v2113 = vshrl.u32 %v2112, 7
    %v2114 = vsub.s32 0, %v2113
    %v2115 = vrot.slane %v2076, %v2114
    %v2117 = vadd.f32 %v2109, %v2115
    %v2118 = vadd.f32 %v2110, %v2115
    %v2119 = vpack.c.bf16 %v2118, %v2117
    %s2120 = scalar_lea.vmem %s27, 16
    %v2121 = vld [vmem:[%s2120] sm:$0xf]
    %v2122 = vld [vmem:[%s2120 + $0x4] sm:$0xf]
    %v2123 = vld [vmem:[%s2120 + $0x8] sm:$0xf]
    %v2124 = vld [vmem:[%s2120 + $0xc] sm:$0xf]
    %s2125 = scalar_lea.vmem %s29, 1
    %v2126 = vld [vmem:[%s2125] sm:$0x1]
    %v2128 = vlaneseq
    %v2129 = vshrl.u32 %v2128, 7
    %v2130 = vsub.s32 0, %v2129
    %v2131 = vrot.slane %v2126, %v2130
    %v2137 = vunpack.c.l.b16 %v2121
    %v2138 = vunpack.c.l.b16 %v2122
    %v2139 = vunpack.c.l.b16 %v2123
    %v2140 = vunpack.c.l.b16 %v2124
    %v2141 = vpack.c.b16 %v2138, %v2137
    %v2142 = vpack.c.b16 %v2140, %v2139
    %v2146 = vsel %vm616, %v2119, 0
    %2148 = vmatprep.subr.bf16.mxu0 0
    %2149 = vmatpush1.bf16.msra.mxu0 %v2141
    %2150 = vmatprep.subr.bf16.mxu0 0
    %2151 = vmatpush1.bf16.msra.mxu0 %v2142
    %2152 = vmatprep.subr.bf16.mxu0 0
    %2153 = vmatpush1.bf16.msra.mxu0 0
    %2154 = vmatprep.subr.bf16.mxu0 0
    %2155 = vmatpush1.bf16.msra.mxu0 0
    %2156 = vmatprep.subr.bf16.mxu0 0
    %2157 = vmatpush1.bf16.msra.mxu0 0
    %2158 = vmatprep.subr.bf16.mxu0 0
    %2159 = vmatpush1.bf16.msra.mxu0 0
    %2160 = vmatprep.subr.bf16.mxu0 0
    %2161 = vmatpush1.bf16.msra.mxu0 0
    %2162 = vmatprep.subr.bf16.mxu0 0
    %2163 = vmatpush1.bf16.msra.mxu0 0
    %2164 = vmatprep.subr.bf16.mxu0 0
    %2165 = vmatpush1.bf16.msra.mxu0 0
    %2166 = vmatprep.subr.bf16.mxu0 0
    %2167 = vmatpush1.bf16.msra.mxu0 0
    %2168 = vmatprep.subr.bf16.mxu0 0
    %2169 = vmatpush1.bf16.msra.mxu0 0
    %2170 = vmatprep.subr.bf16.mxu0 0
    %2171 = vmatpush1.bf16.msra.mxu0 0
    %2172 = vmatprep.subr.bf16.mxu0 0
    %2173 = vmatpush1.bf16.msra.mxu0 0
    %2174 = vmatprep.subr.bf16.mxu0 0
    %2175 = vmatpush1.bf16.msra.mxu0 0
    %2176 = vmatprep.subr.bf16.mxu0 0
    %2177 = vmatpush1.bf16.msra.mxu0 0
    %2178 = vmatprep.subr.bf16.mxu0 0
    %2179 = vmatpush1.bf16.msra.mxu0 0
    %2180 = vmatprep.mubr.bf16.mxu0 0
    %2181 = vmatmul.mubr.bf16.gmra.mrb[0].mxu0 %v2146
    %v2182 = vpop.f32.mrb[0].mxu0
    %v2183 = vadd.f32 %v2131, %v2182
    %v2184 = vpop.f32.mrb[0].mxu0
    %v2185 = vpop.f32.mrb[0].mxu0
    %v2186 = vadd.f32 %v2131, %v2185
    %v2187 = vpop.f32.mrb[0].mxu0
    %2188 = vdwg.mxu0
    %s2189 = scalar_lea.vmem %s31, 16
    %v2190 = vld [vmem:[%s2189] sm:$0xf]
    %v2191 = vld [vmem:[%s2189 + $0x4] sm:$0xf]
    %v2192 = vld [vmem:[%s2189 + $0x8] sm:$0xf]
    %v2193 = vld [vmem:[%s2189 + $0xc] sm:$0xf]
    %v2194 = vpack.c.bf16 %v2183, %v2183
    %v2195 = vpack.c.bf16 %v2186, %v2186
    %2197 = vrot.lane.b32.xlu0 %v2194, 96
    %v2198 = vpop.permute.xlu0 %2197
    %v2200 = vsel %vm737, %v2194, 0
    %v2203 = vsel %vm737, %v2198, 0
    %2205 = vmatprep.subr.bf16.mxu0 0
    %2206 = vmatpush1.bf16.xpose.msra.mxu0 %v2203
    %2207 = vmatprep.subr.bf16.mxu0 0
    %2208 = vmatpush1.bf16.xpose.msra.mxu0 0
    %2209 = vmatprep.subr.bf16.mxu0 0
    %2210 = vmatpush1.bf16.xpose.msra.mxu0 0
    %2211 = vmatprep.subr.bf16.mxu0 0
    %2212 = vmatpush1.bf16.xpose.msra.mxu0 0
    %2213 = vmatprep.subr.bf16.mxu0 0
    %2214 = vmatpush1.bf16.xpose.msra.mxu0 0
    %2215 = vmatprep.subr.bf16.mxu0 0
    %2216 = vmatpush1.bf16.xpose.msra.mxu0 0
    %2217 = vmatprep.subr.bf16.mxu0 0
    %2218 = vmatpush1.bf16.xpose.msra.mxu0 0
    %2219 = vmatprep.subr.bf16.mxu0 0
    %2220 = vmatpush1.bf16.xpose.msra.mxu0 0
    %2221 = vmatprep.subr.bf16.mxu0 0
    %2222 = vmatpush1.bf16.xpose.msra.mxu0 0
    %2223 = vmatprep.subr.bf16.mxu0 0
    %2224 = vmatpush1.bf16.xpose.msra.mxu0 0
    %2225 = vmatprep.subr.bf16.mxu0 0
    %2226 = vmatpush1.bf16.xpose.msra.mxu0 0
    %2227 = vmatprep.subr.bf16.mxu0 0
    %2228 = vmatpush1.bf16.xpose.msra.mxu0 0
    %2229 = vmatprep.subr.bf16.mxu0 0
    %2230 = vmatpush1.bf16.xpose.msra.mxu0 0
    %2231 = vmatprep.subr.bf16.mxu0 0
    %2232 = vmatpush1.bf16.xpose.msra.mxu0 0
    %2233 = vmatprep.subr.bf16.mxu0 0
    %2234 = vmatpush1.bf16.xpose.msra.mxu0 0
    %2235 = vmatprep.subr.bf16.mxu0 0
    %2236 = vmatpush1.bf16.xpose.msra.mxu0 0
    %2237 = vmatprep.mubr.bf16.mxu0 0
    %2238 = vmatmul.mubr.bf16.gmra.mrb[0].mxu0 %v2200
    %v2239 = vpop.f32.mrb[0].mxu0
    %v2240 = vadd.f32 0.0, %v2239
    %v2241 = vpop.f32.mrb[0].mxu0
    %v2242 = vpop.f32.mrb[0].mxu0
    %v2243 = vpop.f32.mrb[0].mxu0
    %2244 = vdwg.mxu0
    %2246 = vrot.lane.b32.xlu0 %v2195, 96
    %v2247 = vpop.permute.xlu0 %2246
    %v2249 = vsel %vm737, %v2195, 0
    %v2252 = vsel %vm737, %v2247, 0
    %2254 = vmatprep.subr.bf16.mxu0 0
    %2255 = vmatpush1.bf16.xpose.msra.mxu0 %v2252
    %2256 = vmatprep.subr.bf16.mxu0 0
    %2257 = vmatpush1.bf16.xpose.msra.mxu0 0
    %2258 = vmatprep.subr.bf16.mxu0 0
    %2259 = vmatpush1.bf16.xpose.msra.mxu0 0
    %2260 = vmatprep.subr.bf16.mxu0 0
    %2261 = vmatpush1.bf16.xpose.msra.mxu0 0
    %2262 = vmatprep.subr.bf16.mxu0 0
    %2263 = vmatpush1.bf16.xpose.msra.mxu0 0
    %2264 = vmatprep.subr.bf16.mxu0 0
    %2265 = vmatpush1.bf16.xpose.msra.mxu0 0
    %2266 = vmatprep.subr.bf16.mxu0 0
    %2267 = vmatpush1.bf16.xpose.msra.mxu0 0
    %2268 = vmatprep.subr.bf16.mxu0 0
    %2269 = vmatpush1.bf16.xpose.msra.mxu0 0
    %2270 = vmatprep.subr.bf16.mxu0 0
    %2271 = vmatpush1.bf16.xpose.msra.mxu0 0
    %2272 = vmatprep.subr.bf16.mxu0 0
    %2273 = vmatpush1.bf16.xpose.msra.mxu0 0
    %2274 = vmatprep.subr.bf16.mxu0 0
    %2275 = vmatpush1.bf16.xpose.msra.mxu0 0
    %2276 = vmatprep.subr.bf16.mxu0 0
    %2277 = vmatpush1.bf16.xpose.msra.mxu0 0
    %2278 = vmatprep.subr.bf16.mxu0 0
    %2279 = vmatpush1.bf16.xpose.msra.mxu0 0
    %2280 = vmatprep.subr.bf16.mxu0 0
    %2281 = vmatpush1.bf16.xpose.msra.mxu0 0
    %2282 = vmatprep.subr.bf16.mxu0 0
    %2283 = vmatpush1.bf16.xpose.msra.mxu0 0
    %2284 = vmatprep.subr.bf16.mxu0 0
    %2285 = vmatpush1.bf16.xpose.msra.mxu0 0
    %2286 = vmatprep.mubr.bf16.mxu0 0
    %2287 = vmatmul.mubr.bf16.gmra.mrb[0].mxu0 %v2249
    %v2288 = vpop.f32.mrb[0].mxu0
    %v2289 = vadd.f32 0.0, %v2288
    %v2290 = vpop.f32.mrb[0].mxu0
    %v2291 = vpop.f32.mrb[0].mxu0
    %v2292 = vpop.f32.mrb[0].mxu0
    %2293 = vdwg.mxu0
    %v2294 = vmul.f32 %v2240, 0.35355338
    %v2295 = vmul.f32 %v2289, 0.35355338
    %v2296 = vsel %vm737, %v2294, -inf
    %2297 = vmax.xlane.f32.xlu0 %v2296
    %v2298 = vpop.xlane.xlu0 %2297
    %v2299 = vsel %vm737, %v2295, -inf
    %2300 = vmax.xlane.f32.xlu0 %v2299
    %v2301 = vpop.xlane.xlu0 %2300
    %v2302 = vsub.f32 %v2294, %v2298
    %v2303 = vsub.f32 %v2295, %v2301
    %v2304 = vmul.f32 %v2302, 1.442695
    %v2305 = vpow.pop %v2304
    %v2306 = vmul.f32 %v2303, 1.442695
    %v2307 = vpow.pop %v2306
    %v2308 = vsel %vm737, %v2305, 0.0
    %2309 = vadd.xlane.f32.xlu0 %v2308
    %v2310 = vpop.xlane.xlu0 %2309
    %v2311 = vsel %vm737, %v2307, 0.0
    %2312 = vadd.xlane.f32.xlu0 %v2311
    %v2313 = vpop.xlane.xlu0 %2312
    %v2314 = vrcp.pop %v2310
    %v2315 = vrcp.pop %v2313
    %v2316 = vmul.f32 %v2305, %v2314
    %v2317 = vmul.f32 %v2307, %v2315
    %v2318 = vpack.c.bf16 %v2316, %v2316
    %v2319 = vpack.c.bf16 %v2317, %v2317
    %2320 = vrot.lane.b32.xlu0 %v2194, 64
    %v2321 = vpop.permute.xlu0 %2320
    %v2323 = vsel %vm737, %v2318, 0
    %v2326 = vsel %vm422, %v2321, 0
    %2328 = vmatprep.subr.bf16.mxu0 0
    %2329 = vmatpush1.bf16.msra.mxu0 %v2326
    %2330 = vmatprep.subr.bf16.mxu0 0
    %2331 = vmatpush1.bf16.msra.mxu0 0
    %2332 = vmatprep.subr.bf16.mxu0 0
    %2333 = vmatpush1.bf16.msra.mxu0 0
    %2334 = vmatprep.subr.bf16.mxu0 0
    %2335 = vmatpush1.bf16.msra.mxu0 0
    %2336 = vmatprep.subr.bf16.mxu0 0
    %2337 = vmatpush1.bf16.msra.mxu0 0
    %2338 = vmatprep.subr.bf16.mxu0 0
    %2339 = vmatpush1.bf16.msra.mxu0 0
    %2340 = vmatprep.subr.bf16.mxu0 0
    %2341 = vmatpush1.bf16.msra.mxu0 0
    %2342 = vmatprep.subr.bf16.mxu0 0
    %2343 = vmatpush1.bf16.msra.mxu0 0
    %2344 = vmatprep.subr.bf16.mxu0 0
    %2345 = vmatpush1.bf16.msra.mxu0 0
    %2346 = vmatprep.subr.bf16.mxu0 0
    %2347 = vmatpush1.bf16.msra.mxu0 0
    %2348 = vmatprep.subr.bf16.mxu0 0
    %2349 = vmatpush1.bf16.msra.mxu0 0
    %2350 = vmatprep.subr.bf16.mxu0 0
    %2351 = vmatpush1.bf16.msra.mxu0 0
    %2352 = vmatprep.subr.bf16.mxu0 0
    %2353 = vmatpush1.bf16.msra.mxu0 0
    %2354 = vmatprep.subr.bf16.mxu0 0
    %2355 = vmatpush1.bf16.msra.mxu0 0
    %2356 = vmatprep.subr.bf16.mxu0 0
    %2357 = vmatpush1.bf16.msra.mxu0 0
    %2358 = vmatprep.subr.bf16.mxu0 0
    %2359 = vmatpush1.bf16.msra.mxu0 0
    %2360 = vmatprep.mubr.bf16.mxu0 0
    %2361 = vmatmul.mubr.bf16.gmra.mrb[0].mxu0 %v2323
    %v2362 = vpop.f32.mrb[0].mxu0
    %v2363 = vadd.f32 0.0, %v2362
    %v2364 = vpop.f32.mrb[0].mxu0
    %v2365 = vpop.f32.mrb[0].mxu0
    %v2366 = vpop.f32.mrb[0].mxu0
    %2367 = vdwg.mxu0
    %2368 = vrot.lane.b32.xlu0 %v2195, 64
    %v2369 = vpop.permute.xlu0 %2368
    %v2371 = vsel %vm737, %v2319, 0
    %v2374 = vsel %vm422, %v2369, 0
    %2376 = vmatprep.subr.bf16.mxu0 0
    %2377 = vmatpush1.bf16.msra.mxu0 %v2374
    %2378 = vmatprep.subr.bf16.mxu0 0
    %2379 = vmatpush1.bf16.msra.mxu0 0
    %2380 = vmatprep.subr.bf16.mxu0 0
    %2381 = vmatpush1.bf16.msra.mxu0 0
    %2382 = vmatprep.subr.bf16.mxu0 0
    %2383 = vmatpush1.bf16.msra.mxu0 0
    %2384 = vmatprep.subr.bf16.mxu0 0
    %2385 = vmatpush1.bf16.msra.mxu0 0
    %2386 = vmatprep.subr.bf16.mxu0 0
    %2387 = vmatpush1.bf16.msra.mxu0 0
    %2388 = vmatprep.subr.bf16.mxu0 0
    %2389 = vmatpush1.bf16.msra.mxu0 0
    %2390 = vmatprep.subr.bf16.mxu0 0
    %2391 = vmatpush1.bf16.msra.mxu0 0
    %2392 = vmatprep.subr.bf16.mxu0 0
    %2393 = vmatpush1.bf16.msra.mxu0 0
    %2394 = vmatprep.subr.bf16.mxu0 0
    %2395 = vmatpush1.bf16.msra.mxu0 0
    %2396 = vmatprep.subr.bf16.mxu0 0
    %2397 = vmatpush1.bf16.msra.mxu0 0
    %2398 = vmatprep.subr.bf16.mxu0 0
    %2399 = vmatpush1.bf16.msra.mxu0 0
    %2400 = vmatprep.subr.bf16.mxu0 0
    %2401 = vmatpush1.bf16.msra.mxu0 0
    %2402 = vmatprep.subr.bf16.mxu0 0
    %2403 = vmatpush1.bf16.msra.mxu0 0
    %2404 = vmatprep.subr.bf16.mxu0 0
    %2405 = vmatpush1.bf16.msra.mxu0 0
    %2406 = vmatprep.subr.bf16.mxu0 0
    %2407 = vmatpush1.bf16.msra.mxu0 0
    %2408 = vmatprep.mubr.bf16.mxu0 0
    %2409 = vmatmul.mubr.bf16.gmra.mrb[0].mxu0 %v2371
    %v2410 = vpop.f32.mrb[0].mxu0
    %v2411 = vadd.f32 0.0, %v2410
    %v2412 = vpop.f32.mrb[0].mxu0
    %v2413 = vpop.f32.mrb[0].mxu0
    %v2414 = vpop.f32.mrb[0].mxu0
    %2415 = vdwg.mxu0
    %v2416 = vpack.c.bf16 %v2411, %v2363
    %2417 = vrot.lane.b32.xlu0 %v2194, 120
    %v2418 = vpop.permute.xlu0 %2417
    %2419 = vrot.lane.b32.xlu0 %v2194, 88
    %v2420 = vpop.permute.xlu0 %2419
    %v2422 = vsel %vm737, %v2418, 0
    %v2425 = vsel %vm737, %v2420, 0
    %2427 = vmatprep.subr.bf16.mxu0 0
    %2428 = vmatpush1.bf16.xpose.msra.mxu0 %v2425
    %2429 = vmatprep.subr.bf16.mxu0 0
    %2430 = vmatpush1.bf16.xpose.msra.mxu0 0
    %2431 = vmatprep.subr.bf16.mxu0 0
    %2432 = vmatpush1.bf16.xpose.msra.mxu0 0
    %2433 = vmatprep.subr.bf16.mxu0 0
    %2434 = vmatpush1.bf16.xpose.msra.mxu0 0
    %2435 = vmatprep.subr.bf16.mxu0 0
    %2436 = vmatpush1.bf16.xpose.msra.mxu0 0
    %2437 = vmatprep.subr.bf16.mxu0 0
    %2438 = vmatpush1.bf16.xpose.msra.mxu0 0
    %2439 = vmatprep.subr.bf16.mxu0 0
    %2440 = vmatpush1.bf16.xpose.msra.mxu0 0
    %2441 = vmatprep.subr.bf16.mxu0 0
    %2442 = vmatpush1.bf16.xpose.msra.mxu0 0
    %2443 = vmatprep.subr.bf16.mxu0 0
    %2444 = vmatpush1.bf16.xpose.msra.mxu0 0
    %2445 = vmatprep.subr.bf16.mxu0 0
    %2446 = vmatpush1.bf16.xpose.msra.mxu0 0
    %2447 = vmatprep.subr.bf16.mxu0 0
    %2448 = vmatpush1.bf16.xpose.msra.mxu0 0
    %2449 = vmatprep.subr.bf16.mxu0 0
    %2450 = vmatpush1.bf16.xpose.msra.mxu0 0
    %2451 = vmatprep.subr.bf16.mxu0 0
    %2452 = vmatpush1.bf16.xpose.msra.mxu0 0
    %2453 = vmatprep.subr.bf16.mxu0 0
    %2454 = vmatpush1.bf16.xpose.msra.mxu0 0
    %2455 = vmatprep.subr.bf16.mxu0 0
    %2456 = vmatpush1.bf16.xpose.msra.mxu0 0
    %2457 = vmatprep.subr.bf16.mxu0 0
    %2458 = vmatpush1.bf16.xpose.msra.mxu0 0
    %2459 = vmatprep.mubr.bf16.mxu0 0
    %2460 = vmatmul.mubr.bf16.gmra.mrb[0].mxu0 %v2422
    %v2461 = vpop.f32.mrb[0].mxu0
    %v2462 = vadd.f32 0.0, %v2461
    %v2463 = vpop.f32.mrb[0].mxu0
    %v2464 = vpop.f32.mrb[0].mxu0
    %v2465 = vpop.f32.mrb[0].mxu0
    %2466 = vdwg.mxu0
    %2467 = vrot.lane.b32.xlu0 %v2195, 120
    %v2468 = vpop.permute.xlu0 %2467
    %2469 = vrot.lane.b32.xlu0 %v2195, 88
    %v2470 = vpop.permute.xlu0 %2469
    %v2472 = vsel %vm737, %v2468, 0
    %v2475 = vsel %vm737, %v2470, 0
    %2477 = vmatprep.subr.bf16.mxu0 0
    %2478 = vmatpush1.bf16.xpose.msra.mxu0 %v2475
    %2479 = vmatprep.subr.bf16.mxu0 0
    %2480 = vmatpush1.bf16.xpose.msra.mxu0 0
    %2481 = vmatprep.subr.bf16.mxu0 0
    %2482 = vmatpush1.bf16.xpose.msra.mxu0 0
    %2483 = vmatprep.subr.bf16.mxu0 0
    %2484 = vmatpush1.bf16.xpose.msra.mxu0 0
    %2485 = vmatprep.subr.bf16.mxu0 0
    %2486 = vmatpush1.bf16.xpose.msra.mxu0 0
    %2487 = vmatprep.subr.bf16.mxu0 0
    %2488 = vmatpush1.bf16.xpose.msra.mxu0 0
    %2489 = vmatprep.subr.bf16.mxu0 0
    %2490 = vmatpush1.bf16.xpose.msra.mxu0 0
    %2491 = vmatprep.subr.bf16.mxu0 0
    %2492 = vmatpush1.bf16.xpose.msra.mxu0 0
    %2493 = vmatprep.subr.bf16.mxu0 0
    %2494 = vmatpush1.bf16.xpose.msra.mxu0 0
    %2495 = vmatprep.subr.bf16.mxu0 0
    %2496 = vmatpush1.bf16.xpose.msra.mxu0 0
    %2497 = vmatprep.subr.bf16.mxu0 0
    %2498 = vmatpush1.bf16.xpose.msra.mxu0 0
    %2499 = vmatprep.subr.bf16.mxu0 0
    %2500 = vmatpush1.bf16.xpose.msra.mxu0 0
    %2501 = vmatprep.subr.bf16.mxu0 0
    %2502 = vmatpush1.bf16.xpose.msra.mxu0 0
    %2503 = vmatprep.subr.bf16.mxu0 0
    %2504 = vmatpush1.bf16.xpose.msra.mxu0 0
    %2505 = vmatprep.subr.bf16.mxu0 0
    %2506 = vmatpush1.bf16.xpose.msra.mxu0 0
    %2507 = vmatprep.subr.bf16.mxu0 0
    %2508 = vmatpush1.bf16.xpose.msra.mxu0 0
    %2509 = vmatprep.mubr.bf16.mxu0 0
    %2510 = vmatmul.mubr.bf16.gmra.mrb[0].mxu0 %v2472
    %v2511 = vpop.f32.mrb[0].mxu0
    %v2512 = vadd.f32 0.0, %v2511
    %v2513 = vpop.f32.mrb[0].mxu0
    %v2514 = vpop.f32.mrb[0].mxu0
    %v2515 = vpop.f32.mrb[0].mxu0
    %2516 = vdwg.mxu0
    %v2517 = vmul.f32 %v2462, 0.35355338
    %v2518 = vmul.f32 %v2512, 0.35355338
    %v2519 = vsel %vm737, %v2517, -inf
    %2520 = vmax.xlane.f32.xlu0 %v2519
    %v2521 = vpop.xlane.xlu0 %2520
    %v2522 = vsel %vm737, %v2518, -inf
    %2523 = vmax.xlane.f32.xlu0 %v2522
    %v2524 = vpop.xlane.xlu0 %2523
    %v2525 = vsub.f32 %v2517, %v2521
    %v2526 = vsub.f32 %v2518, %v2524
    %v2527 = vmul.f32 %v2525, 1.442695
    %v2528 = vpow.pop %v2527
    %v2529 = vmul.f32 %v2526, 1.442695
    %v2530 = vpow.pop %v2529
    %v2531 = vsel %vm737, %v2528, 0.0
    %2532 = vadd.xlane.f32.xlu0 %v2531
    %v2533 = vpop.xlane.xlu0 %2532
    %v2534 = vsel %vm737, %v2530, 0.0
    %2535 = vadd.xlane.f32.xlu0 %v2534
    %v2536 = vpop.xlane.xlu0 %2535
    %v2537 = vrcp.pop %v2533
    %v2538 = vrcp.pop %v2536
    %v2539 = vmul.f32 %v2528, %v2537
    %v2540 = vmul.f32 %v2530, %v2538
    %v2541 = vpack.c.bf16 %v2539, %v2539
    %v2542 = vpack.c.bf16 %v2540, %v2540
    %2543 = vrot.lane.b32.xlu0 %v2194, 56
    %v2544 = vpop.permute.xlu0 %2543
    %v2546 = vsel %vm737, %v2541, 0
    %v2549 = vsel %vm422, %v2544, 0
    %2551 = vmatprep.subr.bf16.mxu0 0
    %2552 = vmatpush1.bf16.msra.mxu0 %v2549
    %2553 = vmatprep.subr.bf16.mxu0 0
    %2554 = vmatpush1.bf16.msra.mxu0 0
    %2555 = vmatprep.subr.bf16.mxu0 0
    %2556 = vmatpush1.bf16.msra.mxu0 0
    %2557 = vmatprep.subr.bf16.mxu0 0
    %2558 = vmatpush1.bf16.msra.mxu0 0
    %2559 = vmatprep.subr.bf16.mxu0 0
    %2560 = vmatpush1.bf16.msra.mxu0 0
    %2561 = vmatprep.subr.bf16.mxu0 0
    %2562 = vmatpush1.bf16.msra.mxu0 0
    %2563 = vmatprep.subr.bf16.mxu0 0
    %2564 = vmatpush1.bf16.msra.mxu0 0
    %2565 = vmatprep.subr.bf16.mxu0 0
    %2566 = vmatpush1.bf16.msra.mxu0 0
    %2567 = vmatprep.subr.bf16.mxu0 0
    %2568 = vmatpush1.bf16.msra.mxu0 0
    %2569 = vmatprep.subr.bf16.mxu0 0
    %2570 = vmatpush1.bf16.msra.mxu0 0
    %2571 = vmatprep.subr.bf16.mxu0 0
    %2572 = vmatpush1.bf16.msra.mxu0 0
    %2573 = vmatprep.subr.bf16.mxu0 0
    %2574 = vmatpush1.bf16.msra.mxu0 0
    %2575 = vmatprep.subr.bf16.mxu0 0
    %2576 = vmatpush1.bf16.msra.mxu0 0
    %2577 = vmatprep.subr.bf16.mxu0 0
    %2578 = vmatpush1.bf16.msra.mxu0 0
    %2579 = vmatprep.subr.bf16.mxu0 0
    %2580 = vmatpush1.bf16.msra.mxu0 0
    %2581 = vmatprep.subr.bf16.mxu0 0
    %2582 = vmatpush1.bf16.msra.mxu0 0
    %2583 = vmatprep.mubr.bf16.mxu0 0
    %2584 = vmatmul.mubr.bf16.gmra.mrb[0].mxu0 %v2546
    %v2585 = vpop.f32.mrb[0].mxu0
    %v2586 = vadd.f32 0.0, %v2585
    %v2587 = vpop.f32.mrb[0].mxu0
    %v2588 = vpop.f32.mrb[0].mxu0
    %v2589 = vpop.f32.mrb[0].mxu0
    %2590 = vdwg.mxu0
    %2591 = vrot.lane.b32.xlu0 %v2195, 56
    %v2592 = vpop.permute.xlu0 %2591
    %v2594 = vsel %vm737, %v2542, 0
    %v2597 = vsel %vm422, %v2592, 0
    %2599 = vmatprep.subr.bf16.mxu0 0
    %2600 = vmatpush1.bf16.msra.mxu0 %v2597
    %2601 = vmatprep.subr.bf16.mxu0 0
    %2602 = vmatpush1.bf16.msra.mxu0 0
    %2603 = vmatprep.subr.bf16.mxu0 0
    %2604 = vmatpush1.bf16.msra.mxu0 0
    %2605 = vmatprep.subr.bf16.mxu0 0
    %2606 = vmatpush1.bf16.msra.mxu0 0
    %2607 = vmatprep.subr.bf16.mxu0 0
    %2608 = vmatpush1.bf16.msra.mxu0 0
    %2609 = vmatprep.subr.bf16.mxu0 0
    %2610 = vmatpush1.bf16.msra.mxu0 0
    %2611 = vmatprep.subr.bf16.mxu0 0
    %2612 = vmatpush1.bf16.msra.mxu0 0
    %2613 = vmatprep.subr.bf16.mxu0 0
    %2614 = vmatpush1.bf16.msra.mxu0 0
    %2615 = vmatprep.subr.bf16.mxu0 0
    %2616 = vmatpush1.bf16.msra.mxu0 0
    %2617 = vmatprep.subr.bf16.mxu0 0
    %2618 = vmatpush1.bf16.msra.mxu0 0
    %2619 = vmatprep.subr.bf16.mxu0 0
    %2620 = vmatpush1.bf16.msra.mxu0 0
    %2621 = vmatprep.subr.bf16.mxu0 0
    %2622 = vmatpush1.bf16.msra.mxu0 0
    %2623 = vmatprep.subr.bf16.mxu0 0
    %2624 = vmatpush1.bf16.msra.mxu0 0
    %2625 = vmatprep.subr.bf16.mxu0 0
    %2626 = vmatpush1.bf16.msra.mxu0 0
    %2627 = vmatprep.subr.bf16.mxu0 0
    %2628 = vmatpush1.bf16.msra.mxu0 0
    %2629 = vmatprep.subr.bf16.mxu0 0
    %2630 = vmatpush1.bf16.msra.mxu0 0
    %2631 = vmatprep.mubr.bf16.mxu0 0
    %2632 = vmatmul.mubr.bf16.gmra.mrb[0].mxu0 %v2594
    %v2633 = vpop.f32.mrb[0].mxu0
    %v2634 = vadd.f32 0.0, %v2633
    %v2635 = vpop.f32.mrb[0].mxu0
    %v2636 = vpop.f32.mrb[0].mxu0
    %v2637 = vpop.f32.mrb[0].mxu0
    %2638 = vdwg.mxu0
    %v2639 = vpack.c.bf16 %v2634, %v2586
    %v2641 = vsel %vm737, %v2639, 0
    %v2644 = vsel %vm422, %v2191, 0
    %2646 = vmatprep.subr.bf16.mxu0 0
    %2647 = vmatpush1.bf16.msra.mxu0 %v2644
    %2648 = vmatprep.subr.bf16.mxu0 0
    %2649 = vmatpush1.bf16.msra.mxu0 0
    %2650 = vmatprep.subr.bf16.mxu0 0
    %2651 = vmatpush1.bf16.msra.mxu0 0
    %2652 = vmatprep.subr.bf16.mxu0 0
    %2653 = vmatpush1.bf16.msra.mxu0 0
    %2654 = vmatprep.subr.bf16.mxu0 0
    %2655 = vmatpush1.bf16.msra.mxu0 0
    %2656 = vmatprep.subr.bf16.mxu0 0
    %2657 = vmatpush1.bf16.msra.mxu0 0
    %2658 = vmatprep.subr.bf16.mxu0 0
    %2659 = vmatpush1.bf16.msra.mxu0 0
    %2660 = vmatprep.subr.bf16.mxu0 0
    %2661 = vmatpush1.bf16.msra.mxu0 0
    %2662 = vmatprep.subr.bf16.mxu0 0
    %2663 = vmatpush1.bf16.msra.mxu0 0
    %2664 = vmatprep.subr.bf16.mxu0 0
    %2665 = vmatpush1.bf16.msra.mxu0 0
    %2666 = vmatprep.subr.bf16.mxu0 0
    %2667 = vmatpush1.bf16.msra.mxu0 0
    %2668 = vmatprep.subr.bf16.mxu0 0
    %2669 = vmatpush1.bf16.msra.mxu0 0
    %2670 = vmatprep.subr.bf16.mxu0 0
    %2671 = vmatpush1.bf16.msra.mxu0 0
    %2672 = vmatprep.subr.bf16.mxu0 0
    %2673 = vmatpush1.bf16.msra.mxu0 0
    %2674 = vmatprep.subr.bf16.mxu0 0
    %2675 = vmatpush1.bf16.msra.mxu0 0
    %2676 = vmatprep.subr.bf16.mxu0 0
    %2677 = vmatpush1.bf16.msra.mxu0 0
    %2678 = vmatprep.mubr.bf16.mxu0 0
    %2679 = vmatmul.mubr.bf16.gmra.mrb[0].mxu0 %v2641
    %v2680 = vpop.f32.mrb[0].mxu0
    %v2681 = vadd.f32 0.0, %v2680
    %v2682 = vpop.f32.mrb[0].mxu0
    %v2683 = vpop.f32.mrb[0].mxu0
    %v2684 = vadd.f32 0.0, %v2683
    %v2685 = vpop.f32.mrb[0].mxu0
    %2686 = vdwg.mxu0
    %v2688 = vsel %vm737, %v2416, 0
    %v2691 = vsel %vm422, %v2190, 0
    %2693 = vmatprep.subr.bf16.mxu0 0
    %2694 = vmatpush1.bf16.msra.mxu0 %v2691
    %2695 = vmatprep.subr.bf16.mxu0 0
    %2696 = vmatpush1.bf16.msra.mxu0 0
    %2697 = vmatprep.subr.bf16.mxu0 0
    %2698 = vmatpush1.bf16.msra.mxu0 0
    %2699 = vmatprep.subr.bf16.mxu0 0
    %2700 = vmatpush1.bf16.msra.mxu0 0
    %2701 = vmatprep.subr.bf16.mxu0 0
    %2702 = vmatpush1.bf16.msra.mxu0 0
    %2703 = vmatprep.subr.bf16.mxu0 0
    %2704 = vmatpush1.bf16.msra.mxu0 0
    %2705 = vmatprep.subr.bf16.mxu0 0
    %2706 = vmatpush1.bf16.msra.mxu0 0
    %2707 = vmatprep.subr.bf16.mxu0 0
    %2708 = vmatpush1.bf16.msra.mxu0 0
    %2709 = vmatprep.subr.bf16.mxu0 0
    %2710 = vmatpush1.bf16.msra.mxu0 0
    %2711 = vmatprep.subr.bf16.mxu0 0
    %2712 = vmatpush1.bf16.msra.mxu0 0
    %2713 = vmatprep.subr.bf16.mxu0 0
    %2714 = vmatpush1.bf16.msra.mxu0 0
    %2715 = vmatprep.subr.bf16.mxu0 0
    %2716 = vmatpush1.bf16.msra.mxu0 0
    %2717 = vmatprep.subr.bf16.mxu0 0
    %2718 = vmatpush1.bf16.msra.mxu0 0
    %2719 = vmatprep.subr.bf16.mxu0 0
    %2720 = vmatpush1.bf16.msra.mxu0 0
    %2721 = vmatprep.subr.bf16.mxu0 0
    %2722 = vmatpush1.bf16.msra.mxu0 0
    %2723 = vmatprep.subr.bf16.mxu0 0
    %2724 = vmatpush1.bf16.msra.mxu0 0
    %2725 = vmatprep.mubr.bf16.mxu0 0
    %2726 = vmatmul.mubr.bf16.gmra.mrb[0].mxu0 %v2688
    %v2727 = vpop.f32.mrb[0].mxu0
    %v2728 = vadd.f32 %v2681, %v2727
    %v2729 = vpop.f32.mrb[0].mxu0
    %v2730 = vpop.f32.mrb[0].mxu0
    %v2731 = vadd.f32 %v2684, %v2730
    %v2732 = vpop.f32.mrb[0].mxu0
    %2733 = vdwg.mxu0
    %2734 = vrot.lane.b32.xlu0 %v2194, 112
    %v2735 = vpop.permute.xlu0 %2734
    %2736 = vrot.lane.b32.xlu0 %v2194, 80
    %v2737 = vpop.permute.xlu0 %2736
    %v2739 = vsel %vm737, %v2735, 0
    %v2742 = vsel %vm737, %v2737, 0
    %2744 = vmatprep.subr.bf16.mxu0 0
    %2745 = vmatpush1.bf16.xpose.msra.mxu0 %v2742
    %2746 = vmatprep.subr.bf16.mxu0 0
    %2747 = vmatpush1.bf16.xpose.msra.mxu0 0
    %2748 = vmatprep.subr.bf16.mxu0 0
    %2749 = vmatpush1.bf16.xpose.msra.mxu0 0
    %2750 = vmatprep.subr.bf16.mxu0 0
    %2751 = vmatpush1.bf16.xpose.msra.mxu0 0
    %2752 = vmatprep.subr.bf16.mxu0 0
    %2753 = vmatpush1.bf16.xpose.msra.mxu0 0
    %2754 = vmatprep.subr.bf16.mxu0 0
    %2755 = vmatpush1.bf16.xpose.msra.mxu0 0
    %2756 = vmatprep.subr.bf16.mxu0 0
    %2757 = vmatpush1.bf16.xpose.msra.mxu0 0
    %2758 = vmatprep.subr.bf16.mxu0 0
    %2759 = vmatpush1.bf16.xpose.msra.mxu0 0
    %2760 = vmatprep.subr.bf16.mxu0 0
    %2761 = vmatpush1.bf16.xpose.msra.mxu0 0
    %2762 = vmatprep.subr.bf16.mxu0 0
    %2763 = vmatpush1.bf16.xpose.msra.mxu0 0
    %2764 = vmatprep.subr.bf16.mxu0 0
    %2765 = vmatpush1.bf16.xpose.msra.mxu0 0
    %2766 = vmatprep.subr.bf16.mxu0 0
    %2767 = vmatpush1.bf16.xpose.msra.mxu0 0
    %2768 = vmatprep.subr.bf16.mxu0 0
    %2769 = vmatpush1.bf16.xpose.msra.mxu0 0
    %2770 = vmatprep.subr.bf16.mxu0 0
    %2771 = vmatpush1.bf16.xpose.msra.mxu0 0
    %2772 = vmatprep.subr.bf16.mxu0 0
    %2773 = vmatpush1.bf16.xpose.msra.mxu0 0
    %2774 = vmatprep.subr.bf16.mxu0 0
    %2775 = vmatpush1.bf16.xpose.msra.mxu0 0
    %2776 = vmatprep.mubr.bf16.mxu0 0
    %2777 = vmatmul.mubr.bf16.gmra.mrb[0].mxu0 %v2739
    %v2778 = vpop.f32.mrb[0].mxu0
    %v2779 = vadd.f32 0.0, %v2778
    %v2780 = vpop.f32.mrb[0].mxu0
    %v2781 = vpop.f32.mrb[0].mxu0
    %v2782 = vpop.f32.mrb[0].mxu0
    %2783 = vdwg.mxu0
    %2784 = vrot.lane.b32.xlu0 %v2195, 112
    %v2785 = vpop.permute.xlu0 %2784
    %2786 = vrot.lane.b32.xlu0 %v2195, 80
    %v2787 = vpop.permute.xlu0 %2786
    %v2789 = vsel %vm737, %v2785, 0
    %v2792 = vsel %vm737, %v2787, 0
    %2794 = vmatprep.subr.bf16.mxu0 0
    %2795 = vmatpush1.bf16.xpose.msra.mxu0 %v2792
    %2796 = vmatprep.subr.bf16.mxu0 0
    %2797 = vmatpush1.bf16.xpose.msra.mxu0 0
    %2798 = vmatprep.subr.bf16.mxu0 0
    %2799 = vmatpush1.bf16.xpose.msra.mxu0 0
    %2800 = vmatprep.subr.bf16.mxu0 0
    %2801 = vmatpush1.bf16.xpose.msra.mxu0 0
    %2802 = vmatprep.subr.bf16.mxu0 0
    %2803 = vmatpush1.bf16.xpose.msra.mxu0 0
    %2804 = vmatprep.subr.bf16.mxu0 0
    %2805 = vmatpush1.bf16.xpose.msra.mxu0 0
    %2806 = vmatprep.subr.bf16.mxu0 0
    %2807 = vmatpush1.bf16.xpose.msra.mxu0 0
    %2808 = vmatprep.subr.bf16.mxu0 0
    %2809 = vmatpush1.bf16.xpose.msra.mxu0 0
    %2810 = vmatprep.subr.bf16.mxu0 0
    %2811 = vmatpush1.bf16.xpose.msra.mxu0 0
    %2812 = vmatprep.subr.bf16.mxu0 0
    %2813 = vmatpush1.bf16.xpose.msra.mxu0 0
    %2814 = vmatprep.subr.bf16.mxu0 0
    %2815 = vmatpush1.bf16.xpose.msra.mxu0 0
    %2816 = vmatprep.subr.bf16.mxu0 0
    %2817 = vmatpush1.bf16.xpose.msra.mxu0 0
    %2818 = vmatprep.subr.bf16.mxu0 0
    %2819 = vmatpush1.bf16.xpose.msra.mxu0 0
    %2820 = vmatprep.subr.bf16.mxu0 0
    %2821 = vmatpush1.bf16.xpose.msra.mxu0 0
    %2822 = vmatprep.subr.bf16.mxu0 0
    %2823 = vmatpush1.bf16.xpose.msra.mxu0 0
    %2824 = vmatprep.subr.bf16.mxu0 0
    %2825 = vmatpush1.bf16.xpose.msra.mxu0 0
    %2826 = vmatprep.mubr.bf16.mxu0 0
    %2827 = vmatmul.mubr.bf16.gmra.mrb[0].mxu0 %v2789
    %v2828 = vpop.f32.mrb[0].mxu0
    %v2829 = vadd.f32 0.0, %v2828
    %v2830 = vpop.f32.mrb[0].mxu0
    %v2831 = vpop.f32.mrb[0].mxu0
    %v2832 = vpop.f32.mrb[0].mxu0
    %2833 = vdwg.mxu0
    %v2834 = vmul.f32 %v2779, 0.35355338
    %v2835 = vmul.f32 %v2829, 0.35355338
    %v2836 = vsel %vm737, %v2834, -inf
    %2837 = vmax.xlane.f32.xlu0 %v2836
    %v2838 = vpop.xlane.xlu0 %2837
    %v2839 = vsel %vm737, %v2835, -inf
    %2840 = vmax.xlane.f32.xlu0 %v2839
    %v2841 = vpop.xlane.xlu0 %2840
    %v2842 = vsub.f32 %v2834, %v2838
    %v2843 = vsub.f32 %v2835, %v2841
    %v2844 = vmul.f32 %v2842, 1.442695
    %v2845 = vpow.pop %v2844
    %v2846 = vmul.f32 %v2843, 1.442695
    %v2847 = vpow.pop %v2846
    %v2848 = vsel %vm737, %v2845, 0.0
    %2849 = vadd.xlane.f32.xlu0 %v2848
    %v2850 = vpop.xlane.xlu0 %2849
    %v2851 = vsel %vm737, %v2847, 0.0
    %2852 = vadd.xlane.f32.xlu0 %v2851
    %v2853 = vpop.xlane.xlu0 %2852
    %v2854 = vrcp.pop %v2850
    %v2855 = vrcp.pop %v2853
    %v2856 = vmul.f32 %v2845, %v2854
    %v2857 = vmul.f32 %v2847, %v2855
    %v2858 = vpack.c.bf16 %v2856, %v2856
    %v2859 = vpack.c.bf16 %v2857, %v2857
    %2860 = vrot.lane.b32.xlu0 %v2194, 48
    %v2861 = vpop.permute.xlu0 %2860
    %v2863 = vsel %vm737, %v2858, 0
    %v2866 = vsel %vm422, %v2861, 0
    %2868 = vmatprep.subr.bf16.mxu0 0
    %2869 = vmatpush1.bf16.msra.mxu0 %v2866
    %2870 = vmatprep.subr.bf16.mxu0 0
    %2871 = vmatpush1.bf16.msra.mxu0 0
    %2872 = vmatprep.subr.bf16.mxu0 0
    %2873 = vmatpush1.bf16.msra.mxu0 0
    %2874 = vmatprep.subr.bf16.mxu0 0
    %2875 = vmatpush1.bf16.msra.mxu0 0
    %2876 = vmatprep.subr.bf16.mxu0 0
    %2877 = vmatpush1.bf16.msra.mxu0 0
    %2878 = vmatprep.subr.bf16.mxu0 0
    %2879 = vmatpush1.bf16.msra.mxu0 0
    %2880 = vmatprep.subr.bf16.mxu0 0
    %2881 = vmatpush1.bf16.msra.mxu0 0
    %2882 = vmatprep.subr.bf16.mxu0 0
    %2883 = vmatpush1.bf16.msra.mxu0 0
    %2884 = vmatprep.subr.bf16.mxu0 0
    %2885 = vmatpush1.bf16.msra.mxu0 0
    %2886 = vmatprep.subr.bf16.mxu0 0
    %2887 = vmatpush1.bf16.msra.mxu0 0
    %2888 = vmatprep.subr.bf16.mxu0 0
    %2889 = vmatpush1.bf16.msra.mxu0 0
    %2890 = vmatprep.subr.bf16.mxu0 0
    %2891 = vmatpush1.bf16.msra.mxu0 0
    %2892 = vmatprep.subr.bf16.mxu0 0
    %2893 = vmatpush1.bf16.msra.mxu0 0
    %2894 = vmatprep.subr.bf16.mxu0 0
    %2895 = vmatpush1.bf16.msra.mxu0 0
    %2896 = vmatprep.subr.bf16.mxu0 0
    %2897 = vmatpush1.bf16.msra.mxu0 0
    %2898 = vmatprep.subr.bf16.mxu0 0
    %2899 = vmatpush1.bf16.msra.mxu0 0
    %2900 = vmatprep.mubr.bf16.mxu0 0
    %2901 = vmatmul.mubr.bf16.gmra.mrb[0].mxu0 %v2863
    %v2902 = vpop.f32.mrb[0].mxu0
    %v2903 = vadd.f32 0.0, %v2902
    %v2904 = vpop.f32.mrb[0].mxu0
    %v2905 = vpop.f32.mrb[0].mxu0
    %v2906 = vpop.f32.mrb[0].mxu0
    %2907 = vdwg.mxu0
    %2908 = vrot.lane.b32.xlu0 %v2195, 48
    %v2909 = vpop.permute.xlu0 %2908
    %v2911 = vsel %vm737, %v2859, 0
    %v2914 = vsel %vm422, %v2909, 0
    %2916 = vmatprep.subr.bf16.mxu0 0
    %2917 = vmatpush1.bf16.msra.mxu0 %v2914
    %2918 = vmatprep.subr.bf16.mxu0 0
    %2919 = vmatpush1.bf16.msra.mxu0 0
    %2920 = vmatprep.subr.bf16.mxu0 0
    %2921 = vmatpush1.bf16.msra.mxu0 0
    %2922 = vmatprep.subr.bf16.mxu0 0
    %2923 = vmatpush1.bf16.msra.mxu0 0
    %2924 = vmatprep.subr.bf16.mxu0 0
    %2925 = vmatpush1.bf16.msra.mxu0 0
    %2926 = vmatprep.subr.bf16.mxu0 0
    %2927 = vmatpush1.bf16.msra.mxu0 0
    %2928 = vmatprep.subr.bf16.mxu0 0
    %2929 = vmatpush1.bf16.msra.mxu0 0
    %2930 = vmatprep.subr.bf16.mxu0 0
    %2931 = vmatpush1.bf16.msra.mxu0 0
    %2932 = vmatprep.subr.bf16.mxu0 0
    %2933 = vmatpush1.bf16.msra.mxu0 0
    %2934 = vmatprep.subr.bf16.mxu0 0
    %2935 = vmatpush1.bf16.msra.mxu0 0
    %2936 = vmatprep.subr.bf16.mxu0 0
    %2937 = vmatpush1.bf16.msra.mxu0 0
    %2938 = vmatprep.subr.bf16.mxu0 0
    %2939 = vmatpush1.bf16.msra.mxu0 0
    %2940 = vmatprep.subr.bf16.mxu0 0
    %2941 = vmatpush1.bf16.msra.mxu0 0
    %2942 = vmatprep.subr.bf16.mxu0 0
    %2943 = vmatpush1.bf16.msra.mxu0 0
    %2944 = vmatprep.subr.bf16.mxu0 0
    %2945 = vmatpush1.bf16.msra.mxu0 0
    %2946 = vmatprep.subr.bf16.mxu0 0
    %2947 = vmatpush1.bf16.msra.mxu0 0
    %2948 = vmatprep.mubr.bf16.mxu0 0
    %2949 = vmatmul.mubr.bf16.gmra.mrb[0].mxu0 %v2911
    %v2950 = vpop.f32.mrb[0].mxu0
    %v2951 = vadd.f32 0.0, %v2950
    %v2952 = vpop.f32.mrb[0].mxu0
    %v2953 = vpop.f32.mrb[0].mxu0
    %v2954 = vpop.f32.mrb[0].mxu0
    %2955 = vdwg.mxu0
    %v2956 = vpack.c.bf16 %v2951, %v2903
    %v2958 = vsel %vm737, %v2956, 0
    %v2961 = vsel %vm422, %v2192, 0
    %2963 = vmatprep.subr.bf16.mxu0 0
    %2964 = vmatpush1.bf16.msra.mxu0 %v2961
    %2965 = vmatprep.subr.bf16.mxu0 0
    %2966 = vmatpush1.bf16.msra.mxu0 0
    %2967 = vmatprep.subr.bf16.mxu0 0
    %2968 = vmatpush1.bf16.msra.mxu0 0
    %2969 = vmatprep.subr.bf16.mxu0 0
    %2970 = vmatpush1.bf16.msra.mxu0 0
    %2971 = vmatprep.subr.bf16.mxu0 0
    %2972 = vmatpush1.bf16.msra.mxu0 0
    %2973 = vmatprep.subr.bf16.mxu0 0
    %2974 = vmatpush1.bf16.msra.mxu0 0
    %2975 = vmatprep.subr.bf16.mxu0 0
    %2976 = vmatpush1.bf16.msra.mxu0 0
    %2977 = vmatprep.subr.bf16.mxu0 0
    %2978 = vmatpush1.bf16.msra.mxu0 0
    %2979 = vmatprep.subr.bf16.mxu0 0
    %2980 = vmatpush1.bf16.msra.mxu0 0
    %2981 = vmatprep.subr.bf16.mxu0 0
    %2982 = vmatpush1.bf16.msra.mxu0 0
    %2983 = vmatprep.subr.bf16.mxu0 0
    %2984 = vmatpush1.bf16.msra.mxu0 0
    %2985 = vmatprep.subr.bf16.mxu0 0
    %2986 = vmatpush1.bf16.msra.mxu0 0
    %2987 = vmatprep.subr.bf16.mxu0 0
    %2988 = vmatpush1.bf16.msra.mxu0 0
    %2989 = vmatprep.subr.bf16.mxu0 0
    %2990 = vmatpush1.bf16.msra.mxu0 0
    %2991 = vmatprep.subr.bf16.mxu0 0
    %2992 = vmatpush1.bf16.msra.mxu0 0
    %2993 = vmatprep.subr.bf16.mxu0 0
    %2994 = vmatpush1.bf16.msra.mxu0 0
    %2995 = vmatprep.mubr.bf16.mxu0 0
    %2996 = vmatmul.mubr.bf16.gmra.mrb[0].mxu0 %v2958
    %v2997 = vpop.f32.mrb[0].mxu0
    %v2998 = vadd.f32 0.0, %v2997
    %v2999 = vpop.f32.mrb[0].mxu0
    %v3000 = vpop.f32.mrb[0].mxu0
    %v3001 = vadd.f32 0.0, %v3000
    %v3002 = vpop.f32.mrb[0].mxu0
    %3003 = vdwg.mxu0
    %v3004 = vadd.f32 %v2728, %v2998
    %v3005 = vadd.f32 %v2731, %v3001
    %3006 = vrot.lane.b32.xlu0 %v2194, 104
    %v3007 = vpop.permute.xlu0 %3006
    %3008 = vrot.lane.b32.xlu0 %v2194, 72
    %v3009 = vpop.permute.xlu0 %3008
    %v3011 = vsel %vm737, %v3007, 0
    %v3014 = vsel %vm737, %v3009, 0
    %3016 = vmatprep.subr.bf16.mxu0 0
    %3017 = vmatpush1.bf16.xpose.msra.mxu0 %v3014
    %3018 = vmatprep.subr.bf16.mxu0 0
    %3019 = vmatpush1.bf16.xpose.msra.mxu0 0
    %3020 = vmatprep.subr.bf16.mxu0 0
    %3021 = vmatpush1.bf16.xpose.msra.mxu0 0
    %3022 = vmatprep.subr.bf16.mxu0 0
    %3023 = vmatpush1.bf16.xpose.msra.mxu0 0
    %3024 = vmatprep.subr.bf16.mxu0 0
    %3025 = vmatpush1.bf16.xpose.msra.mxu0 0
    %3026 = vmatprep.subr.bf16.mxu0 0
    %3027 = vmatpush1.bf16.xpose.msra.mxu0 0
    %3028 = vmatprep.subr.bf16.mxu0 0
    %3029 = vmatpush1.bf16.xpose.msra.mxu0 0
    %3030 = vmatprep.subr.bf16.mxu0 0
    %3031 = vmatpush1.bf16.xpose.msra.mxu0 0
    %3032 = vmatprep.subr.bf16.mxu0 0
    %3033 = vmatpush1.bf16.xpose.msra.mxu0 0
    %3034 = vmatprep.subr.bf16.mxu0 0
    %3035 = vmatpush1.bf16.xpose.msra.mxu0 0
    %3036 = vmatprep.subr.bf16.mxu0 0
    %3037 = vmatpush1.bf16.xpose.msra.mxu0 0
    %3038 = vmatprep.subr.bf16.mxu0 0
    %3039 = vmatpush1.bf16.xpose.msra.mxu0 0
    %3040 = vmatprep.subr.bf16.mxu0 0
    %3041 = vmatpush1.bf16.xpose.msra.mxu0 0
    %3042 = vmatprep.subr.bf16.mxu0 0
    %3043 = vmatpush1.bf16.xpose.msra.mxu0 0
    %3044 = vmatprep.subr.bf16.mxu0 0
    %3045 = vmatpush1.bf16.xpose.msra.mxu0 0
    %3046 = vmatprep.subr.bf16.mxu0 0
    %3047 = vmatpush1.bf16.xpose.msra.mxu0 0
    %3048 = vmatprep.mubr.bf16.mxu0 0
    %3049 = vmatmul.mubr.bf16.gmra.mrb[0].mxu0 %v3011
    %v3050 = vpop.f32.mrb[0].mxu0
    %v3051 = vadd.f32 0.0, %v3050
    %v3052 = vpop.f32.mrb[0].mxu0
    %v3053 = vpop.f32.mrb[0].mxu0
    %v3054 = vpop.f32.mrb[0].mxu0
    %3055 = vdwg.mxu0
    %3056 = vrot.lane.b32.xlu0 %v2195, 104
    %v3057 = vpop.permute.xlu0 %3056
    %3058 = vrot.lane.b32.xlu0 %v2195, 72
    %v3059 = vpop.permute.xlu0 %3058
    %v3061 = vsel %vm737, %v3057, 0
    %v3064 = vsel %vm737, %v3059, 0
    %3066 = vmatprep.subr.bf16.mxu0 0
    %3067 = vmatpush1.bf16.xpose.msra.mxu0 %v3064
    %3068 = vmatprep.subr.bf16.mxu0 0
    %3069 = vmatpush1.bf16.xpose.msra.mxu0 0
    %3070 = vmatprep.subr.bf16.mxu0 0
    %3071 = vmatpush1.bf16.xpose.msra.mxu0 0
    %3072 = vmatprep.subr.bf16.mxu0 0
    %3073 = vmatpush1.bf16.xpose.msra.mxu0 0
    %3074 = vmatprep.subr.bf16.mxu0 0
    %3075 = vmatpush1.bf16.xpose.msra.mxu0 0
    %3076 = vmatprep.subr.bf16.mxu0 0
    %3077 = vmatpush1.bf16.xpose.msra.mxu0 0
    %3078 = vmatprep.subr.bf16.mxu0 0
    %3079 = vmatpush1.bf16.xpose.msra.mxu0 0
    %3080 = vmatprep.subr.bf16.mxu0 0
    %3081 = vmatpush1.bf16.xpose.msra.mxu0 0
    %3082 = vmatprep.subr.bf16.mxu0 0
    %3083 = vmatpush1.bf16.xpose.msra.mxu0 0
    %3084 = vmatprep.subr.bf16.mxu0 0
    %3085 = vmatpush1.bf16.xpose.msra.mxu0 0
    %3086 = vmatprep.subr.bf16.mxu0 0
    %3087 = vmatpush1.bf16.xpose.msra.mxu0 0
    %3088 = vmatprep.subr.bf16.mxu0 0
    %3089 = vmatpush1.bf16.xpose.msra.mxu0 0
    %3090 = vmatprep.subr.bf16.mxu0 0
    %3091 = vmatpush1.bf16.xpose.msra.mxu0 0
    %3092 = vmatprep.subr.bf16.mxu0 0
    %3093 = vmatpush1.bf16.xpose.msra.mxu0 0
    %3094 = vmatprep.subr.bf16.mxu0 0
    %3095 = vmatpush1.bf16.xpose.msra.mxu0 0
    %3096 = vmatprep.subr.bf16.mxu0 0
    %3097 = vmatpush1.bf16.xpose.msra.mxu0 0
    %3098 = vmatprep.mubr.bf16.mxu0 0
    %3099 = vmatmul.mubr.bf16.gmra.mrb[0].mxu0 %v3061
    %v3100 = vpop.f32.mrb[0].mxu0
    %v3101 = vadd.f32 0.0, %v3100
    %v3102 = vpop.f32.mrb[0].mxu0
    %v3103 = vpop.f32.mrb[0].mxu0
    %v3104 = vpop.f32.mrb[0].mxu0
    %3105 = vdwg.mxu0
    %v3106 = vmul.f32 %v3051, 0.35355338
    %v3107 = vmul.f32 %v3101, 0.35355338
    %v3108 = vsel %vm737, %v3106, -inf
    %3109 = vmax.xlane.f32.xlu0 %v3108
    %v3110 = vpop.xlane.xlu0 %3109
    %v3111 = vsel %vm737, %v3107, -inf
    %3112 = vmax.xlane.f32.xlu0 %v3111
    %v3113 = vpop.xlane.xlu0 %3112
    %v3114 = vsub.f32 %v3106, %v3110
    %v3115 = vsub.f32 %v3107, %v3113
    %v3116 = vmul.f32 %v3114, 1.442695
    %v3117 = vpow.pop %v3116
    %v3118 = vmul.f32 %v3115, 1.442695
    %v3119 = vpow.pop %v3118
    %v3120 = vsel %vm737, %v3117, 0.0
    %3121 = vadd.xlane.f32.xlu0 %v3120
    %v3122 = vpop.xlane.xlu0 %3121
    %v3123 = vsel %vm737, %v3119, 0.0
    %3124 = vadd.xlane.f32.xlu0 %v3123
    %v3125 = vpop.xlane.xlu0 %3124
    %v3126 = vrcp.pop %v3122
    %v3127 = vrcp.pop %v3125
    %v3128 = vmul.f32 %v3117, %v3126
    %v3129 = vmul.f32 %v3119, %v3127
    %v3130 = vpack.c.bf16 %v3128, %v3128
    %v3131 = vpack.c.bf16 %v3129, %v3129
    %3132 = vrot.lane.b32.xlu0 %v2194, 40
    %v3133 = vpop.permute.xlu0 %3132
    %v3135 = vsel %vm737, %v3130, 0
    %v3138 = vsel %vm422, %v3133, 0
    %3140 = vmatprep.subr.bf16.mxu0 0
    %3141 = vmatpush1.bf16.msra.mxu0 %v3138
    %3142 = vmatprep.subr.bf16.mxu0 0
    %3143 = vmatpush1.bf16.msra.mxu0 0
    %3144 = vmatprep.subr.bf16.mxu0 0
    %3145 = vmatpush1.bf16.msra.mxu0 0
    %3146 = vmatprep.subr.bf16.mxu0 0
    %3147 = vmatpush1.bf16.msra.mxu0 0
    %3148 = vmatprep.subr.bf16.mxu0 0
    %3149 = vmatpush1.bf16.msra.mxu0 0
    %3150 = vmatprep.subr.bf16.mxu0 0
    %3151 = vmatpush1.bf16.msra.mxu0 0
    %3152 = vmatprep.subr.bf16.mxu0 0
    %3153 = vmatpush1.bf16.msra.mxu0 0
    %3154 = vmatprep.subr.bf16.mxu0 0
    %3155 = vmatpush1.bf16.msra.mxu0 0
    %3156 = vmatprep.subr.bf16.mxu0 0
    %3157 = vmatpush1.bf16.msra.mxu0 0
    %3158 = vmatprep.subr.bf16.mxu0 0
    %3159 = vmatpush1.bf16.msra.mxu0 0
    %3160 = vmatprep.subr.bf16.mxu0 0
    %3161 = vmatpush1.bf16.msra.mxu0 0
    %3162 = vmatprep.subr.bf16.mxu0 0
    %3163 = vmatpush1.bf16.msra.mxu0 0
    %3164 = vmatprep.subr.bf16.mxu0 0
    %3165 = vmatpush1.bf16.msra.mxu0 0
    %3166 = vmatprep.subr.bf16.mxu0 0
    %3167 = vmatpush1.bf16.msra.mxu0 0
    %3168 = vmatprep.subr.bf16.mxu0 0
    %3169 = vmatpush1.bf16.msra.mxu0 0
    %3170 = vmatprep.subr.bf16.mxu0 0
    %3171 = vmatpush1.bf16.msra.mxu0 0
    %3172 = vmatprep.mubr.bf16.mxu0 0
    %3173 = vmatmul.mubr.bf16.gmra.mrb[0].mxu0 %v3135
    %v3174 = vpop.f32.mrb[0].mxu0
    %v3175 = vadd.f32 0.0, %v3174
    %v3176 = vpop.f32.mrb[0].mxu0
    %v3177 = vpop.f32.mrb[0].mxu0
    %v3178 = vpop.f32.mrb[0].mxu0
    %3179 = vdwg.mxu0
    %3180 = vrot.lane.b32.xlu0 %v2195, 40
    %v3181 = vpop.permute.xlu0 %3180
    %v3183 = vsel %vm737, %v3131, 0
    %v3186 = vsel %vm422, %v3181, 0
    %3188 = vmatprep.subr.bf16.mxu0 0
    %3189 = vmatpush1.bf16.msra.mxu0 %v3186
    %3190 = vmatprep.subr.bf16.mxu0 0
    %3191 = vmatpush1.bf16.msra.mxu0 0
    %3192 = vmatprep.subr.bf16.mxu0 0
    %3193 = vmatpush1.bf16.msra.mxu0 0
    %3194 = vmatprep.subr.bf16.mxu0 0
    %3195 = vmatpush1.bf16.msra.mxu0 0
    %3196 = vmatprep.subr.bf16.mxu0 0
    %3197 = vmatpush1.bf16.msra.mxu0 0
    %3198 = vmatprep.subr.bf16.mxu0 0
    %3199 = vmatpush1.bf16.msra.mxu0 0
    %3200 = vmatprep.subr.bf16.mxu0 0
    %3201 = vmatpush1.bf16.msra.mxu0 0
    %3202 = vmatprep.subr.bf16.mxu0 0
    %3203 = vmatpush1.bf16.msra.mxu0 0
    %3204 = vmatprep.subr.bf16.mxu0 0
    %3205 = vmatpush1.bf16.msra.mxu0 0
    %3206 = vmatprep.subr.bf16.mxu0 0
    %3207 = vmatpush1.bf16.msra.mxu0 0
    %3208 = vmatprep.subr.bf16.mxu0 0
    %3209 = vmatpush1.bf16.msra.mxu0 0
    %3210 = vmatprep.subr.bf16.mxu0 0
    %3211 = vmatpush1.bf16.msra.mxu0 0
    %3212 = vmatprep.subr.bf16.mxu0 0
    %3213 = vmatpush1.bf16.msra.mxu0 0
    %3214 = vmatprep.subr.bf16.mxu0 0
    %3215 = vmatpush1.bf16.msra.mxu0 0
    %3216 = vmatprep.subr.bf16.mxu0 0
    %3217 = vmatpush1.bf16.msra.mxu0 0
    %3218 = vmatprep.subr.bf16.mxu0 0
    %3219 = vmatpush1.bf16.msra.mxu0 0
    %3220 = vmatprep.mubr.bf16.mxu0 0
    %3221 = vmatmul.mubr.bf16.gmra.mrb[0].mxu0 %v3183
    %v3222 = vpop.f32.mrb[0].mxu0
    %v3223 = vadd.f32 0.0, %v3222
    %v3224 = vpop.f32.mrb[0].mxu0
    %v3225 = vpop.f32.mrb[0].mxu0
    %v3226 = vpop.f32.mrb[0].mxu0
    %3227 = vdwg.mxu0
    %v3228 = vpack.c.bf16 %v3223, %v3175
    %v3230 = vsel %vm737, %v3228, 0
    %v3233 = vsel %vm422, %v2193, 0
    %3235 = vmatprep.subr.bf16.mxu0 0
    %3236 = vmatpush1.bf16.msra.mxu0 %v3233
    %3237 = vmatprep.subr.bf16.mxu0 0
    %3238 = vmatpush1.bf16.msra.mxu0 0
    %3239 = vmatprep.subr.bf16.mxu0 0
    %3240 = vmatpush1.bf16.msra.mxu0 0
    %3241 = vmatprep.subr.bf16.mxu0 0
    %3242 = vmatpush1.bf16.msra.mxu0 0
    %3243 = vmatprep.subr.bf16.mxu0 0
    %3244 = vmatpush1.bf16.msra.mxu0 0
    %3245 = vmatprep.subr.bf16.mxu0 0
    %3246 = vmatpush1.bf16.msra.mxu0 0
    %3247 = vmatprep.subr.bf16.mxu0 0
    %3248 = vmatpush1.bf16.msra.mxu0 0
    %3249 = vmatprep.subr.bf16.mxu0 0
    %3250 = vmatpush1.bf16.msra.mxu0 0
    %3251 = vmatprep.subr.bf16.mxu0 0
    %3252 = vmatpush1.bf16.msra.mxu0 0
    %3253 = vmatprep.subr.bf16.mxu0 0
    %3254 = vmatpush1.bf16.msra.mxu0 0
    %3255 = vmatprep.subr.bf16.mxu0 0
    %3256 = vmatpush1.bf16.msra.mxu0 0
    %3257 = vmatprep.subr.bf16.mxu0 0
    %3258 = vmatpush1.bf16.msra.mxu0 0
    %3259 = vmatprep.subr.bf16.mxu0 0
    %3260 = vmatpush1.bf16.msra.mxu0 0
    %3261 = vmatprep.subr.bf16.mxu0 0
    %3262 = vmatpush1.bf16.msra.mxu0 0
    %3263 = vmatprep.subr.bf16.mxu0 0
    %3264 = vmatpush1.bf16.msra.mxu0 0
    %3265 = vmatprep.subr.bf16.mxu0 0
    %3266 = vmatpush1.bf16.msra.mxu0 0
    %3267 = vmatprep.mubr.bf16.mxu0 0
    %3268 = vmatmul.mubr.bf16.gmra.mrb[0].mxu0 %v3230
    %v3269 = vpop.f32.mrb[0].mxu0
    %v3270 = vadd.f32 0.0, %v3269
    %v3271 = vpop.f32.mrb[0].mxu0
    %v3272 = vpop.f32.mrb[0].mxu0
    %v3273 = vadd.f32 0.0, %v3272
    %v3274 = vpop.f32.mrb[0].mxu0
    %3275 = vdwg.mxu0
    %v3276 = vadd.f32 %v3004, %v3270
    %v3277 = vadd.f32 %v3005, %v3273
    %v3278 = vadd.f32 %v2071, %v3276
    %v3279 = vadd.f32 %v2072, %v3277
    %s3280 = scalar_lea.vmem %s33, 1
    %v3281 = vld [vmem:[%s3280] sm:$0x1]
    %v3283 = vlaneseq
    %v3284 = vshrl.u32 %v3283, 7
    %v3285 = vsub.s32 0, %v3284
    %v3286 = vrot.slane %v3281, %v3285
    %v3288 = vadd.f32 %v3278, %v3286
    %v3289 = vadd.f32 %v3279, %v3286
    %s3290 = scalar_lea.vmem %s35, 1
    %v3291 = vld [vmem:[%s3290] sm:$0x1]
    %s3292 = scalar_lea.vmem %s37, 1
    %v3293 = vld [vmem:[%s3292] sm:$0x1]
    %v3294 = vsel %vm616, %v3288, 0.0
    %3295 = vadd.xlane.f32.xlu0 %v3294
    %v3296 = vpop.xlane.xlu0 %3295
    %v3297 = vsel %vm616, %v3289, 0.0
    %3298 = vadd.xlane.f32.xlu0 %v3297
    %v3299 = vpop.xlane.xlu0 %3298
    %v3300 = vmul.f32 %v3296, %v623
    %v3301 = vmul.f32 %v3299, %v623
    %v3302 = vsub.f32 %v3288, %v3300
    %v3303 = vsub.f32 %v3289, %v3301
    %v3304 = vmul.f32 %v3302, %v3302
    %v3305 = vmul.f32 %v3303, %v3303
    %v3306 = vsel %vm616, %v3304, 0.0
    %3307 = vadd.xlane.f32.xlu0 %v3306
    %v3308 = vpop.xlane.xlu0 %3307
    %v3309 = vsel %vm616, %v3305, 0.0
    %3310 = vadd.xlane.f32.xlu0 %v3309
    %v3311 = vpop.xlane.xlu0 %3310
    %v3312 = vmul.f32 %v3308, %v623
    %v3313 = vmul.f32 %v3311, %v623
    %v3314 = vadd.f32 %v3312, 1e-05
    %v3315 = vadd.f32 %v3313, 1e-05
    %v3316 = vrsqrt.pop %v3314
    %v3317 = vrsqrt.pop %v3315
    %v3318 = vmul.f32 %v3302, %v3316
    %v3319 = vmul.f32 %v3303, %v3317
    %v3321 = vlaneseq
    %v3322 = vshrl.u32 %v3321, 7
    %v3323 = vsub.s32 0, %v3322
    %v3324 = vrot.slane %v3291, %v3323
    %v3326 = vmul.f32 %v3318, %v3324
    %v3327 = vmul.f32 %v3319, %v3324
    %v3329 = vlaneseq
    %v3330 = vshrl.u32 %v3329, 7
    %v3331 = vsub.s32 0, %v3330
    %v3332 = vrot.slane %v3293, %v3331
    %v3334 = vadd.f32 %v3326, %v3332
    %v3335 = vadd.f32 %v3327, %v3332
    %v3336 = vpack.c.bf16 %v3335, %v3334
    %s3337 = scalar_lea.vmem %s39, 16
    %v3338 = vld [vmem:[%s3337] sm:$0xf]
    %v3339 = vld [vmem:[%s3337 + $0x4] sm:$0xf]
    %v3340 = vld [vmem:[%s3337 + $0x8] sm:$0xf]
    %v3341 = vld [vmem:[%s3337 + $0xc] sm:$0xf]
    %s3342 = scalar_lea.vmem %s41, 1
    %v3343 = vld [vmem:[%s3342] sm:$0x1]
    %v3345 = vlaneseq
    %v3346 = vshrl.u32 %v3345, 7
    %v3347 = vsub.s32 0, %v3346
    %v3348 = vrot.slane %v3343, %v3347
    %v3354 = vunpack.c.l.b16 %v3338
    %v3355 = vunpack.c.l.b16 %v3339
    %v3356 = vunpack.c.l.b16 %v3340
    %v3357 = vunpack.c.l.b16 %v3341
    %v3358 = vpack.c.b16 %v3355, %v3354
    %v3359 = vpack.c.b16 %v3357, %v3356
    %v3363 = vsel %vm616, %v3336, 0
    %3365 = vmatprep.subr.bf16.mxu0 0
    %3366 = vmatpush1.bf16.msra.mxu0 %v3358
    %3367 = vmatprep.subr.bf16.mxu0 0
    %3368 = vmatpush1.bf16.msra.mxu0 %v3359
    %3369 = vmatprep.subr.bf16.mxu0 0
    %3370 = vmatpush1.bf16.msra.mxu0 0
    %3371 = vmatprep.subr.bf16.mxu0 0
    %3372 = vmatpush1.bf16.msra.mxu0 0
    %3373 = vmatprep.subr.bf16.mxu0 0
    %3374 = vmatpush1.bf16.msra.mxu0 0
    %3375 = vmatprep.subr.bf16.mxu0 0
    %3376 = vmatpush1.bf16.msra.mxu0 0
    %3377 = vmatprep.subr.bf16.mxu0 0
    %3378 = vmatpush1.bf16.msra.mxu0 0
    %3379 = vmatprep.subr.bf16.mxu0 0
    %3380 = vmatpush1.bf16.msra.mxu0 0
    %3381 = vmatprep.subr.bf16.mxu0 0
    %3382 = vmatpush1.bf16.msra.mxu0 0
    %3383 = vmatprep.subr.bf16.mxu0 0
    %3384 = vmatpush1.bf16.msra.mxu0 0
    %3385 = vmatprep.subr.bf16.mxu0 0
    %3386 = vmatpush1.bf16.msra.mxu0 0
    %3387 = vmatprep.subr.bf16.mxu0 0
    %3388 = vmatpush1.bf16.msra.mxu0 0
    %3389 = vmatprep.subr.bf16.mxu0 0
    %3390 = vmatpush1.bf16.msra.mxu0 0
    %3391 = vmatprep.subr.bf16.mxu0 0
    %3392 = vmatpush1.bf16.msra.mxu0 0
    %3393 = vmatprep.subr.bf16.mxu0 0
    %3394 = vmatpush1.bf16.msra.mxu0 0
    %3395 = vmatprep.subr.bf16.mxu0 0
    %3396 = vmatpush1.bf16.msra.mxu0 0
    %3397 = vmatprep.mubr.bf16.mxu0 0
    %3398 = vmatmul.mubr.bf16.gmra.mrb[0].mxu0 %v3363
    %v3399 = vpop.f32.mrb[0].mxu0
    %v3400 = vadd.f32 %v3348, %v3399
    %v3401 = vpop.f32.mrb[0].mxu0
    %v3402 = vpop.f32.mrb[0].mxu0
    %v3403 = vadd.f32 %v3348, %v3402
    %v3404 = vpop.f32.mrb[0].mxu0
    %3405 = vdwg.mxu0
    %v3406 = vmul.f32 %v3400, 0.5
    %v3407 = vmul.f32 %v3403, 0.5
    %v3408 = vmul.f32 %v3400, 0.044715
    %v3409 = vmul.f32 %v3403, 0.044715
    %v3410 = vmul.f32 %v3408, %v3400
    %v3411 = vmul.f32 %v3409, %v3403
    %v3412 = vmul.f32 %v3410, %v3400
    %v3413 = vmul.f32 %v3411, %v3403
    %v3414 = vadd.f32 %v3400, %v3412
    %v3415 = vadd.f32 %v3403, %v3413
    %v3416 = vmul.f32 %v3414, 0.7978846
    %v3417 = vmul.f32 %v3415, 0.7978846
    %v3418 = vtanh.pop %v3416
    %v3419 = vtanh.pop %v3417
    %v3420 = vadd.f32 %v3418, 1.0
    %v3421 = vadd.f32 %v3419, 1.0
    %v3422 = vmul.f32 %v3406, %v3420
    %v3423 = vmul.f32 %v3407, %v3421
    %v3424 = vpack.c.bf16 %v3423, %v3422
    %s3425 = scalar_lea.vmem %s43, 64
    %v3426 = vld [vmem:[%s3425] sm:$0xf]
    %v3427 = vld [vmem:[%s3425 + $0x4] sm:$0xf]
    %v3428 = vld [vmem:[%s3425 + $0x8] sm:$0xf]
    %v3429 = vld [vmem:[%s3425 + $0xc] sm:$0xf]
    %v3430 = vld [vmem:[%s3425 + $0x10] sm:$0xf]
    %v3431 = vld [vmem:[%s3425 + $0x14] sm:$0xf]
    %v3432 = vld [vmem:[%s3425 + $0x18] sm:$0xf]
    %v3433 = vld [vmem:[%s3425 + $0x1c] sm:$0xf]
    %v3434 = vld [vmem:[%s3425 + $0x20] sm:$0xf]
    %v3435 = vld [vmem:[%s3425 + $0x24] sm:$0xf]
    %v3436 = vld [vmem:[%s3425 + $0x28] sm:$0xf]
    %v3437 = vld [vmem:[%s3425 + $0x2c] sm:$0xf]
    %v3438 = vld [vmem:[%s3425 + $0x30] sm:$0xf]
    %v3439 = vld [vmem:[%s3425 + $0x34] sm:$0xf]
    %v3440 = vld [vmem:[%s3425 + $0x38] sm:$0xf]
    %v3441 = vld [vmem:[%s3425 + $0x3c] sm:$0xf]
    %s3442 = scalar_lea.vmem %s45, 1
    %v3443 = vld [vmem:[%s3442] sm:$0x1]
    %v3445 = vlaneseq
    %v3446 = vshrl.u32 %v3445, 7
    %v3447 = vsub.s32 0, %v3446
    %v3448 = vrot.slane %v3443, %v3447
    %v3466 = vunpack.c.l.b16 %v3426
    %v3467 = vunpack.c.l.b16 %v3427
    %v3468 = vunpack.c.l.b16 %v3428
    %v3469 = vunpack.c.l.b16 %v3429
    %v3470 = vunpack.c.l.b16 %v3430
    %v3471 = vunpack.c.l.b16 %v3431
    %v3472 = vunpack.c.l.b16 %v3432
    %v3473 = vunpack.c.l.b16 %v3433
    %v3474 = vunpack.c.l.b16 %v3434
    %v3475 = vunpack.c.l.b16 %v3435
    %v3476 = vunpack.c.l.b16 %v3436
    %v3477 = vunpack.c.l.b16 %v3437
    %v3478 = vunpack.c.l.b16 %v3438
    %v3479 = vunpack.c.l.b16 %v3439
    %v3480 = vunpack.c.l.b16 %v3440
    %v3481 = vunpack.c.l.b16 %v3441
    %v3482 = vpack.c.b16 %v3467, %v3466
    %v3483 = vpack.c.b16 %v3469, %v3468
    %v3484 = vpack.c.b16 %v3471, %v3470
    %v3485 = vpack.c.b16 %v3473, %v3472
    %v3486 = vpack.c.b16 %v3475, %v3474
    %v3487 = vpack.c.b16 %v3477, %v3476
    %v3488 = vpack.c.b16 %v3479, %v3478
    %v3489 = vpack.c.b16 %v3481, %v3480
    %3498 = vmatprep.subr.bf16.mxu0 0
    %3499 = vmatpush1.bf16.msra.mxu0 %v3482
    %3500 = vmatprep.subr.bf16.mxu0 0
    %3501 = vmatpush1.bf16.msra.mxu0 %v3483
    %3502 = vmatprep.subr.bf16.mxu0 0
    %3503 = vmatpush1.bf16.msra.mxu0 %v3484
    %3504 = vmatprep.subr.bf16.mxu0 0
    %3505 = vmatpush1.bf16.msra.mxu0 %v3485
    %3506 = vmatprep.subr.bf16.mxu0 0
    %3507 = vmatpush1.bf16.msra.mxu0 %v3486
    %3508 = vmatprep.subr.bf16.mxu0 0
    %3509 = vmatpush1.bf16.msra.mxu0 %v3487
    %3510 = vmatprep.subr.bf16.mxu0 0
    %3511 = vmatpush1.bf16.msra.mxu0 %v3488
    %3512 = vmatprep.subr.bf16.mxu0 0
    %3513 = vmatpush1.bf16.msra.mxu0 %v3489
    %3514 = vmatprep.subr.bf16.mxu0 0
    %3515 = vmatpush1.bf16.msra.mxu0 0
    %3516 = vmatprep.subr.bf16.mxu0 0
    %3517 = vmatpush1.bf16.msra.mxu0 0
    %3518 = vmatprep.subr.bf16.mxu0 0
    %3519 = vmatpush1.bf16.msra.mxu0 0
    %3520 = vmatprep.subr.bf16.mxu0 0
    %3521 = vmatpush1.bf16.msra.mxu0 0
    %3522 = vmatprep.subr.bf16.mxu0 0
    %3523 = vmatpush1.bf16.msra.mxu0 0
    %3524 = vmatprep.subr.bf16.mxu0 0
    %3525 = vmatpush1.bf16.msra.mxu0 0
    %3526 = vmatprep.subr.bf16.mxu0 0
    %3527 = vmatpush1.bf16.msra.mxu0 0
    %3528 = vmatprep.subr.bf16.mxu0 0
    %3529 = vmatpush1.bf16.msra.mxu0 0
    %3530 = vmatprep.mubr.bf16.mxu0 0
    %3531 = vmatmul.mubr.bf16.gmra.mrb[0].mxu0 %v3424
    %v3532 = vpop.f32.mrb[0].mxu0
    %v3533 = vadd.f32 %v3448, %v3532
    %v3534 = vpop.f32.mrb[0].mxu0
    %v3535 = vpop.f32.mrb[0].mxu0
    %v3536 = vadd.f32 %v3448, %v3535
    %v3537 = vpop.f32.mrb[0].mxu0
    %3538 = vdwg.mxu0
    %v3539 = vadd.f32 %v3288, %v3533
    %v3540 = vadd.f32 %v3289, %v3536
    %v3541 = vld [vmem:[%s47] sm:$0x1]
    %v3542 = vld [vmem:[%s49] sm:$0x1]
    %v3543 = vsel %vm616, %v3539, 0.0
    %3544 = vadd.xlane.f32.xlu0 %v3543
    %v3545 = vpop.xlane.xlu0 %3544
    %v3546 = vsel %vm616, %v3540, 0.0
    %3547 = vadd.xlane.f32.xlu0 %v3546
    %v3548 = vpop.xlane.xlu0 %3547
    %v3549 = vmul.f32 %v3545, %v623
    %v3550 = vmul.f32 %v3548, %v623
    %v3551 = vsub.f32 %v3539, %v3549
    %v3552 = vsub.f32 %v3540, %v3550
    %v3553 = vmul.f32 %v3551, %v3551
    %v3554 = vmul.f32 %v3552, %v3552
    %v3555 = vsel %vm616, %v3553, 0.0
    %3556 = vadd.xlane.f32.xlu0 %v3555
    %v3557 = vpop.xlane.xlu0 %3556
    %v3558 = vsel %vm616, %v3554, 0.0
    %3559 = vadd.xlane.f32.xlu0 %v3558
    %v3560 = vpop.xlane.xlu0 %3559
    %v3561 = vmul.f32 %v3557, %v623
    %v3562 = vmul.f32 %v3560, %v623
    %v3563 = vadd.f32 %v3561, 1e-05
    %v3564 = vadd.f32 %v3562, 1e-05
    %v3565 = vrsqrt.pop %v3563
    %v3566 = vrsqrt.pop %v3564
    %v3567 = vmul.f32 %v3551, %v3565
    %v3568 = vmul.f32 %v3552, %v3566
    %v3570 = vlaneseq
    %v3571 = vshrl.u32 %v3570, 7
    %v3572 = vsub.s32 0, %v3571
    %v3573 = vrot.slane %v3541, %v3572
    %v3575 = vmul.f32 %v3567, %v3573
    %v3576 = vmul.f32 %v3568, %v3573
    %v3578 = vlaneseq
    %v3579 = vshrl.u32 %v3578, 7
    %v3580 = vsub.s32 0, %v3579
    %v3581 = vrot.slane %v3542, %v3580
    %v3583 = vadd.f32 %v3575, %v3581
    %v3584 = vadd.f32 %v3576, %v3581
    %3585 = vst.msk [vmem:[#allocation2] sm:$0xff] %vm616, %v3583
    %3586 = vst.msk [vmem:[#allocation2 + $0x8] sm:$0xff] %vm616, %v3584
    %v3587 = vpack.c.bf16 %v3584, %v3583
    %v3588 = vld [vmem:[%s51] sm:$0xf]
    %v3589 = vld [vmem:[%s51 + $0x4] sm:$0xf]
    %v3590 = vld [vmem:[%s51 + $0x8] sm:$0xf]
    %v3591 = vld [vmem:[%s51 + $0xc] sm:$0xf]
    %v3592 = vld [vmem:[%s53] sm:$0x1]
    %v3594 = vlaneseq
    %v3595 = vshrl.u32 %v3594, 7
    %v3596 = vsub.s32 0, %v3595
    %v3597 = vrot.slane %v3592, %v3596
    %v3603 = vunpack.c.l.b16 %v3588
    %v3604 = vunpack.c.l.b16 %v3589
    %v3605 = vunpack.c.l.b16 %v3590
    %v3606 = vunpack.c.l.b16 %v3591
    %v3607 = vpack.c.b16 %v3604, %v3603
    %v3608 = vpack.c.b16 %v3606, %v3605
    %v3612 = vsel %vm616, %v3587, 0
    %3614 = vmatprep.subr.bf16.mxu0 0
    %3615 = vmatpush1.bf16.msra.mxu0 %v3607
    %3616 = vmatprep.subr.bf16.mxu0 0
    %3617 = vmatpush1.bf16.msra.mxu0 %v3608
    %3618 = vmatprep.subr.bf16.mxu0 0
    %3619 = vmatpush1.bf16.msra.mxu0 0
    %3620 = vmatprep.subr.bf16.mxu0 0
    %3621 = vmatpush1.bf16.msra.mxu0 0
    %3622 = vmatprep.subr.bf16.mxu0 0
    %3623 = vmatpush1.bf16.msra.mxu0 0
    %3624 = vmatprep.subr.bf16.mxu0 0
    %3625 = vmatpush1.bf16.msra.mxu0 0
    %3626 = vmatprep.subr.bf16.mxu0 0
    %3627 = vmatpush1.bf16.msra.mxu0 0
    %3628 = vmatprep.subr.bf16.mxu0 0
    %3629 = vmatpush1.bf16.msra.mxu0 0
    %3630 = vmatprep.subr.bf16.mxu0 0
    %3631 = vmatpush1.bf16.msra.mxu0 0
    %3632 = vmatprep.subr.bf16.mxu0 0
    %3633 = vmatpush1.bf16.msra.mxu0 0
    %3634 = vmatprep.subr.bf16.mxu0 0
    %3635 = vmatpush1.bf16.msra.mxu0 0
    %3636 = vmatprep.subr.bf16.mxu0 0
    %3637 = vmatpush1.bf16.msra.mxu0 0
    %3638 = vmatprep.subr.bf16.mxu0 0
    %3639 = vmatpush1.bf16.msra.mxu0 0
    %3640 = vmatprep.subr.bf16.mxu0 0
    %3641 = vmatpush1.bf16.msra.mxu0 0
    %3642 = vmatprep.subr.bf16.mxu0 0
    %3643 = vmatpush1.bf16.msra.mxu0 0
    %3644 = vmatprep.subr.bf16.mxu0 0
    %3645 = vmatpush1.bf16.msra.mxu0 0
    %3646 = vmatprep.mubr.bf16.mxu0 0
    %3647 = vmatmul.mubr.bf16.gmra.mrb[0].mxu0 %v3612
    %v3648 = vpop.f32.mrb[0].mxu0
    %v3649 = vadd.f32 %v3597, %v3648
    %v3650 = vpop.f32.mrb[0].mxu0
    %v3651 = vpop.f32.mrb[0].mxu0
    %v3652 = vadd.f32 %v3597, %v3651
    %v3653 = vpop.f32.mrb[0].mxu0
    %3654 = vdwg.mxu0
    %v3655 = vsub.f32 0.0, %v3649
    %v3656 = vsub.f32 0.0, %v3652
    %v3657 = vmul.f32 %v3655, 1.442695
    %v3658 = vpow.pop %v3657
    %v3659 = vmul.f32 %v3656, 1.442695
    %v3660 = vpow.pop %v3659
    %v3661 = vadd.f32 %v3658, 1.0
    %v3662 = vadd.f32 %v3660, 1.0
    %v3663 = vrcp.pop %v3661
    %v3664 = vmul.f32 1.0, %v3663
    %v3665 = vrcp.pop %v3662
    %v3666 = vmul.f32 1.0, %v3665
    %v3667 = vmul.f32 %v3649, %v3664
    %v3668 = vmul.f32 %v3652, %v3666
    %v3669 = vpack.c.bf16 %v3668, %v3667
    %v3670 = vld [vmem:[%s55] sm:$0xf]
    %v3671 = vld [vmem:[%s55 + $0x4] sm:$0xf]
    %v3672 = vld [vmem:[%s55 + $0x8] sm:$0xf]
    %v3673 = vld [vmem:[%s55 + $0xc] sm:$0xf]
    %v3674 = vld [vmem:[%s57] sm:$0x1]
    %v3676 = vlaneseq
    %v3677 = vshrl.u32 %v3676, 7
    %v3678 = vsub.s32 0, %v3677
    %v3679 = vrot.slane %v3674, %v3678
    %v3685 = vunpack.c.l.b16 %v3670
    %v3686 = vunpack.c.l.b16 %v3671
    %v3687 = vunpack.c.l.b16 %v3672
    %v3688 = vunpack.c.l.b16 %v3673
    %v3689 = vpack.c.b16 %v3686, %v3685
    %v3690 = vpack.c.b16 %v3688, %v3687
    %v3694 = vsel %vm616, %v3669, 0
    %3696 = vmatprep.subr.bf16.mxu0 0
    %3697 = vmatpush1.bf16.msra.mxu0 %v3689
    %3698 = vmatprep.subr.bf16.mxu0 0
    %3699 = vmatpush1.bf16.msra.mxu0 %v3690
    %3700 = vmatprep.subr.bf16.mxu0 0
    %3701 = vmatpush1.bf16.msra.mxu0 0
    %3702 = vmatprep.subr.bf16.mxu0 0
    %3703 = vmatpush1.bf16.msra.mxu0 0
    %3704 = vmatprep.subr.bf16.mxu0 0
    %3705 = vmatpush1.bf16.msra.mxu0 0
    %3706 = vmatprep.subr.bf16.mxu0 0
    %3707 = vmatpush1.bf16.msra.mxu0 0
    %3708 = vmatprep.subr.bf16.mxu0 0
    %3709 = vmatpush1.bf16.msra.mxu0 0
    %3710 = vmatprep.subr.bf16.mxu0 0
    %3711 = vmatpush1.bf16.msra.mxu0 0
    %3712 = vmatprep.subr.bf16.mxu0 0
    %3713 = vmatpush1.bf16.msra.mxu0 0
    %3714 = vmatprep.subr.bf16.mxu0 0
    %3715 = vmatpush1.bf16.msra.mxu0 0
    %3716 = vmatprep.subr.bf16.mxu0 0
    %3717 = vmatpush1.bf16.msra.mxu0 0
    %3718 = vmatprep.subr.bf16.mxu0 0
    %3719 = vmatpush1.bf16.msra.mxu0 0
    %3720 = vmatprep.subr.bf16.mxu0 0
    %3721 = vmatpush1.bf16.msra.mxu0 0
    %3722 = vmatprep.subr.bf16.mxu0 0
    %3723 = vmatpush1.bf16.msra.mxu0 0
    %3724 = vmatprep.subr.bf16.mxu0 0
    %3725 = vmatpush1.bf16.msra.mxu0 0
    %3726 = vmatprep.subr.bf16.mxu0 0
    %3727 = vmatpush1.bf16.msra.mxu0 0
    %3728 = vmatprep.mubr.bf16.mxu0 0
    %3729 = vmatmul.mubr.bf16.gmra.mrb[0].mxu0 %v3694
    %v3730 = vpop.f32.mrb[0].mxu0
    %v3731 = vadd.f32 %v3679, %v3730
    %v3732 = vpop.f32.mrb[0].mxu0
    %v3733 = vpop.f32.mrb[0].mxu0
    %v3734 = vadd.f32 %v3679, %v3733
    %v3735 = vpop.f32.mrb[0].mxu0
    %3736 = vdwg.mxu0
    %v3737 = vsub.f32 0.0, %v3731
    %v3738 = vsub.f32 0.0, %v3734
    %v3739 = vmul.f32 %v3737, 1.442695
    %v3740 = vpow.pop %v3739
    %v3741 = vmul.f32 %v3738, 1.442695
    %v3742 = vpow.pop %v3741
    %v3743 = vadd.f32 %v3740, 1.0
    %v3744 = vadd.f32 %v3742, 1.0
    %v3745 = vrcp.pop %v3743
    %v3746 = vmul.f32 1.0, %v3745
    %v3747 = vrcp.pop %v3744
    %v3748 = vmul.f32 1.0, %v3747
    %v3749 = vmul.f32 %v3731, %v3746
    %v3750 = vmul.f32 %v3734, %v3748
    %v3751 = vpack.c.bf16 %v3750, %v3749
    %v3752 = vld [vmem:[%s59] sm:$0xf]
    %v3753 = vld [vmem:[%s59 + $0x4] sm:$0xf]
    %v3754 = vld [vmem:[%s59 + $0x8] sm:$0xf]
    %v3755 = vld [vmem:[%s59 + $0xc] sm:$0xf]
    %v3756 = vld [vmem:[%s61] sm:$0x1]
    %v3758 = vlaneseq
    %v3759 = vshrl.u32 %v3758, 7
    %v3760 = vsub.s32 0, %v3759
    %v3761 = vrot.slane %v3756, %v3760
    %v3767 = vunpack.c.l.b16 %v3752
    %v3768 = vunpack.c.l.b16 %v3753
    %v3769 = vunpack.c.l.b16 %v3754
    %v3770 = vunpack.c.l.b16 %v3755
    %v3771 = vpack.c.b16 %v3768, %v3767
    %v3772 = vpack.c.b16 %v3770, %v3769
    %v3776 = vsel %vm616, %v3751, 0
    %3778 = vmatprep.subr.bf16.mxu0 0
    %3779 = vmatpush1.bf16.msra.mxu0 %v3771
    %3780 = vmatprep.subr.bf16.mxu0 0
    %3781 = vmatpush1.bf16.msra.mxu0 %v3772
    %3782 = vmatprep.subr.bf16.mxu0 0
    %3783 = vmatpush1.bf16.msra.mxu0 0
    %3784 = vmatprep.subr.bf16.mxu0 0
    %3785 = vmatpush1.bf16.msra.mxu0 0
    %3786 = vmatprep.subr.bf16.mxu0 0
    %3787 = vmatpush1.bf16.msra.mxu0 0
    %3788 = vmatprep.subr.bf16.mxu0 0
    %3789 = vmatpush1.bf16.msra.mxu0 0
    %3790 = vmatprep.subr.bf16.mxu0 0
    %3791 = vmatpush1.bf16.msra.mxu0 0
    %3792 = vmatprep.subr.bf16.mxu0 0
    %3793 = vmatpush1.bf16.msra.mxu0 0
    %3794 = vmatprep.subr.bf16.mxu0 0
    %3795 = vmatpush1.bf16.msra.mxu0 0
    %3796 = vmatprep.subr.bf16.mxu0 0
    %3797 = vmatpush1.bf16.msra.mxu0 0
    %3798 = vmatprep.subr.bf16.mxu0 0
    %3799 = vmatpush1.bf16.msra.mxu0 0
    %3800 = vmatprep.subr.bf16.mxu0 0
    %3801 = vmatpush1.bf16.msra.mxu0 0
    %3802 = vmatprep.subr.bf16.mxu0 0
    %3803 = vmatpush1.bf16.msra.mxu0 0
    %3804 = vmatprep.subr.bf16.mxu0 0
    %3805 = vmatpush1.bf16.msra.mxu0 0
    %3806 = vmatprep.subr.bf16.mxu0 0
    %3807 = vmatpush1.bf16.msra.mxu0 0
    %3808 = vmatprep.subr.bf16.mxu0 0
    %3809 = vmatpush1.bf16.msra.mxu0 0
    %3810 = vmatprep.mubr.bf16.mxu0 0
    %3811 = vmatmul.mubr.bf16.gmra.mrb[0].mxu0 %v3776
    %v3812 = vpop.f32.mrb[0].mxu0
    %v3813 = vadd.f32 %v3761, %v3812
    %v3814 = vpop.f32.mrb[0].mxu0
    %v3815 = vpop.f32.mrb[0].mxu0
    %v3816 = vadd.f32 %v3761, %v3815
    %v3817 = vpop.f32.mrb[0].mxu0
    %3818 = vdwg.mxu0
    %3819 = vst.msk [vmem:[#allocation4] sm:$0xff] %vm616, %v3813
    %3820 = vst.msk [vmem:[#allocation4 + $0x8] sm:$0xff] %vm616, %v3816
    // Predicated region
    $region126: #{_lambda_.1} parent=1 // pred_check
      _
    $region127: #{_lambda_.1} parent=1 // pred_check_branch
      %3822 = sbr.rel (0) target = $region129
    $region128: #{_lambda_.1} parent=1 // pred_region
      %s3824 = ssub.s32 256, 256
      %3825 = vsyncadd [#allocation3], %s3824
      %s3826 = sshll.u32 [#allocation2], 4
      %s3827 = int_to_ptr.vmem [resolvable:$true] %s3826
      %3832 = dma.vmem_to_hbm [thread:$0]  %s3827, 256, %s63, [#allocation3], 128, 128, 8
    $region129: #{_lambda_.1} parent=1 // pred_fallthru
      _
    // Predicated region
    $region130: #{_lambda_.1} parent=1 // pred_check
      _
    $region131: #{_lambda_.1} parent=1 // pred_check_branch
      %3834 = sbr.rel (0) target = $region133
    $region132: #{_lambda_.1} parent=1 // pred_region
      %s3836 = ssub.s32 256, 256
      %3837 = vsyncadd [#allocation5], %s3836
      %s3838 = sshll.u32 [#allocation4], 4
      %s3839 = int_to_ptr.vmem [resolvable:$true] %s3838
      %3844 = dma.vmem_to_hbm [thread:$0]  %s3839, 256, %s65, [#allocation5], 128, 128, 8
    $region133: #{_lambda_.1} parent=1 // pred_fallthru
      _
    // Predicated region
    $region134: #{_lambda_.1} parent=1 // pred_check
      _
    $region135: #{_lambda_.1} parent=1 // pred_check_branch
      %3846 = sbr.rel (0) target = $region137
    $region136: #{_lambda_.1} parent=1 // pred_region
      %3847 = dma.done [#allocation3], 256
    $region137: #{_lambda_.1} parent=1 // pred_fallthru
      _
    // Predicated region
    $region138: #{_lambda_.1} parent=1 // pred_check
      _
    $region139: #{_lambda_.1} parent=1 // pred_check_branch
      %3849 = sbr.rel (0) target = $region141
    $region140: #{_lambda_.1} parent=1 // pred_region
      %3850 = dma.done [#allocation5], 256
    $region141: #{_lambda_.1} parent=1 // pred_fallthru
      _
    %3851 = vsyncpa [#allocation3], 1
    %3852 = vsyncpa [#allocation5], 1

</llo_original>
